<compile_context>
chip_gen: v7x
topology: tpu7x:2x2x1
jax: 0.10.0
libtpu: 0.0.40
codegen_flags: <defaults>
</compile_context>

<pallas_src>
import functools

import jax
import jax.numpy as jnp
from jax.experimental import pallas as pl
from jax.experimental.pallas import tpu as pltpu


# ----------------------------- Pallas kernel ------------------------------ #

def backbone_kernel(
    x_ref,        # (L*B_pad, 1)   value series, row = t*B_pad + b (batch zero-padded to 8)
    gvec_ref,     # (8, 3*GP)      packed vectors: rows 0/1 fwd (w,b), 2/3 bwd (w,b),
                  #                4/5 b_hn (lanes [:GP]), 6 y_bias (lanes [:P])
    whh_ref,      # (2, GP, 3*GP)  [fwd, bwd] recurrent weights, gate-padded [r|z|n]
    wcomb_ref,    # (L, 2*GP, P)   fused (output-proj @ fc): [t] = [Wf_eff[t]; Wb_eff[L-1-t]]
    y_ref,        # out (B_pad, P)
    gi_f_scr,     # scratch VMEM (L*B_pad, 3*GP)
    gi_b_scr,     # scratch VMEM (L*B_pad, 3*GP)
    *, B_pad, L, GP,
):
    P = y_ref.shape[1]
    x = x_ref[...]

    # 1) Input-side gates for all (t, b) at once.  Linear(1,R) and W_ih are folded
    #    into a rank-1 broadcast FMA; b_ih + b_hh(r,z) folded into the bias row.
    gi_f_scr[...] = x * gvec_ref[0:1, :] + gvec_ref[1:2, :]
    gi_b_scr[...] = x * gvec_ref[2:3, :] + gvec_ref[3:4, :]
    bhn_f = gvec_ref[4:5, :GP]    # b_hn kept separate: n = tanh(gi_n + r*(gh_n + b_hn))
    bhn_b = gvec_ref[5:6, :GP]

    # 2) Bidirectional GRU recurrence, fully unrolled (L static).  h = [h_f | h_b],
    #    every gate padded to a full 128-lane tile -> all slices/concats are
    #    vreg-aligned.  Padded lanes stay exactly 0 (weights/biases zero-padded).
    h = jnp.zeros((B_pad, 2 * GP), jnp.float32)
    y_acc = jnp.zeros((B_pad, P), jnp.float32)

    for t in range(L):
        s = L - 1 - t
        gi_f = gi_f_scr[t * B_pad:(t + 1) * B_pad, :]   # sublane-aligned (B_pad == 8k)
        gi_b = gi_b_scr[s * B_pad:(s + 1) * B_pad, :]

        # W_hh streamed from VMEM each step (cheaper than pinning ~96 vregs of
        # weights across the unrolled loop; loads overlap the serial gate chain).
        gh_f = jnp.dot(h[:, :GP], whh_ref[0], preferred_element_type=jnp.float32)
        gh_b = jnp.dot(h[:, GP:], whh_ref[1], preferred_element_type=jnp.float32)

        r_f = jax.nn.sigmoid(gi_f[:, :GP] + gh_f[:, :GP])
        z_f = jax.nn.sigmoid(gi_f[:, GP:2 * GP] + gh_f[:, GP:2 * GP])
        n_f = jnp.tanh(gi_f[:, 2 * GP:] + r_f * (gh_f[:, 2 * GP:] + bhn_f))
        r_b = jax.nn.sigmoid(gi_b[:, :GP] + gh_b[:, :GP])
        z_b = jax.nn.sigmoid(gi_b[:, GP:2 * GP] + gh_b[:, GP:2 * GP])
        n_b = jnp.tanh(gi_b[:, 2 * GP:] + r_b * (gh_b[:, 2 * GP:] + bhn_b))

        h_f = n_f + z_f * (h[:, :GP] - n_f)             # == (1-z)*n + z*h
        h_b = n_b + z_b * (h[:, GP:] - n_b)
        h = jnp.concatenate([h_f, h_b], axis=-1)        # 128-lane boundary: no relayout

        # 3) fc folded through the output projection: one accumulating dot per step
        #    y += h_f(t) @ Wf_eff[t] + h_b(L-1-t) @ Wb_eff[L-1-t]
        y_acc = y_acc + jnp.dot(h, wcomb_ref[t], preferred_element_type=jnp.float32)

    # 4) single store; y_bias = sum_t wo_bias@wfc_t + fc_b was folded at pack time.
    y_ref[...] = y_acc + gvec_ref[6:7, :P]


# ------------------------------ wrapper ----------------------------------- #

def backbone_forward(x, packed):
    B, L, _ = x.shape
    GP = packed["whh"].shape[1]
    P = packed["wcomb"].shape[2]
    B_pad = ((B + 7) // 8) * 8

    # (B, L) value series -> time-major, batch zero-padded to a full sublane tile.
    xt = jnp.transpose(x[:, :, -1])                         # (L, B)
    xt = jnp.pad(xt, ((0, 0), (0, B_pad - B)))              # (L, B_pad)
    x_flat = xt.reshape(L * B_pad, 1)

    kernel = functools.partial(backbone_kernel, B_pad=B_pad, L=L, GP=GP)
    y_pad = pl.pallas_call(
        kernel,
        out_shape=jax.ShapeDtypeStruct((B_pad, P), jnp.float32),
        in_specs=[pl.BlockSpec(memory_space=pltpu.MemorySpace.VMEM)] * 4,
        out_specs=pl.BlockSpec(memory_space=pltpu.MemorySpace.VMEM),
        scratch_shapes=[pltpu.VMEM((L * B_pad, 3 * GP), jnp.float32),
                        pltpu.VMEM((L * B_pad, 3 * GP), jnp.float32)],
    )(x_flat, packed["gvec"], packed["whh"], packed["wcomb"])
    return y_pad[:B]


# ----------------------- parameter init & packing -------------------------- #

def init_params(key, rank, seq_len, pred_len):
    """Raw (PyTorch-layout-equivalent, transposed) parameters."""
    H = rank
    ks = jax.random.split(key, 9)
    s = 0.1

    def gru_dir(k):
        k1, k2, k3, k4 = jax.random.split(k, 4)
        return (jax.random.normal(k1, (rank, 3 * H)) * s,   # W_ih^T  [r|z|n]
                jax.random.normal(k2, (H, 3 * H)) * s,      # W_hh^T
                jax.random.normal(k3, (1, 3 * H)) * s,      # b_ih
                jax.random.normal(k4, (1, 3 * H)) * s)      # b_hh

    wih_f, whh_f, bih_f, bhh_f = gru_dir(ks[2])
    wih_b, whh_b, bih_b, bhh_b = gru_dir(ks[3])

    return dict(
        proj_w=jax.random.normal(ks[0], (1, rank)) * s,     # Linear(1, R) W^T
        proj_b=jax.random.normal(ks[1], (1, rank)) * s,
        wih_f=wih_f, whh_f=whh_f, bih_f=bih_f, bhh_f=bhh_f,
        wih_b=wih_b, whh_b=whh_b, bih_b=bih_b, bhh_b=bhh_b,
        wo_f=jax.random.normal(ks[4], (H, rank)) * s,       # Linear(2H, R) fwd half, W^T
        wo_b=jax.random.normal(ks[5], (H, rank)) * s,       # Linear(2H, R) bwd half, W^T
        wo_bias=jax.random.normal(ks[6], (1, rank)) * s,
        wfc=jax.random.normal(ks[7], (seq_len * rank, pred_len)) * s,  # Linear(L*R, P) W^T
        fc_b=jax.random.normal(ks[8], (1, pred_len)) * s,
    )


def pack_params(raw, seq_len):
    """One-time algebraic folding + vreg-aligned packing of the raw parameters."""
    R = raw["proj_w"].shape[1]
    H = raw["whh_f"].shape[0]
    L = seq_len
    P = raw["fc_b"].shape[1]
    GP = max(128, ((H + 127) // 128) * 128)      # per-gate lane pitch (vreg aligned)
    assert P <= 3 * GP
    f32 = jnp.float32

    def pad_gate_cols(w):                        # (rows, 3H) -> (rows, 3GP), [r|z|n]
        rows = w.shape[0]
        out = jnp.zeros((rows, 3 * GP), f32)
        for g in range(3):
            out = out.at[:, g * GP:g * GP + H].set(w[:, g * H:(g + 1) * H])
        return out

    def direction(wih, whh, bih, bhh):
        wih_p = pad_gate_cols(wih)                               # (R, 3GP)
        wvec = raw["proj_w"] @ wih_p                             # (1, 3GP): proj folded into W_ih
        bhh_rz = jnp.concatenate([bhh[:, :2 * H], jnp.zeros((1, H), f32)], axis=1)
        bvec = raw["proj_b"] @ wih_p + pad_gate_cols(bih + bhh_rz)
        whh_p = jnp.zeros((GP, 3 * GP), f32).at[:H, :].set(pad_gate_cols(whh))
        bhn = jnp.zeros((1, GP), f32).at[:, :H].set(bhh[:, 2 * H:])
        return wvec, bvec, whh_p, bhn

    wvf, bvf, whh_pf, bhn_f = direction(raw["wih_f"], raw["whh_f"], raw["bih_f"], raw["bhh_f"])
    wvb, bvb, whh_pb, bhn_b = direction(raw["wih_b"], raw["whh_b"], raw["bih_b"], raw["bhh_b"])

    # Fold the SeqEncoder output projection Linear(2H, R) through the fc Linear(L*R, P):
    #   W_eff[t] = wo @ wfc[t*R:(t+1)*R]   (rows >= H zero-padded to GP)
    wfc3 = raw["wfc"].reshape(L, R, P)
    wo_f_p = jnp.zeros((GP, R), f32).at[:H].set(raw["wo_f"])
    wo_b_p = jnp.zeros((GP, R), f32).at[:H].set(raw["wo_b"])
    wf_eff = jnp.einsum("gr,trp->tgp", wo_f_p, wfc3)             # (L, GP, P)
    wb_eff = jnp.einsum("gr,trp->tgp", wo_b_p, wfc3)
    # At loop step t the bwd state corresponds to time L-1-t -> pre-reverse its half.
    wcomb = jnp.concatenate([wf_eff, wb_eff[::-1]], axis=1)      # (L, 2GP, P)
    y_bias = raw["wo_bias"] @ wfc3.sum(axis=0) + raw["fc_b"]     # (1, P)

    gvec = jnp.zeros((8, 3 * GP), f32)
    gvec = gvec.at[0].set(wvf[0]).at[1].set(bvf[0])
    gvec = gvec.at[2].set(wvb[0]).at[3].set(bvb[0])
    gvec = gvec.at[4, :GP].set(bhn_f[0]).at[5, :GP].set(bhn_b[0])
    gvec = gvec.at[6, :P].set(y_bias[0])

    return dict(gvec=gvec,
                whh=jnp.stack([whh_pf, whh_pb], axis=0),
                wcomb=wcomb)


# --------------------------- pure-JAX reference ---------------------------- #

def backbone_reference(x, raw):
    B, L, _ = x.shape
    R = raw["proj_w"].shape[1]
    H = raw["whh_f"].shape[0]

    x_seq = x[:, :, -1:]                                               # (B, L, 1)
    x_enc = x_seq * raw["proj_w"][None] + raw["proj_b"][None]          # (B, L, R)
    xe = jnp.transpose(x_enc, (1, 0, 2))                               # (L, B, R)

    def run(seq, wih, whh, bih, bhh):
        def step(h, x_t):
            gi = x_t @ wih + bih                                       # (B, 3H)
            gh = h @ whh + bhh
            r = jax.nn.sigmoid(gi[:, :H] + gh[:, :H])
            z = jax.nn.sigmoid(gi[:, H:2 * H] + gh[:, H:2 * H])
            n = jnp.tanh(gi[:, 2 * H:] + r * gh[:, 2 * H:])
            h_new = (1.0 - z) * n + z * h
            return h_new, h_new
        _, hs = jax.lax.scan(step, jnp.zeros((B, H), jnp.float32), seq)
        return hs                                                      # (L, B, H)

    h_f = run(xe, raw["wih_f"], raw["whh_f"], raw["bih_f"], raw["bhh_f"])
    h_b = run(xe[::-1], raw["wih_b"], raw["whh_b"], raw["bih_b"], raw["bhh_b"])[::-1]

    emb = (jnp.einsum("lbh,hr->lbr", h_f, raw["wo_f"])
           + jnp.einsum("lbh,hr->lbr", h_b, raw["wo_b"])
           + raw["wo_bias"][None])                                     # (L, B, R)
    emb_flat = jnp.transpose(emb, (1, 0, 2)).reshape(B, L * R)         # (B, L*R)
    return emb_flat @ raw["wfc"] + raw["fc_b"]


# --------------------------------- main ------------------------------------ #

if __name__ == "__main__":
    # small config: rank=32, seq_len=8, pred_len=4, num_layers=1, enc_in=6, batch=2
    B, L, F = 2, 8, 6
    RANK, PRED = 32, 4

    key = jax.random.PRNGKey(0)
    kx, kp = jax.random.split(key)
    x = jax.random.normal(kx, (B, L, F), dtype=jnp.float32)
    # column 0 plays the role of an (unused) integer code index
    x = x.at[:, :, 0].set(jnp.floor(jnp.abs(x[:, :, 0]) * 100.0))

    raw_params = init_params(kp, RANK, L, PRED)
    packed = pack_params(raw_params, L)

    y = jax.block_until_ready(backbone_forward(x, packed))
    y_ref = jax.block_until_ready(backbone_reference(x, raw_params))

    assert y.shape == (B, PRED), y.shape
    max_err = float(jnp.max(jnp.abs(y - y_ref)))
    assert jnp.allclose(y, y_ref, rtol=1e-4, atol=1e-5), (y, y_ref, max_err)
    print("KERNEL_OK")
</pallas_src>

<mosaic_0001>
module attributes {stable_mosaic.version = 11 : i64} {
  func.func @backbone_kernel(%arg0: memref<64x1xf32, #tpu.memory_space<vmem>>, %arg1: memref<8x384xf32, #tpu.memory_space<vmem>>, %arg2: memref<2x128x384xf32, #tpu.memory_space<vmem>>, %arg3: memref<8x256x4xf32, #tpu.memory_space<vmem>>, %arg4: memref<8x4xf32, #tpu.memory_space<vmem>>, %arg5: memref<64x384xf32, #tpu.memory_space<vmem>>, %arg6: memref<64x384xf32, #tpu.memory_space<vmem>>) attributes {dimension_semantics = [], scalar_prefetch = 0 : i64, scratch_operands = 2 : i64, tpu.core_type = #tpu.core_type<tc>} {
    %c0 = arith.constant 0 : index
    %c0_0 = arith.constant 0 : index
    %0 = vector.load %arg0[%c0, %c0_0] : memref<64x1xf32, #tpu.memory_space<vmem>>, vector<64x1xf32>
    %c0_1 = arith.constant 0 : index
    %c0_2 = arith.constant 0 : index
    %1 = vector.load %arg1[%c0_1, %c0_2] : memref<8x384xf32, #tpu.memory_space<vmem>>, vector<1x384xf32>
    %2 = vector.broadcast %0 : vector<64x1xf32> to vector<64x384xf32>
    %3 = vector.broadcast %1 : vector<1x384xf32> to vector<64x384xf32>
    %4 = arith.mulf %2, %3 : vector<64x384xf32>
    %c1 = arith.constant 1 : index
    %c0_3 = arith.constant 0 : index
    %5 = vector.load %arg1[%c1, %c0_3] : memref<8x384xf32, #tpu.memory_space<vmem>>, vector<1x384xf32>
    %6 = vector.broadcast %5 : vector<1x384xf32> to vector<64x384xf32>
    %7 = arith.addf %4, %6 : vector<64x384xf32>
    %c0_4 = arith.constant 0 : index
    %c0_5 = arith.constant 0 : index
    %8 = vector.load %arg5[%c0_4, %c0_5] : memref<64x384xf32, #tpu.memory_space<vmem>>, vector<64x384xf32>
    tpu.vector_store %arg5[%c0_4, %c0_5], %7 {strides = array<i32>} : memref<64x384xf32, #tpu.memory_space<vmem>>, vector<64x384xf32>,
    %c2 = arith.constant 2 : index
    %c0_6 = arith.constant 0 : index
    %9 = vector.load %arg1[%c2, %c0_6] : memref<8x384xf32, #tpu.memory_space<vmem>>, vector<1x384xf32>
    %10 = vector.broadcast %0 : vector<64x1xf32> to vector<64x384xf32>
    %11 = vector.broadcast %9 : vector<1x384xf32> to vector<64x384xf32>
    %12 = arith.mulf %10, %11 : vector<64x384xf32>
    %c3 = arith.constant 3 : index
    %c0_7 = arith.constant 0 : index
    %13 = vector.load %arg1[%c3, %c0_7] : memref<8x384xf32, #tpu.memory_space<vmem>>, vector<1x384xf32>
    %14 = vector.broadcast %13 : vector<1x384xf32> to vector<64x384xf32>
    %15 = arith.addf %12, %14 : vector<64x384xf32>
    %c0_8 = arith.constant 0 : index
    %c0_9 = arith.constant 0 : index
    %16 = vector.load %arg6[%c0_8, %c0_9] : memref<64x384xf32, #tpu.memory_space<vmem>>, vector<64x384xf32>
    tpu.vector_store %arg6[%c0_8, %c0_9], %15 {strides = array<i32>} : memref<64x384xf32, #tpu.memory_space<vmem>>, vector<64x384xf32>,
    %c4 = arith.constant 4 : index
    %c0_10 = arith.constant 0 : index
    %17 = vector.load %arg1[%c4, %c0_10] : memref<8x384xf32, #tpu.memory_space<vmem>>, vector<1x128xf32>
    %c5 = arith.constant 5 : index
    %c0_11 = arith.constant 0 : index
    %18 = vector.load %arg1[%c5, %c0_11] : memref<8x384xf32, #tpu.memory_space<vmem>>, vector<1x128xf32>
    %cst = arith.constant 0.000000e+00 : f32
    %19 = vector.broadcast %cst : f32 to vector<8x256xf32>
    %cst_12 = arith.constant 0.000000e+00 : f32
    %20 = vector.broadcast %cst_12 : f32 to vector<8x4xf32>
    %c0_13 = arith.constant 0 : index
    %c0_14 = arith.constant 0 : index
    %21 = vector.load %arg5[%c0_13, %c0_14] : memref<64x384xf32, #tpu.memory_space<vmem>>, vector<8x384xf32>
    %c56 = arith.constant 56 : index
    %c0_15 = arith.constant 0 : index
    %22 = vector.load %arg6[%c56, %c0_15] : memref<64x384xf32, #tpu.memory_space<vmem>>, vector<8x384xf32>
    %23 = vector.extract_strided_slice %19 {offsets = [0, 0], sizes = [8, 128], strides = [1, 1]} : vector<8x256xf32> to vector<8x128xf32>
    %c0_16 = arith.constant 0 : index
    %c0_17 = arith.constant 0 : index
    %c0_18 = arith.constant 0 : index
    %24 = vector.load %arg2[%c0_16, %c0_17, %c0_18] : memref<2x128x384xf32, #tpu.memory_space<vmem>>, vector<1x128x384xf32>
    %25 = vector.shape_cast %24 : vector<1x128x384xf32> to vector<128x384xf32>
    %cst_19 = arith.constant dense<0.000000e+00> : vector<8x384xf32>
    %26 = tpu.matmul %23, %25, %cst_19 {dimension_numbers = #tpu.dot_dimension_numbers<[1], [0], [0], [1], [0, 0, 1, 1], [], []>} : vector<8x128xf32>, vector<128x384xf32>, vector<8x384xf32> -> vector<8x384xf32>
    %27 = vector.extract_strided_slice %19 {offsets = [0, 128], sizes = [8, 128], strides = [1, 1]} : vector<8x256xf32> to vector<8x128xf32>
    %c1_20 = arith.constant 1 : index
    %c0_21 = arith.constant 0 : index
    %c0_22 = arith.constant 0 : index
    %28 = vector.load %arg2[%c1_20, %c0_21, %c0_22] : memref<2x128x384xf32, #tpu.memory_space<vmem>>, vector<1x128x384xf32>
    %29 = vector.shape_cast %28 : vector<1x128x384xf32> to vector<128x384xf32>
    %cst_23 = arith.constant dense<0.000000e+00> : vector<8x384xf32>
    %30 = tpu.matmul %27, %29, %cst_23 {dimension_numbers = #tpu.dot_dimension_numbers<[1], [0], [0], [1], [0, 0, 1, 1], [], []>} : vector<8x128xf32>, vector<128x384xf32>, vector<8x384xf32> -> vector<8x384xf32>
    %31 = vector.extract_strided_slice %21 {offsets = [0, 0], sizes = [8, 128], strides = [1, 1]} : vector<8x384xf32> to vector<8x128xf32>
    %32 = vector.extract_strided_slice %26 {offsets = [0, 0], sizes = [8, 128], strides = [1, 1]} : vector<8x384xf32> to vector<8x128xf32>
    %33 = arith.addf %31, %32 : vector<8x128xf32>
    %34 = arith.negf %33 : vector<8x128xf32>
    %35 = math.exp %34 : vector<8x128xf32>
    %cst_24 = arith.constant 1.000000e+00 : f32
    %36 = vector.broadcast %cst_24 : f32 to vector<8x128xf32>
    %37 = arith.addf %36, %35 : vector<8x128xf32>
    %38 = arith.divf %36, %37 : vector<8x128xf32>
    %39 = vector.extract_strided_slice %21 {offsets = [0, 128], sizes = [8, 128], strides = [1, 1]} : vector<8x384xf32> to vector<8x128xf32>
    %40 = vector.extract_strided_slice %26 {offsets = [0, 128], sizes = [8, 128], strides = [1, 1]} : vector<8x384xf32> to vector<8x128xf32>
    %41 = arith.addf %39, %40 : vector<8x128xf32>
    %42 = arith.negf %41 : vector<8x128xf32>
    %43 = math.exp %42 : vector<8x128xf32>
    %cst_25 = arith.constant 1.000000e+00 : f32
    %44 = vector.broadcast %cst_25 : f32 to vector<8x128xf32>
    %45 = arith.addf %44, %43 : vector<8x128xf32>
    %46 = arith.divf %44, %45 : vector<8x128xf32>
    %47 = vector.extract_strided_slice %21 {offsets = [0, 256], sizes = [8, 128], strides = [1, 1]} : vector<8x384xf32> to vector<8x128xf32>
    %48 = vector.extract_strided_slice %26 {offsets = [0, 256], sizes = [8, 128], strides = [1, 1]} : vector<8x384xf32> to vector<8x128xf32>
    %49 = vector.broadcast %17 : vector<1x128xf32> to vector<8x128xf32>
    %50 = arith.addf %48, %49 : vector<8x128xf32>
    %51 = arith.mulf %38, %50 : vector<8x128xf32>
    %52 = arith.addf %47, %51 : vector<8x128xf32>
    %53 = math.tanh %52 : vector<8x128xf32>
    %54 = vector.extract_strided_slice %22 {offsets = [0, 0], sizes = [8, 128], strides = [1, 1]} : vector<8x384xf32> to vector<8x128xf32>
    %55 = vector.extract_strided_slice %30 {offsets = [0, 0], sizes = [8, 128], strides = [1, 1]} : vector<8x384xf32> to vector<8x128xf32>
    %56 = arith.addf %54, %55 : vector<8x128xf32>
    %57 = arith.negf %56 : vector<8x128xf32>
    %58 = math.exp %57 : vector<8x128xf32>
    %cst_26 = arith.constant 1.000000e+00 : f32
    %59 = vector.broadcast %cst_26 : f32 to vector<8x128xf32>
    %60 = arith.addf %59, %58 : vector<8x128xf32>
    %61 = arith.divf %59, %60 : vector<8x128xf32>
    %62 = vector.extract_strided_slice %22 {offsets = [0, 128], sizes = [8, 128], strides = [1, 1]} : vector<8x384xf32> to vector<8x128xf32>
    %63 = vector.extract_strided_slice %30 {offsets = [0, 128], sizes = [8, 128], strides = [1, 1]} : vector<8x384xf32> to vector<8x128xf32>
    %64 = arith.addf %62, %63 : vector<8x128xf32>
    %65 = arith.negf %64 : vector<8x128xf32>
    %66 = math.exp %65 : vector<8x128xf32>
    %cst_27 = arith.constant 1.000000e+00 : f32
    %67 = vector.broadcast %cst_27 : f32 to vector<8x128xf32>
    %68 = arith.addf %67, %66 : vector<8x128xf32>
    %69 = arith.divf %67, %68 : vector<8x128xf32>
    %70 = vector.extract_strided_slice %22 {offsets = [0, 256], sizes = [8, 128], strides = [1, 1]} : vector<8x384xf32> to vector<8x128xf32>
    %71 = vector.extract_strided_slice %30 {offsets = [0, 256], sizes = [8, 128], strides = [1, 1]} : vector<8x384xf32> to vector<8x128xf32>
    %72 = vector.broadcast %18 : vector<1x128xf32> to vector<8x128xf32>
    %73 = arith.addf %71, %72 : vector<8x128xf32>
    %74 = arith.mulf %61, %73 : vector<8x128xf32>
    %75 = arith.addf %70, %74 : vector<8x128xf32>
    %76 = math.tanh %75 : vector<8x128xf32>
    %77 = vector.extract_strided_slice %19 {offsets = [0, 0], sizes = [8, 128], strides = [1, 1]} : vector<8x256xf32> to vector<8x128xf32>
    %78 = arith.subf %77, %53 : vector<8x128xf32>
    %79 = arith.mulf %46, %78 : vector<8x128xf32>
    %80 = arith.addf %53, %79 : vector<8x128xf32>
    %81 = vector.extract_strided_slice %19 {offsets = [0, 128], sizes = [8, 128], strides = [1, 1]} : vector<8x256xf32> to vector<8x128xf32>
    %82 = arith.subf %81, %76 : vector<8x128xf32>
    %83 = arith.mulf %69, %82 : vector<8x128xf32>
    %84 = arith.addf %76, %83 : vector<8x128xf32>
    %85 = tpu.concatenate %80, %84 in 1 : vector<8x128xf32>, vector<8x128xf32> -> vector<8x256xf32>
    %c0_28 = arith.constant 0 : index
    %c0_29 = arith.constant 0 : index
    %c0_30 = arith.constant 0 : index
    %86 = vector.load %arg3[%c0_28, %c0_29, %c0_30] : memref<8x256x4xf32, #tpu.memory_space<vmem>>, vector<1x256x4xf32>
    %87 = vector.shape_cast %86 : vector<1x256x4xf32> to vector<256x4xf32>
    %cst_31 = arith.constant dense<0.000000e+00> : vector<8x4xf32>
    %88 = tpu.matmul %85, %87, %cst_31 {dimension_numbers = #tpu.dot_dimension_numbers<[1], [0], [0], [1], [0, 0, 1, 1], [], []>} : vector<8x256xf32>, vector<256x4xf32>, vector<8x4xf32> -> vector<8x4xf32>
    %89 = arith.addf %20, %88 : vector<8x4xf32>
    %c8 = arith.constant 8 : index
    %c0_32 = arith.constant 0 : index
    %90 = vector.load %arg5[%c8, %c0_32] : memref<64x384xf32, #tpu.memory_space<vmem>>, vector<8x384xf32>
    %c48 = arith.constant 48 : index
    %c0_33 = arith.constant 0 : index
    %91 = vector.load %arg6[%c48, %c0_33] : memref<64x384xf32, #tpu.memory_space<vmem>>, vector<8x384xf32>
    %92 = vector.extract_strided_slice %85 {offsets = [0, 0], sizes = [8, 128], strides = [1, 1]} : vector<8x256xf32> to vector<8x128xf32>
    %c0_34 = arith.constant 0 : index
    %c0_35 = arith.constant 0 : index
    %c0_36 = arith.constant 0 : index
    %93 = vector.load %arg2[%c0_34, %c0_35, %c0_36] : memref<2x128x384xf32, #tpu.memory_space<vmem>>, vector<1x128x384xf32>
    %94 = vector.shape_cast %93 : vector<1x128x384xf32> to vector<128x384xf32>
    %cst_37 = arith.constant dense<0.000000e+00> : vector<8x384xf32>
    %95 = tpu.matmul %92, %94, %cst_37 {dimension_numbers = #tpu.dot_dimension_numbers<[1], [0], [0], [1], [0, 0, 1, 1], [], []>} : vector<8x128xf32>, vector<128x384xf32>, vector<8x384xf32> -> vector<8x384xf32>
    %96 = vector.extract_strided_slice %85 {offsets = [0, 128], sizes = [8, 128], strides = [1, 1]} : vector<8x256xf32> to vector<8x128xf32>
    %c1_38 = arith.constant 1 : index
    %c0_39 = arith.constant 0 : index
    %c0_40 = arith.constant 0 : index
    %97 = vector.load %arg2[%c1_38, %c0_39, %c0_40] : memref<2x128x384xf32, #tpu.memory_space<vmem>>, vector<1x128x384xf32>
    %98 = vector.shape_cast %97 : vector<1x128x384xf32> to vector<128x384xf32>
    %cst_41 = arith.constant dense<0.000000e+00> : vector<8x384xf32>
    %99 = tpu.matmul %96, %98, %cst_41 {dimension_numbers = #tpu.dot_dimension_numbers<[1], [0], [0], [1], [0, 0, 1, 1], [], []>} : vector<8x128xf32>, vector<128x384xf32>, vector<8x384xf32> -> vector<8x384xf32>
    %100 = vector.extract_strided_slice %90 {offsets = [0, 0], sizes = [8, 128], strides = [1, 1]} : vector<8x384xf32> to vector<8x128xf32>
    %101 = vector.extract_strided_slice %95 {offsets = [0, 0], sizes = [8, 128], strides = [1, 1]} : vector<8x384xf32> to vector<8x128xf32>
    %102 = arith.addf %100, %101 : vector<8x128xf32>
    %103 = arith.negf %102 : vector<8x128xf32>
    %104 = math.exp %103 : vector<8x128xf32>
    %cst_42 = arith.constant 1.000000e+00 : f32
    %105 = vector.broadcast %cst_42 : f32 to vector<8x128xf32>
    %106 = arith.addf %105, %104 : vector<8x128xf32>
    %107 = arith.divf %105, %106 : vector<8x128xf32>
    %108 = vector.extract_strided_slice %90 {offsets = [0, 128], sizes = [8, 128], strides = [1, 1]} : vector<8x384xf32> to vector<8x128xf32>
    %109 = vector.extract_strided_slice %95 {offsets = [0, 128], sizes = [8, 128], strides = [1, 1]} : vector<8x384xf32> to vector<8x128xf32>
    %110 = arith.addf %108, %109 : vector<8x128xf32>
    %111 = arith.negf %110 : vector<8x128xf32>
    %112 = math.exp %111 : vector<8x128xf32>
    %cst_43 = arith.constant 1.000000e+00 : f32
    %113 = vector.broadcast %cst_43 : f32 to vector<8x128xf32>
    %114 = arith.addf %113, %112 : vector<8x128xf32>
    %115 = arith.divf %113, %114 : vector<8x128xf32>
    %116 = vector.extract_strided_slice %90 {offsets = [0, 256], sizes = [8, 128], strides = [1, 1]} : vector<8x384xf32> to vector<8x128xf32>
    %117 = vector.extract_strided_slice %95 {offsets = [0, 256], sizes = [8, 128], strides = [1, 1]} : vector<8x384xf32> to vector<8x128xf32>
    %118 = vector.broadcast %17 : vector<1x128xf32> to vector<8x128xf32>
    %119 = arith.addf %117, %118 : vector<8x128xf32>
    %120 = arith.mulf %107, %119 : vector<8x128xf32>
    %121 = arith.addf %116, %120 : vector<8x128xf32>
    %122 = math.tanh %121 : vector<8x128xf32>
    %123 = vector.extract_strided_slice %91 {offsets = [0, 0], sizes = [8, 128], strides = [1, 1]} : vector<8x384xf32> to vector<8x128xf32>
    %124 = vector.extract_strided_slice %99 {offsets = [0, 0], sizes = [8, 128], strides = [1, 1]} : vector<8x384xf32> to vector<8x128xf32>
    %125 = arith.addf %123, %124 : vector<8x128xf32>
    %126 = arith.negf %125 : vector<8x128xf32>
    %127 = math.exp %126 : vector<8x128xf32>
    %cst_44 = arith.constant 1.000000e+00 : f32
    %128 = vector.broadcast %cst_44 : f32 to vector<8x128xf32>
    %129 = arith.addf %128, %127 : vector<8x128xf32>
    %130 = arith.divf %128, %129 : vector<8x128xf32>
    %131 = vector.extract_strided_slice %91 {offsets = [0, 128], sizes = [8, 128], strides = [1, 1]} : vector<8x384xf32> to vector<8x128xf32>
    %132 = vector.extract_strided_slice %99 {offsets = [0, 128], sizes = [8, 128], strides = [1, 1]} : vector<8x384xf32> to vector<8x128xf32>
    %133 = arith.addf %131, %132 : vector<8x128xf32>
    %134 = arith.negf %133 : vector<8x128xf32>
    %135 = math.exp %134 : vector<8x128xf32>
    %cst_45 = arith.constant 1.000000e+00 : f32
    %136 = vector.broadcast %cst_45 : f32 to vector<8x128xf32>
    %137 = arith.addf %136, %135 : vector<8x128xf32>
    %138 = arith.divf %136, %137 : vector<8x128xf32>
    %139 = vector.extract_strided_slice %91 {offsets = [0, 256], sizes = [8, 128], strides = [1, 1]} : vector<8x384xf32> to vector<8x128xf32>
    %140 = vector.extract_strided_slice %99 {offsets = [0, 256], sizes = [8, 128], strides = [1, 1]} : vector<8x384xf32> to vector<8x128xf32>
    %141 = vector.broadcast %18 : vector<1x128xf32> to vector<8x128xf32>
    %142 = arith.addf %140, %141 : vector<8x128xf32>
    %143 = arith.mulf %130, %142 : vector<8x128xf32>
    %144 = arith.addf %139, %143 : vector<8x128xf32>
    %145 = math.tanh %144 : vector<8x128xf32>
    %146 = vector.extract_strided_slice %85 {offsets = [0, 0], sizes = [8, 128], strides = [1, 1]} : vector<8x256xf32> to vector<8x128xf32>
    %147 = arith.subf %146, %122 : vector<8x128xf32>
    %148 = arith.mulf %115, %147 : vector<8x128xf32>
    %149 = arith.addf %122, %148 : vector<8x128xf32>
    %150 = vector.extract_strided_slice %85 {offsets = [0, 128], sizes = [8, 128], strides = [1, 1]} : vector<8x256xf32> to vector<8x128xf32>
    %151 = arith.subf %150, %145 : vector<8x128xf32>
    %152 = arith.mulf %138, %151 : vector<8x128xf32>
    %153 = arith.addf %145, %152 : vector<8x128xf32>
    %154 = tpu.concatenate %149, %153 in 1 : vector<8x128xf32>, vector<8x128xf32> -> vector<8x256xf32>
    %c1_46 = arith.constant 1 : index
    %c0_47 = arith.constant 0 : index
    %c0_48 = arith.constant 0 : index
    %155 = vector.load %arg3[%c1_46, %c0_47, %c0_48] : memref<8x256x4xf32, #tpu.memory_space<vmem>>, vector<1x256x4xf32>
    %156 = vector.shape_cast %155 : vector<1x256x4xf32> to vector<256x4xf32>
    %cst_49 = arith.constant dense<0.000000e+00> : vector<8x4xf32>
    %157 = tpu.matmul %154, %156, %cst_49 {dimension_numbers = #tpu.dot_dimension_numbers<[1], [0], [0], [1], [0, 0, 1, 1], [], []>} : vector<8x256xf32>, vector<256x4xf32>, vector<8x4xf32> -> vector<8x4xf32>
    %158 = arith.addf %89, %157 : vector<8x4xf32>
    %c16 = arith.constant 16 : index
    %c0_50 = arith.constant 0 : index
    %159 = vector.load %arg5[%c16, %c0_50] : memref<64x384xf32, #tpu.memory_space<vmem>>, vector<8x384xf32>
    %c40 = arith.constant 40 : index
    %c0_51 = arith.constant 0 : index
    %160 = vector.load %arg6[%c40, %c0_51] : memref<64x384xf32, #tpu.memory_space<vmem>>, vector<8x384xf32>
    %161 = vector.extract_strided_slice %154 {offsets = [0, 0], sizes = [8, 128], strides = [1, 1]} : vector<8x256xf32> to vector<8x128xf32>
    %c0_52 = arith.constant 0 : index
    %c0_53 = arith.constant 0 : index
    %c0_54 = arith.constant 0 : index
    %162 = vector.load %arg2[%c0_52, %c0_53, %c0_54] : memref<2x128x384xf32, #tpu.memory_space<vmem>>, vector<1x128x384xf32>
    %163 = vector.shape_cast %162 : vector<1x128x384xf32> to vector<128x384xf32>
    %cst_55 = arith.constant dense<0.000000e+00> : vector<8x384xf32>
    %164 = tpu.matmul %161, %163, %cst_55 {dimension_numbers = #tpu.dot_dimension_numbers<[1], [0], [0], [1], [0, 0, 1, 1], [], []>} : vector<8x128xf32>, vector<128x384xf32>, vector<8x384xf32> -> vector<8x384xf32>
    %165 = vector.extract_strided_slice %154 {offsets = [0, 128], sizes = [8, 128], strides = [1, 1]} : vector<8x256xf32> to vector<8x128xf32>
    %c1_56 = arith.constant 1 : index
    %c0_57 = arith.constant 0 : index
    %c0_58 = arith.constant 0 : index
    %166 = vector.load %arg2[%c1_56, %c0_57, %c0_58] : memref<2x128x384xf32, #tpu.memory_space<vmem>>, vector<1x128x384xf32>
    %167 = vector.shape_cast %166 : vector<1x128x384xf32> to vector<128x384xf32>
    %cst_59 = arith.constant dense<0.000000e+00> : vector<8x384xf32>
    %168 = tpu.matmul %165, %167, %cst_59 {dimension_numbers = #tpu.dot_dimension_numbers<[1], [0], [0], [1], [0, 0, 1, 1], [], []>} : vector<8x128xf32>, vector<128x384xf32>, vector<8x384xf32> -> vector<8x384xf32>
    %169 = vector.extract_strided_slice %159 {offsets = [0, 0], sizes = [8, 128], strides = [1, 1]} : vector<8x384xf32> to vector<8x128xf32>
    %170 = vector.extract_strided_slice %164 {offsets = [0, 0], sizes = [8, 128], strides = [1, 1]} : vector<8x384xf32> to vector<8x128xf32>
    %171 = arith.addf %169, %170 : vector<8x128xf32>
    %172 = arith.negf %171 : vector<8x128xf32>
    %173 = math.exp %172 : vector<8x128xf32>
    %cst_60 = arith.constant 1.000000e+00 : f32
    %174 = vector.broadcast %cst_60 : f32 to vector<8x128xf32>
    %175 = arith.addf %174, %173 : vector<8x128xf32>
    %176 = arith.divf %174, %175 : vector<8x128xf32>
    %177 = vector.extract_strided_slice %159 {offsets = [0, 128], sizes = [8, 128], strides = [1, 1]} : vector<8x384xf32> to vector<8x128xf32>
    %178 = vector.extract_strided_slice %164 {offsets = [0, 128], sizes = [8, 128], strides = [1, 1]} : vector<8x384xf32> to vector<8x128xf32>
    %179 = arith.addf %177, %178 : vector<8x128xf32>
    %180 = arith.negf %179 : vector<8x128xf32>
    %181 = math.exp %180 : vector<8x128xf32>
    %cst_61 = arith.constant 1.000000e+00 : f32
    %182 = vector.broadcast %cst_61 : f32 to vector<8x128xf32>
    %183 = arith.addf %182, %181 : vector<8x128xf32>
    %184 = arith.divf %182, %183 : vector<8x128xf32>
    %185 = vector.extract_strided_slice %159 {offsets = [0, 256], sizes = [8, 128], strides = [1, 1]} : vector<8x384xf32> to vector<8x128xf32>
    %186 = vector.extract_strided_slice %164 {offsets = [0, 256], sizes = [8, 128], strides = [1, 1]} : vector<8x384xf32> to vector<8x128xf32>
    %187 = vector.broadcast %17 : vector<1x128xf32> to vector<8x128xf32>
    %188 = arith.addf %186, %187 : vector<8x128xf32>
    %189 = arith.mulf %176, %188 : vector<8x128xf32>
    %190 = arith.addf %185, %189 : vector<8x128xf32>
    %191 = math.tanh %190 : vector<8x128xf32>
    %192 = vector.extract_strided_slice %160 {offsets = [0, 0], sizes = [8, 128], strides = [1, 1]} : vector<8x384xf32> to vector<8x128xf32>
    %193 = vector.extract_strided_slice %168 {offsets = [0, 0], sizes = [8, 128], strides = [1, 1]} : vector<8x384xf32> to vector<8x128xf32>
    %194 = arith.addf %192, %193 : vector<8x128xf32>
    %195 = arith.negf %194 : vector<8x128xf32>
    %196 = math.exp %195 : vector<8x128xf32>
    %cst_62 = arith.constant 1.000000e+00 : f32
    %197 = vector.broadcast %cst_62 : f32 to vector<8x128xf32>
    %198 = arith.addf %197, %196 : vector<8x128xf32>
    %199 = arith.divf %197, %198 : vector<8x128xf32>
    %200 = vector.extract_strided_slice %160 {offsets = [0, 128], sizes = [8, 128], strides = [1, 1]} : vector<8x384xf32> to vector<8x128xf32>
    %201 = vector.extract_strided_slice %168 {offsets = [0, 128], sizes = [8, 128], strides = [1, 1]} : vector<8x384xf32> to vector<8x128xf32>
    %202 = arith.addf %200, %201 : vector<8x128xf32>
    %203 = arith.negf %202 : vector<8x128xf32>
    %204 = math.exp %203 : vector<8x128xf32>
    %cst_63 = arith.constant 1.000000e+00 : f32
    %205 = vector.broadcast %cst_63 : f32 to vector<8x128xf32>
    %206 = arith.addf %205, %204 : vector<8x128xf32>
    %207 = arith.divf %205, %206 : vector<8x128xf32>
    %208 = vector.extract_strided_slice %160 {offsets = [0, 256], sizes = [8, 128], strides = [1, 1]} : vector<8x384xf32> to vector<8x128xf32>
    %209 = vector.extract_strided_slice %168 {offsets = [0, 256], sizes = [8, 128], strides = [1, 1]} : vector<8x384xf32> to vector<8x128xf32>
    %210 = vector.broadcast %18 : vector<1x128xf32> to vector<8x128xf32>
    %211 = arith.addf %209, %210 : vector<8x128xf32>
    %212 = arith.mulf %199, %211 : vector<8x128xf32>
    %213 = arith.addf %208, %212 : vector<8x128xf32>
    %214 = math.tanh %213 : vector<8x128xf32>
    %215 = vector.extract_strided_slice %154 {offsets = [0, 0], sizes = [8, 128], strides = [1, 1]} : vector<8x256xf32> to vector<8x128xf32>
    %216 = arith.subf %215, %191 : vector<8x128xf32>
    %217 = arith.mulf %184, %216 : vector<8x128xf32>
    %218 = arith.addf %191, %217 : vector<8x128xf32>
    %219 = vector.extract_strided_slice %154 {offsets = [0, 128], sizes = [8, 128], strides = [1, 1]} : vector<8x256xf32> to vector<8x128xf32>
    %220 = arith.subf %219, %214 : vector<8x128xf32>
    %221 = arith.mulf %207, %220 : vector<8x128xf32>
    %222 = arith.addf %214, %221 : vector<8x128xf32>
    %223 = tpu.concatenate %218, %222 in 1 : vector<8x128xf32>, vector<8x128xf32> -> vector<8x256xf32>
    %c2_64 = arith.constant 2 : index
    %c0_65 = arith.constant 0 : index
    %c0_66 = arith.constant 0 : index
    %224 = vector.load %arg3[%c2_64, %c0_65, %c0_66] : memref<8x256x4xf32, #tpu.memory_space<vmem>>, vector<1x256x4xf32>
    %225 = vector.shape_cast %224 : vector<1x256x4xf32> to vector<256x4xf32>
    %cst_67 = arith.constant dense<0.000000e+00> : vector<8x4xf32>
    %226 = tpu.matmul %223, %225, %cst_67 {dimension_numbers = #tpu.dot_dimension_numbers<[1], [0], [0], [1], [0, 0, 1, 1], [], []>} : vector<8x256xf32>, vector<256x4xf32>, vector<8x4xf32> -> vector<8x4xf32>
    %227 = arith.addf %158, %226 : vector<8x4xf32>
    %c24 = arith.constant 24 : index
    %c0_68 = arith.constant 0 : index
    %228 = vector.load %arg5[%c24, %c0_68] : memref<64x384xf32, #tpu.memory_space<vmem>>, vector<8x384xf32>
    %c32 = arith.constant 32 : index
    %c0_69 = arith.constant 0 : index
    %229 = vector.load %arg6[%c32, %c0_69] : memref<64x384xf32, #tpu.memory_space<vmem>>, vector<8x384xf32>
    %230 = vector.extract_strided_slice %223 {offsets = [0, 0], sizes = [8, 128], strides = [1, 1]} : vector<8x256xf32> to vector<8x128xf32>
    %c0_70 = arith.constant 0 : index
    %c0_71 = arith.constant 0 : index
    %c0_72 = arith.constant 0 : index
    %231 = vector.load %arg2[%c0_70, %c0_71, %c0_72] : memref<2x128x384xf32, #tpu.memory_space<vmem>>, vector<1x128x384xf32>
    %232 = vector.shape_cast %231 : vector<1x128x384xf32> to vector<128x384xf32>
    %cst_73 = arith.constant dense<0.000000e+00> : vector<8x384xf32>
    %233 = tpu.matmul %230, %232, %cst_73 {dimension_numbers = #tpu.dot_dimension_numbers<[1], [0], [0], [1], [0, 0, 1, 1], [], []>} : vector<8x128xf32>, vector<128x384xf32>, vector<8x384xf32> -> vector<8x384xf32>
    %234 = vector.extract_strided_slice %223 {offsets = [0, 128], sizes = [8, 128], strides = [1, 1]} : vector<8x256xf32> to vector<8x128xf32>
    %c1_74 = arith.constant 1 : index
    %c0_75 = arith.constant 0 : index
    %c0_76 = arith.constant 0 : index
    %235 = vector.load %arg2[%c1_74, %c0_75, %c0_76] : memref<2x128x384xf32, #tpu.memory_space<vmem>>, vector<1x128x384xf32>
    %236 = vector.shape_cast %235 : vector<1x128x384xf32> to vector<128x384xf32>
    %cst_77 = arith.constant dense<0.000000e+00> : vector<8x384xf32>
    %237 = tpu.matmul %234, %236, %cst_77 {dimension_numbers = #tpu.dot_dimension_numbers<[1], [0], [0], [1], [0, 0, 1, 1], [], []>} : vector<8x128xf32>, vector<128x384xf32>, vector<8x384xf32> -> vector<8x384xf32>
    %238 = vector.extract_strided_slice %228 {offsets = [0, 0], sizes = [8, 128], strides = [1, 1]} : vector<8x384xf32> to vector<8x128xf32>
    %239 = vector.extract_strided_slice %233 {offsets = [0, 0], sizes = [8, 128], strides = [1, 1]} : vector<8x384xf32> to vector<8x128xf32>
    %240 = arith.addf %238, %239 : vector<8x128xf32>
    %241 = arith.negf %240 : vector<8x128xf32>
    %242 = math.exp %241 : vector<8x128xf32>
    %cst_78 = arith.constant 1.000000e+00 : f32
    %243 = vector.broadcast %cst_78 : f32 to vector<8x128xf32>
    %244 = arith.addf %243, %242 : vector<8x128xf32>
    %245 = arith.divf %243, %244 : vector<8x128xf32>
    %246 = vector.extract_strided_slice %228 {offsets = [0, 128], sizes = [8, 128], strides = [1, 1]} : vector<8x384xf32> to vector<8x128xf32>
    %247 = vector.extract_strided_slice %233 {offsets = [0, 128], sizes = [8, 128], strides = [1, 1]} : vector<8x384xf32> to vector<8x128xf32>
    %248 = arith.addf %246, %247 : vector<8x128xf32>
    %249 = arith.negf %248 : vector<8x128xf32>
    %250 = math.exp %249 : vector<8x128xf32>
    %cst_79 = arith.constant 1.000000e+00 : f32
    %251 = vector.broadcast %cst_79 : f32 to vector<8x128xf32>
    %252 = arith.addf %251, %250 : vector<8x128xf32>
    %253 = arith.divf %251, %252 : vector<8x128xf32>
    %254 = vector.extract_strided_slice %228 {offsets = [0, 256], sizes = [8, 128], strides = [1, 1]} : vector<8x384xf32> to vector<8x128xf32>
    %255 = vector.extract_strided_slice %233 {offsets = [0, 256], sizes = [8, 128], strides = [1, 1]} : vector<8x384xf32> to vector<8x128xf32>
    %256 = vector.broadcast %17 : vector<1x128xf32> to vector<8x128xf32>
    %257 = arith.addf %255, %256 : vector<8x128xf32>
    %258 = arith.mulf %245, %257 : vector<8x128xf32>
    %259 = arith.addf %254, %258 : vector<8x128xf32>
    %260 = math.tanh %259 : vector<8x128xf32>
    %261 = vector.extract_strided_slice %229 {offsets = [0, 0], sizes = [8, 128], strides = [1, 1]} : vector<8x384xf32> to vector<8x128xf32>
    %262 = vector.extract_strided_slice %237 {offsets = [0, 0], sizes = [8, 128], strides = [1, 1]} : vector<8x384xf32> to vector<8x128xf32>
    %263 = arith.addf %261, %262 : vector<8x128xf32>
    %264 = arith.negf %263 : vector<8x128xf32>
    %265 = math.exp %264 : vector<8x128xf32>
    %cst_80 = arith.constant 1.000000e+00 : f32
    %266 = vector.broadcast %cst_80 : f32 to vector<8x128xf32>
    %267 = arith.addf %266, %265 : vector<8x128xf32>
    %268 = arith.divf %266, %267 : vector<8x128xf32>
    %269 = vector.extract_strided_slice %229 {offsets = [0, 128], sizes = [8, 128], strides = [1, 1]} : vector<8x384xf32> to vector<8x128xf32>
    %270 = vector.extract_strided_slice %237 {offsets = [0, 128], sizes = [8, 128], strides = [1, 1]} : vector<8x384xf32> to vector<8x128xf32>
    %271 = arith.addf %269, %270 : vector<8x128xf32>
    %272 = arith.negf %271 : vector<8x128xf32>
    %273 = math.exp %272 : vector<8x128xf32>
    %cst_81 = arith.constant 1.000000e+00 : f32
    %274 = vector.broadcast %cst_81 : f32 to vector<8x128xf32>
    %275 = arith.addf %274, %273 : vector<8x128xf32>
    %276 = arith.divf %274, %275 : vector<8x128xf32>
    %277 = vector.extract_strided_slice %229 {offsets = [0, 256], sizes = [8, 128], strides = [1, 1]} : vector<8x384xf32> to vector<8x128xf32>
    %278 = vector.extract_strided_slice %237 {offsets = [0, 256], sizes = [8, 128], strides = [1, 1]} : vector<8x384xf32> to vector<8x128xf32>
    %279 = vector.broadcast %18 : vector<1x128xf32> to vector<8x128xf32>
    %280 = arith.addf %278, %279 : vector<8x128xf32>
    %281 = arith.mulf %268, %280 : vector<8x128xf32>
    %282 = arith.addf %277, %281 : vector<8x128xf32>
    %283 = math.tanh %282 : vector<8x128xf32>
    %284 = vector.extract_strided_slice %223 {offsets = [0, 0], sizes = [8, 128], strides = [1, 1]} : vector<8x256xf32> to vector<8x128xf32>
    %285 = arith.subf %284, %260 : vector<8x128xf32>
    %286 = arith.mulf %253, %285 : vector<8x128xf32>
    %287 = arith.addf %260, %286 : vector<8x128xf32>
    %288 = vector.extract_strided_slice %223 {offsets = [0, 128], sizes = [8, 128], strides = [1, 1]} : vector<8x256xf32> to vector<8x128xf32>
    %289 = arith.subf %288, %283 : vector<8x128xf32>
    %290 = arith.mulf %276, %289 : vector<8x128xf32>
    %291 = arith.addf %283, %290 : vector<8x128xf32>
    %292 = tpu.concatenate %287, %291 in 1 : vector<8x128xf32>, vector<8x128xf32> -> vector<8x256xf32>
    %c3_82 = arith.constant 3 : index
    %c0_83 = arith.constant 0 : index
    %c0_84 = arith.constant 0 : index
    %293 = vector.load %arg3[%c3_82, %c0_83, %c0_84] : memref<8x256x4xf32, #tpu.memory_space<vmem>>, vector<1x256x4xf32>
    %294 = vector.shape_cast %293 : vector<1x256x4xf32> to vector<256x4xf32>
    %cst_85 = arith.constant dense<0.000000e+00> : vector<8x4xf32>
    %295 = tpu.matmul %292, %294, %cst_85 {dimension_numbers = #tpu.dot_dimension_numbers<[1], [0], [0], [1], [0, 0, 1, 1], [], []>} : vector<8x256xf32>, vector<256x4xf32>, vector<8x4xf32> -> vector<8x4xf32>
    %296 = arith.addf %227, %295 : vector<8x4xf32>
    %c32_86 = arith.constant 32 : index
    %c0_87 = arith.constant 0 : index
    %297 = vector.load %arg5[%c32_86, %c0_87] : memref<64x384xf32, #tpu.memory_space<vmem>>, vector<8x384xf32>
    %c24_88 = arith.constant 24 : index
    %c0_89 = arith.constant 0 : index
    %298 = vector.load %arg6[%c24_88, %c0_89] : memref<64x384xf32, #tpu.memory_space<vmem>>, vector<8x384xf32>
    %299 = vector.extract_strided_slice %292 {offsets = [0, 0], sizes = [8, 128], strides = [1, 1]} : vector<8x256xf32> to vector<8x128xf32>
    %c0_90 = arith.constant 0 : index
    %c0_91 = arith.constant 0 : index
    %c0_92 = arith.constant 0 : index
    %300 = vector.load %arg2[%c0_90, %c0_91, %c0_92] : memref<2x128x384xf32, #tpu.memory_space<vmem>>, vector<1x128x384xf32>
    %301 = vector.shape_cast %300 : vector<1x128x384xf32> to vector<128x384xf32>
    %cst_93 = arith.constant dense<0.000000e+00> : vector<8x384xf32>
    %302 = tpu.matmul %299, %301, %cst_93 {dimension_numbers = #tpu.dot_dimension_numbers<[1], [0], [0], [1], [0, 0, 1, 1], [], []>} : vector<8x128xf32>, vector<128x384xf32>, vector<8x384xf32> -> vector<8x384xf32>
    %303 = vector.extract_strided_slice %292 {offsets = [0, 128], sizes = [8, 128], strides = [1, 1]} : vector<8x256xf32> to vector<8x128xf32>
    %c1_94 = arith.constant 1 : index
    %c0_95 = arith.constant 0 : index
    %c0_96 = arith.constant 0 : index
    %304 = vector.load %arg2[%c1_94, %c0_95, %c0_96] : memref<2x128x384xf32, #tpu.memory_space<vmem>>, vector<1x128x384xf32>
    %305 = vector.shape_cast %304 : vector<1x128x384xf32> to vector<128x384xf32>
    %cst_97 = arith.constant dense<0.000000e+00> : vector<8x384xf32>
    %306 = tpu.matmul %303, %305, %cst_97 {dimension_numbers = #tpu.dot_dimension_numbers<[1], [0], [0], [1], [0, 0, 1, 1], [], []>} : vector<8x128xf32>, vector<128x384xf32>, vector<8x384xf32> -> vector<8x384xf32>
    %307 = vector.extract_strided_slice %297 {offsets = [0, 0], sizes = [8, 128], strides = [1, 1]} : vector<8x384xf32> to vector<8x128xf32>
    %308 = vector.extract_strided_slice %302 {offsets = [0, 0], sizes = [8, 128], strides = [1, 1]} : vector<8x384xf32> to vector<8x128xf32>
    %309 = arith.addf %307, %308 : vector<8x128xf32>
    %310 = arith.negf %309 : vector<8x128xf32>
    %311 = math.exp %310 : vector<8x128xf32>
    %cst_98 = arith.constant 1.000000e+00 : f32
    %312 = vector.broadcast %cst_98 : f32 to vector<8x128xf32>
    %313 = arith.addf %312, %311 : vector<8x128xf32>
    %314 = arith.divf %312, %313 : vector<8x128xf32>
    %315 = vector.extract_strided_slice %297 {offsets = [0, 128], sizes = [8, 128], strides = [1, 1]} : vector<8x384xf32> to vector<8x128xf32>
    %316 = vector.extract_strided_slice %302 {offsets = [0, 128], sizes = [8, 128], strides = [1, 1]} : vector<8x384xf32> to vector<8x128xf32>
    %317 = arith.addf %315, %316 : vector<8x128xf32>
    %318 = arith.negf %317 : vector<8x128xf32>
    %319 = math.exp %318 : vector<8x128xf32>
    %cst_99 = arith.constant 1.000000e+00 : f32
    %320 = vector.broadcast %cst_99 : f32 to vector<8x128xf32>
    %321 = arith.addf %320, %319 : vector<8x128xf32>
    %322 = arith.divf %320, %321 : vector<8x128xf32>
    %323 = vector.extract_strided_slice %297 {offsets = [0, 256], sizes = [8, 128], strides = [1, 1]} : vector<8x384xf32> to vector<8x128xf32>
    %324 = vector.extract_strided_slice %302 {offsets = [0, 256], sizes = [8, 128], strides = [1, 1]} : vector<8x384xf32> to vector<8x128xf32>
    %325 = vector.broadcast %17 : vector<1x128xf32> to vector<8x128xf32>
    %326 = arith.addf %324, %325 : vector<8x128xf32>
    %327 = arith.mulf %314, %326 : vector<8x128xf32>
    %328 = arith.addf %323, %327 : vector<8x128xf32>
    %329 = math.tanh %328 : vector<8x128xf32>
    %330 = vector.extract_strided_slice %298 {offsets = [0, 0], sizes = [8, 128], strides = [1, 1]} : vector<8x384xf32> to vector<8x128xf32>
    %331 = vector.extract_strided_slice %306 {offsets = [0, 0], sizes = [8, 128], strides = [1, 1]} : vector<8x384xf32> to vector<8x128xf32>
    %332 = arith.addf %330, %331 : vector<8x128xf32>
    %333 = arith.negf %332 : vector<8x128xf32>
    %334 = math.exp %333 : vector<8x128xf32>
    %cst_100 = arith.constant 1.000000e+00 : f32
    %335 = vector.broadcast %cst_100 : f32 to vector<8x128xf32>
    %336 = arith.addf %335, %334 : vector<8x128xf32>
    %337 = arith.divf %335, %336 : vector<8x128xf32>
    %338 = vector.extract_strided_slice %298 {offsets = [0, 128], sizes = [8, 128], strides = [1, 1]} : vector<8x384xf32> to vector<8x128xf32>
    %339 = vector.extract_strided_slice %306 {offsets = [0, 128], sizes = [8, 128], strides = [1, 1]} : vector<8x384xf32> to vector<8x128xf32>
    %340 = arith.addf %338, %339 : vector<8x128xf32>
    %341 = arith.negf %340 : vector<8x128xf32>
    %342 = math.exp %341 : vector<8x128xf32>
    %cst_101 = arith.constant 1.000000e+00 : f32
    %343 = vector.broadcast %cst_101 : f32 to vector<8x128xf32>
    %344 = arith.addf %343, %342 : vector<8x128xf32>
    %345 = arith.divf %343, %344 : vector<8x128xf32>
    %346 = vector.extract_strided_slice %298 {offsets = [0, 256], sizes = [8, 128], strides = [1, 1]} : vector<8x384xf32> to vector<8x128xf32>
    %347 = vector.extract_strided_slice %306 {offsets = [0, 256], sizes = [8, 128], strides = [1, 1]} : vector<8x384xf32> to vector<8x128xf32>
    %348 = vector.broadcast %18 : vector<1x128xf32> to vector<8x128xf32>
    %349 = arith.addf %347, %348 : vector<8x128xf32>
    %350 = arith.mulf %337, %349 : vector<8x128xf32>
    %351 = arith.addf %346, %350 : vector<8x128xf32>
    %352 = math.tanh %351 : vector<8x128xf32>
    %353 = vector.extract_strided_slice %292 {offsets = [0, 0], sizes = [8, 128], strides = [1, 1]} : vector<8x256xf32> to vector<8x128xf32>
    %354 = arith.subf %353, %329 : vector<8x128xf32>
    %355 = arith.mulf %322, %354 : vector<8x128xf32>
    %356 = arith.addf %329, %355 : vector<8x128xf32>
    %357 = vector.extract_strided_slice %292 {offsets = [0, 128], sizes = [8, 128], strides = [1, 1]} : vector<8x256xf32> to vector<8x128xf32>
    %358 = arith.subf %357, %352 : vector<8x128xf32>
    %359 = arith.mulf %345, %358 : vector<8x128xf32>
    %360 = arith.addf %352, %359 : vector<8x128xf32>
    %361 = tpu.concatenate %356, %360 in 1 : vector<8x128xf32>, vector<8x128xf32> -> vector<8x256xf32>
    %c4_102 = arith.constant 4 : index
    %c0_103 = arith.constant 0 : index
    %c0_104 = arith.constant 0 : index
    %362 = vector.load %arg3[%c4_102, %c0_103, %c0_104] : memref<8x256x4xf32, #tpu.memory_space<vmem>>, vector<1x256x4xf32>
    %363 = vector.shape_cast %362 : vector<1x256x4xf32> to vector<256x4xf32>
    %cst_105 = arith.constant dense<0.000000e+00> : vector<8x4xf32>
    %364 = tpu.matmul %361, %363, %cst_105 {dimension_numbers = #tpu.dot_dimension_numbers<[1], [0], [0], [1], [0, 0, 1, 1], [], []>} : vector<8x256xf32>, vector<256x4xf32>, vector<8x4xf32> -> vector<8x4xf32>
    %365 = arith.addf %296, %364 : vector<8x4xf32>
    %c40_106 = arith.constant 40 : index
    %c0_107 = arith.constant 0 : index
    %366 = vector.load %arg5[%c40_106, %c0_107] : memref<64x384xf32, #tpu.memory_space<vmem>>, vector<8x384xf32>
    %c16_108 = arith.constant 16 : index
    %c0_109 = arith.constant 0 : index
    %367 = vector.load %arg6[%c16_108, %c0_109] : memref<64x384xf32, #tpu.memory_space<vmem>>, vector<8x384xf32>
    %368 = vector.extract_strided_slice %361 {offsets = [0, 0], sizes = [8, 128], strides = [1, 1]} : vector<8x256xf32> to vector<8x128xf32>
    %c0_110 = arith.constant 0 : index
    %c0_111 = arith.constant 0 : index
    %c0_112 = arith.constant 0 : index
    %369 = vector.load %arg2[%c0_110, %c0_111, %c0_112] : memref<2x128x384xf32, #tpu.memory_space<vmem>>, vector<1x128x384xf32>
    %370 = vector.shape_cast %369 : vector<1x128x384xf32> to vector<128x384xf32>
    %cst_113 = arith.constant dense<0.000000e+00> : vector<8x384xf32>
    %371 = tpu.matmul %368, %370, %cst_113 {dimension_numbers = #tpu.dot_dimension_numbers<[1], [0], [0], [1], [0, 0, 1, 1], [], []>} : vector<8x128xf32>, vector<128x384xf32>, vector<8x384xf32> -> vector<8x384xf32>
    %372 = vector.extract_strided_slice %361 {offsets = [0, 128], sizes = [8, 128], strides = [1, 1]} : vector<8x256xf32> to vector<8x128xf32>
    %c1_114 = arith.constant 1 : index
    %c0_115 = arith.constant 0 : index
    %c0_116 = arith.constant 0 : index
    %373 = vector.load %arg2[%c1_114, %c0_115, %c0_116] : memref<2x128x384xf32, #tpu.memory_space<vmem>>, vector<1x128x384xf32>
    %374 = vector.shape_cast %373 : vector<1x128x384xf32> to vector<128x384xf32>
    %cst_117 = arith.constant dense<0.000000e+00> : vector<8x384xf32>
    %375 = tpu.matmul %372, %374, %cst_117 {dimension_numbers = #tpu.dot_dimension_numbers<[1], [0], [0], [1], [0, 0, 1, 1], [], []>} : vector<8x128xf32>, vector<128x384xf32>, vector<8x384xf32> -> vector<8x384xf32>
    %376 = vector.extract_strided_slice %366 {offsets = [0, 0], sizes = [8, 128], strides = [1, 1]} : vector<8x384xf32> to vector<8x128xf32>
    %377 = vector.extract_strided_slice %371 {offsets = [0, 0], sizes = [8, 128], strides = [1, 1]} : vector<8x384xf32> to vector<8x128xf32>
    %378 = arith.addf %376, %377 : vector<8x128xf32>
    %379 = arith.negf %378 : vector<8x128xf32>
    %380 = math.exp %379 : vector<8x128xf32>
    %cst_118 = arith.constant 1.000000e+00 : f32
    %381 = vector.broadcast %cst_118 : f32 to vector<8x128xf32>
    %382 = arith.addf %381, %380 : vector<8x128xf32>
    %383 = arith.divf %381, %382 : vector<8x128xf32>
    %384 = vector.extract_strided_slice %366 {offsets = [0, 128], sizes = [8, 128], strides = [1, 1]} : vector<8x384xf32> to vector<8x128xf32>
    %385 = vector.extract_strided_slice %371 {offsets = [0, 128], sizes = [8, 128], strides = [1, 1]} : vector<8x384xf32> to vector<8x128xf32>
    %386 = arith.addf %384, %385 : vector<8x128xf32>
    %387 = arith.negf %386 : vector<8x128xf32>
    %388 = math.exp %387 : vector<8x128xf32>
    %cst_119 = arith.constant 1.000000e+00 : f32
    %389 = vector.broadcast %cst_119 : f32 to vector<8x128xf32>
    %390 = arith.addf %389, %388 : vector<8x128xf32>
    %391 = arith.divf %389, %390 : vector<8x128xf32>
    %392 = vector.extract_strided_slice %366 {offsets = [0, 256], sizes = [8, 128], strides = [1, 1]} : vector<8x384xf32> to vector<8x128xf32>
    %393 = vector.extract_strided_slice %371 {offsets = [0, 256], sizes = [8, 128], strides = [1, 1]} : vector<8x384xf32> to vector<8x128xf32>
    %394 = vector.broadcast %17 : vector<1x128xf32> to vector<8x128xf32>
    %395 = arith.addf %393, %394 : vector<8x128xf32>
    %396 = arith.mulf %383, %395 : vector<8x128xf32>
    %397 = arith.addf %392, %396 : vector<8x128xf32>
    %398 = math.tanh %397 : vector<8x128xf32>
    %399 = vector.extract_strided_slice %367 {offsets = [0, 0], sizes = [8, 128], strides = [1, 1]} : vector<8x384xf32> to vector<8x128xf32>
    %400 = vector.extract_strided_slice %375 {offsets = [0, 0], sizes = [8, 128], strides = [1, 1]} : vector<8x384xf32> to vector<8x128xf32>
    %401 = arith.addf %399, %400 : vector<8x128xf32>
    %402 = arith.negf %401 : vector<8x128xf32>
    %403 = math.exp %402 : vector<8x128xf32>
    %cst_120 = arith.constant 1.000000e+00 : f32
    %404 = vector.broadcast %cst_120 : f32 to vector<8x128xf32>
    %405 = arith.addf %404, %403 : vector<8x128xf32>
    %406 = arith.divf %404, %405 : vector<8x128xf32>
    %407 = vector.extract_strided_slice %367 {offsets = [0, 128], sizes = [8, 128], strides = [1, 1]} : vector<8x384xf32> to vector<8x128xf32>
    %408 = vector.extract_strided_slice %375 {offsets = [0, 128], sizes = [8, 128], strides = [1, 1]} : vector<8x384xf32> to vector<8x128xf32>
    %409 = arith.addf %407, %408 : vector<8x128xf32>
    %410 = arith.negf %409 : vector<8x128xf32>
    %411 = math.exp %410 : vector<8x128xf32>
    %cst_121 = arith.constant 1.000000e+00 : f32
    %412 = vector.broadcast %cst_121 : f32 to vector<8x128xf32>
    %413 = arith.addf %412, %411 : vector<8x128xf32>
    %414 = arith.divf %412, %413 : vector<8x128xf32>
    %415 = vector.extract_strided_slice %367 {offsets = [0, 256], sizes = [8, 128], strides = [1, 1]} : vector<8x384xf32> to vector<8x128xf32>
    %416 = vector.extract_strided_slice %375 {offsets = [0, 256], sizes = [8, 128], strides = [1, 1]} : vector<8x384xf32> to vector<8x128xf32>
    %417 = vector.broadcast %18 : vector<1x128xf32> to vector<8x128xf32>
    %418 = arith.addf %416, %417 : vector<8x128xf32>
    %419 = arith.mulf %406, %418 : vector<8x128xf32>
    %420 = arith.addf %415, %419 : vector<8x128xf32>
    %421 = math.tanh %420 : vector<8x128xf32>
    %422 = vector.extract_strided_slice %361 {offsets = [0, 0], sizes = [8, 128], strides = [1, 1]} : vector<8x256xf32> to vector<8x128xf32>
    %423 = arith.subf %422, %398 : vector<8x128xf32>
    %424 = arith.mulf %391, %423 : vector<8x128xf32>
    %425 = arith.addf %398, %424 : vector<8x128xf32>
    %426 = vector.extract_strided_slice %361 {offsets = [0, 128], sizes = [8, 128], strides = [1, 1]} : vector<8x256xf32> to vector<8x128xf32>
    %427 = arith.subf %426, %421 : vector<8x128xf32>
    %428 = arith.mulf %414, %427 : vector<8x128xf32>
    %429 = arith.addf %421, %428 : vector<8x128xf32>
    %430 = tpu.concatenate %425, %429 in 1 : vector<8x128xf32>, vector<8x128xf32> -> vector<8x256xf32>
    %c5_122 = arith.constant 5 : index
    %c0_123 = arith.constant 0 : index
    %c0_124 = arith.constant 0 : index
    %431 = vector.load %arg3[%c5_122, %c0_123, %c0_124] : memref<8x256x4xf32, #tpu.memory_space<vmem>>, vector<1x256x4xf32>
    %432 = vector.shape_cast %431 : vector<1x256x4xf32> to vector<256x4xf32>
    %cst_125 = arith.constant dense<0.000000e+00> : vector<8x4xf32>
    %433 = tpu.matmul %430, %432, %cst_125 {dimension_numbers = #tpu.dot_dimension_numbers<[1], [0], [0], [1], [0, 0, 1, 1], [], []>} : vector<8x256xf32>, vector<256x4xf32>, vector<8x4xf32> -> vector<8x4xf32>
    %434 = arith.addf %365, %433 : vector<8x4xf32>
    %c48_126 = arith.constant 48 : index
    %c0_127 = arith.constant 0 : index
    %435 = vector.load %arg5[%c48_126, %c0_127] : memref<64x384xf32, #tpu.memory_space<vmem>>, vector<8x384xf32>
    %c8_128 = arith.constant 8 : index
    %c0_129 = arith.constant 0 : index
    %436 = vector.load %arg6[%c8_128, %c0_129] : memref<64x384xf32, #tpu.memory_space<vmem>>, vector<8x384xf32>
    %437 = vector.extract_strided_slice %430 {offsets = [0, 0], sizes = [8, 128], strides = [1, 1]} : vector<8x256xf32> to vector<8x128xf32>
    %c0_130 = arith.constant 0 : index
    %c0_131 = arith.constant 0 : index
    %c0_132 = arith.constant 0 : index
    %438 = vector.load %arg2[%c0_130, %c0_131, %c0_132] : memref<2x128x384xf32, #tpu.memory_space<vmem>>, vector<1x128x384xf32>
    %439 = vector.shape_cast %438 : vector<1x128x384xf32> to vector<128x384xf32>
    %cst_133 = arith.constant dense<0.000000e+00> : vector<8x384xf32>
    %440 = tpu.matmul %437, %439, %cst_133 {dimension_numbers = #tpu.dot_dimension_numbers<[1], [0], [0], [1], [0, 0, 1, 1], [], []>} : vector<8x128xf32>, vector<128x384xf32>, vector<8x384xf32> -> vector<8x384xf32>
    %441 = vector.extract_strided_slice %430 {offsets = [0, 128], sizes = [8, 128], strides = [1, 1]} : vector<8x256xf32> to vector<8x128xf32>
    %c1_134 = arith.constant 1 : index
    %c0_135 = arith.constant 0 : index
    %c0_136 = arith.constant 0 : index
    %442 = vector.load %arg2[%c1_134, %c0_135, %c0_136] : memref<2x128x384xf32, #tpu.memory_space<vmem>>, vector<1x128x384xf32>
    %443 = vector.shape_cast %442 : vector<1x128x384xf32> to vector<128x384xf32>
    %cst_137 = arith.constant dense<0.000000e+00> : vector<8x384xf32>
    %444 = tpu.matmul %441, %443, %cst_137 {dimension_numbers = #tpu.dot_dimension_numbers<[1], [0], [0], [1], [0, 0, 1, 1], [], []>} : vector<8x128xf32>, vector<128x384xf32>, vector<8x384xf32> -> vector<8x384xf32>
    %445 = vector.extract_strided_slice %435 {offsets = [0, 0], sizes = [8, 128], strides = [1, 1]} : vector<8x384xf32> to vector<8x128xf32>
    %446 = vector.extract_strided_slice %440 {offsets = [0, 0], sizes = [8, 128], strides = [1, 1]} : vector<8x384xf32> to vector<8x128xf32>
    %447 = arith.addf %445, %446 : vector<8x128xf32>
    %448 = arith.negf %447 : vector<8x128xf32>
    %449 = math.exp %448 : vector<8x128xf32>
    %cst_138 = arith.constant 1.000000e+00 : f32
    %450 = vector.broadcast %cst_138 : f32 to vector<8x128xf32>
    %451 = arith.addf %450, %449 : vector<8x128xf32>
    %452 = arith.divf %450, %451 : vector<8x128xf32>
    %453 = vector.extract_strided_slice %435 {offsets = [0, 128], sizes = [8, 128], strides = [1, 1]} : vector<8x384xf32> to vector<8x128xf32>
    %454 = vector.extract_strided_slice %440 {offsets = [0, 128], sizes = [8, 128], strides = [1, 1]} : vector<8x384xf32> to vector<8x128xf32>
    %455 = arith.addf %453, %454 : vector<8x128xf32>
    %456 = arith.negf %455 : vector<8x128xf32>
    %457 = math.exp %456 : vector<8x128xf32>
    %cst_139 = arith.constant 1.000000e+00 : f32
    %458 = vector.broadcast %cst_139 : f32 to vector<8x128xf32>
    %459 = arith.addf %458, %457 : vector<8x128xf32>
    %460 = arith.divf %458, %459 : vector<8x128xf32>
    %461 = vector.extract_strided_slice %435 {offsets = [0, 256], sizes = [8, 128], strides = [1, 1]} : vector<8x384xf32> to vector<8x128xf32>
    %462 = vector.extract_strided_slice %440 {offsets = [0, 256], sizes = [8, 128], strides = [1, 1]} : vector<8x384xf32> to vector<8x128xf32>
    %463 = vector.broadcast %17 : vector<1x128xf32> to vector<8x128xf32>
    %464 = arith.addf %462, %463 : vector<8x128xf32>
    %465 = arith.mulf %452, %464 : vector<8x128xf32>
    %466 = arith.addf %461, %465 : vector<8x128xf32>
    %467 = math.tanh %466 : vector<8x128xf32>
    %468 = vector.extract_strided_slice %436 {offsets = [0, 0], sizes = [8, 128], strides = [1, 1]} : vector<8x384xf32> to vector<8x128xf32>
    %469 = vector.extract_strided_slice %444 {offsets = [0, 0], sizes = [8, 128], strides = [1, 1]} : vector<8x384xf32> to vector<8x128xf32>
    %470 = arith.addf %468, %469 : vector<8x128xf32>
    %471 = arith.negf %470 : vector<8x128xf32>
    %472 = math.exp %471 : vector<8x128xf32>
    %cst_140 = arith.constant 1.000000e+00 : f32
    %473 = vector.broadcast %cst_140 : f32 to vector<8x128xf32>
    %474 = arith.addf %473, %472 : vector<8x128xf32>
    %475 = arith.divf %473, %474 : vector<8x128xf32>
    %476 = vector.extract_strided_slice %436 {offsets = [0, 128], sizes = [8, 128], strides = [1, 1]} : vector<8x384xf32> to vector<8x128xf32>
    %477 = vector.extract_strided_slice %444 {offsets = [0, 128], sizes = [8, 128], strides = [1, 1]} : vector<8x384xf32> to vector<8x128xf32>
    %478 = arith.addf %476, %477 : vector<8x128xf32>
    %479 = arith.negf %478 : vector<8x128xf32>
    %480 = math.exp %479 : vector<8x128xf32>
    %cst_141 = arith.constant 1.000000e+00 : f32
    %481 = vector.broadcast %cst_141 : f32 to vector<8x128xf32>
    %482 = arith.addf %481, %480 : vector<8x128xf32>
    %483 = arith.divf %481, %482 : vector<8x128xf32>
    %484 = vector.extract_strided_slice %436 {offsets = [0, 256], sizes = [8, 128], strides = [1, 1]} : vector<8x384xf32> to vector<8x128xf32>
    %485 = vector.extract_strided_slice %444 {offsets = [0, 256], sizes = [8, 128], strides = [1, 1]} : vector<8x384xf32> to vector<8x128xf32>
    %486 = vector.broadcast %18 : vector<1x128xf32> to vector<8x128xf32>
    %487 = arith.addf %485, %486 : vector<8x128xf32>
    %488 = arith.mulf %475, %487 : vector<8x128xf32>
    %489 = arith.addf %484, %488 : vector<8x128xf32>
    %490 = math.tanh %489 : vector<8x128xf32>
    %491 = vector.extract_strided_slice %430 {offsets = [0, 0], sizes = [8, 128], strides = [1, 1]} : vector<8x256xf32> to vector<8x128xf32>
    %492 = arith.subf %491, %467 : vector<8x128xf32>
    %493 = arith.mulf %460, %492 : vector<8x128xf32>
    %494 = arith.addf %467, %493 : vector<8x128xf32>
    %495 = vector.extract_strided_slice %430 {offsets = [0, 128], sizes = [8, 128], strides = [1, 1]} : vector<8x256xf32> to vector<8x128xf32>
    %496 = arith.subf %495, %490 : vector<8x128xf32>
    %497 = arith.mulf %483, %496 : vector<8x128xf32>
    %498 = arith.addf %490, %497 : vector<8x128xf32>
    %499 = tpu.concatenate %494, %498 in 1 : vector<8x128xf32>, vector<8x128xf32> -> vector<8x256xf32>
    %c6 = arith.constant 6 : index
    %c0_142 = arith.constant 0 : index
    %c0_143 = arith.constant 0 : index
    %500 = vector.load %arg3[%c6, %c0_142, %c0_143] : memref<8x256x4xf32, #tpu.memory_space<vmem>>, vector<1x256x4xf32>
    %501 = vector.shape_cast %500 : vector<1x256x4xf32> to vector<256x4xf32>
    %cst_144 = arith.constant dense<0.000000e+00> : vector<8x4xf32>
    %502 = tpu.matmul %499, %501, %cst_144 {dimension_numbers = #tpu.dot_dimension_numbers<[1], [0], [0], [1], [0, 0, 1, 1], [], []>} : vector<8x256xf32>, vector<256x4xf32>, vector<8x4xf32> -> vector<8x4xf32>
    %503 = arith.addf %434, %502 : vector<8x4xf32>
    %c56_145 = arith.constant 56 : index
    %c0_146 = arith.constant 0 : index
    %504 = vector.load %arg5[%c56_145, %c0_146] : memref<64x384xf32, #tpu.memory_space<vmem>>, vector<8x384xf32>
    %c0_147 = arith.constant 0 : index
    %c0_148 = arith.constant 0 : index
    %505 = vector.load %arg6[%c0_147, %c0_148] : memref<64x384xf32, #tpu.memory_space<vmem>>, vector<8x384xf32>
    %506 = vector.extract_strided_slice %499 {offsets = [0, 0], sizes = [8, 128], strides = [1, 1]} : vector<8x256xf32> to vector<8x128xf32>
    %c0_149 = arith.constant 0 : index
    %c0_150 = arith.constant 0 : index
    %c0_151 = arith.constant 0 : index
    %507 = vector.load %arg2[%c0_149, %c0_150, %c0_151] : memref<2x128x384xf32, #tpu.memory_space<vmem>>, vector<1x128x384xf32>
    %508 = vector.shape_cast %507 : vector<1x128x384xf32> to vector<128x384xf32>
    %cst_152 = arith.constant dense<0.000000e+00> : vector<8x384xf32>
    %509 = tpu.matmul %506, %508, %cst_152 {dimension_numbers = #tpu.dot_dimension_numbers<[1], [0], [0], [1], [0, 0, 1, 1], [], []>} : vector<8x128xf32>, vector<128x384xf32>, vector<8x384xf32> -> vector<8x384xf32>
    %510 = vector.extract_strided_slice %499 {offsets = [0, 128], sizes = [8, 128], strides = [1, 1]} : vector<8x256xf32> to vector<8x128xf32>
    %c1_153 = arith.constant 1 : index
    %c0_154 = arith.constant 0 : index
    %c0_155 = arith.constant 0 : index
    %511 = vector.load %arg2[%c1_153, %c0_154, %c0_155] : memref<2x128x384xf32, #tpu.memory_space<vmem>>, vector<1x128x384xf32>
    %512 = vector.shape_cast %511 : vector<1x128x384xf32> to vector<128x384xf32>
    %cst_156 = arith.constant dense<0.000000e+00> : vector<8x384xf32>
    %513 = tpu.matmul %510, %512, %cst_156 {dimension_numbers = #tpu.dot_dimension_numbers<[1], [0], [0], [1], [0, 0, 1, 1], [], []>} : vector<8x128xf32>, vector<128x384xf32>, vector<8x384xf32> -> vector<8x384xf32>
    %514 = vector.extract_strided_slice %504 {offsets = [0, 0], sizes = [8, 128], strides = [1, 1]} : vector<8x384xf32> to vector<8x128xf32>
    %515 = vector.extract_strided_slice %509 {offsets = [0, 0], sizes = [8, 128], strides = [1, 1]} : vector<8x384xf32> to vector<8x128xf32>
    %516 = arith.addf %514, %515 : vector<8x128xf32>
    %517 = arith.negf %516 : vector<8x128xf32>
    %518 = math.exp %517 : vector<8x128xf32>
    %cst_157 = arith.constant 1.000000e+00 : f32
    %519 = vector.broadcast %cst_157 : f32 to vector<8x128xf32>
    %520 = arith.addf %519, %518 : vector<8x128xf32>
    %521 = arith.divf %519, %520 : vector<8x128xf32>
    %522 = vector.extract_strided_slice %504 {offsets = [0, 128], sizes = [8, 128], strides = [1, 1]} : vector<8x384xf32> to vector<8x128xf32>
    %523 = vector.extract_strided_slice %509 {offsets = [0, 128], sizes = [8, 128], strides = [1, 1]} : vector<8x384xf32> to vector<8x128xf32>
    %524 = arith.addf %522, %523 : vector<8x128xf32>
    %525 = arith.negf %524 : vector<8x128xf32>
    %526 = math.exp %525 : vector<8x128xf32>
    %cst_158 = arith.constant 1.000000e+00 : f32
    %527 = vector.broadcast %cst_158 : f32 to vector<8x128xf32>
    %528 = arith.addf %527, %526 : vector<8x128xf32>
    %529 = arith.divf %527, %528 : vector<8x128xf32>
    %530 = vector.extract_strided_slice %504 {offsets = [0, 256], sizes = [8, 128], strides = [1, 1]} : vector<8x384xf32> to vector<8x128xf32>
    %531 = vector.extract_strided_slice %509 {offsets = [0, 256], sizes = [8, 128], strides = [1, 1]} : vector<8x384xf32> to vector<8x128xf32>
    %532 = vector.broadcast %17 : vector<1x128xf32> to vector<8x128xf32>
    %533 = arith.addf %531, %532 : vector<8x128xf32>
    %534 = arith.mulf %521, %533 : vector<8x128xf32>
    %535 = arith.addf %530, %534 : vector<8x128xf32>
    %536 = math.tanh %535 : vector<8x128xf32>
    %537 = vector.extract_strided_slice %505 {offsets = [0, 0], sizes = [8, 128], strides = [1, 1]} : vector<8x384xf32> to vector<8x128xf32>
    %538 = vector.extract_strided_slice %513 {offsets = [0, 0], sizes = [8, 128], strides = [1, 1]} : vector<8x384xf32> to vector<8x128xf32>
    %539 = arith.addf %537, %538 : vector<8x128xf32>
    %540 = arith.negf %539 : vector<8x128xf32>
    %541 = math.exp %540 : vector<8x128xf32>
    %cst_159 = arith.constant 1.000000e+00 : f32
    %542 = vector.broadcast %cst_159 : f32 to vector<8x128xf32>
    %543 = arith.addf %542, %541 : vector<8x128xf32>
    %544 = arith.divf %542, %543 : vector<8x128xf32>
    %545 = vector.extract_strided_slice %505 {offsets = [0, 128], sizes = [8, 128], strides = [1, 1]} : vector<8x384xf32> to vector<8x128xf32>
    %546 = vector.extract_strided_slice %513 {offsets = [0, 128], sizes = [8, 128], strides = [1, 1]} : vector<8x384xf32> to vector<8x128xf32>
    %547 = arith.addf %545, %546 : vector<8x128xf32>
    %548 = arith.negf %547 : vector<8x128xf32>
    %549 = math.exp %548 : vector<8x128xf32>
    %cst_160 = arith.constant 1.000000e+00 : f32
    %550 = vector.broadcast %cst_160 : f32 to vector<8x128xf32>
    %551 = arith.addf %550, %549 : vector<8x128xf32>
    %552 = arith.divf %550, %551 : vector<8x128xf32>
    %553 = vector.extract_strided_slice %505 {offsets = [0, 256], sizes = [8, 128], strides = [1, 1]} : vector<8x384xf32> to vector<8x128xf32>
    %554 = vector.extract_strided_slice %513 {offsets = [0, 256], sizes = [8, 128], strides = [1, 1]} : vector<8x384xf32> to vector<8x128xf32>
    %555 = vector.broadcast %18 : vector<1x128xf32> to vector<8x128xf32>
    %556 = arith.addf %554, %555 : vector<8x128xf32>
    %557 = arith.mulf %544, %556 : vector<8x128xf32>
    %558 = arith.addf %553, %557 : vector<8x128xf32>
    %559 = math.tanh %558 : vector<8x128xf32>
    %560 = vector.extract_strided_slice %499 {offsets = [0, 0], sizes = [8, 128], strides = [1, 1]} : vector<8x256xf32> to vector<8x128xf32>
    %561 = arith.subf %560, %536 : vector<8x128xf32>
    %562 = arith.mulf %529, %561 : vector<8x128xf32>
    %563 = arith.addf %536, %562 : vector<8x128xf32>
    %564 = vector.extract_strided_slice %499 {offsets = [0, 128], sizes = [8, 128], strides = [1, 1]} : vector<8x256xf32> to vector<8x128xf32>
    %565 = arith.subf %564, %559 : vector<8x128xf32>
    %566 = arith.mulf %552, %565 : vector<8x128xf32>
    %567 = arith.addf %559, %566 : vector<8x128xf32>
    %568 = tpu.concatenate %563, %567 in 1 : vector<8x128xf32>, vector<8x128xf32> -> vector<8x256xf32>
    %c7 = arith.constant 7 : index
    %c0_161 = arith.constant 0 : index
    %c0_162 = arith.constant 0 : index
    %569 = vector.load %arg3[%c7, %c0_161, %c0_162] : memref<8x256x4xf32, #tpu.memory_space<vmem>>, vector<1x256x4xf32>
    %570 = vector.shape_cast %569 : vector<1x256x4xf32> to vector<256x4xf32>
    %cst_163 = arith.constant dense<0.000000e+00> : vector<8x4xf32>
    %571 = tpu.matmul %568, %570, %cst_163 {dimension_numbers = #tpu.dot_dimension_numbers<[1], [0], [0], [1], [0, 0, 1, 1], [], []>} : vector<8x256xf32>, vector<256x4xf32>, vector<8x4xf32> -> vector<8x4xf32>
    %572 = arith.addf %503, %571 : vector<8x4xf32>
    %c6_164 = arith.constant 6 : index
    %c0_165 = arith.constant 0 : index
    %573 = vector.load %arg1[%c6_164, %c0_165] : memref<8x384xf32, #tpu.memory_space<vmem>>, vector<1x4xf32>
    %574 = vector.broadcast %573 : vector<1x4xf32> to vector<8x4xf32>
    %575 = arith.addf %572, %574 : vector<8x4xf32>
    %c0_166 = arith.constant 0 : index
    %c0_167 = arith.constant 0 : index
    %576 = vector.load %arg4[%c0_166, %c0_167] : memref<8x4xf32, #tpu.memory_space<vmem>>, vector<8x4xf32>
    tpu.vector_store %arg4[%c0_166, %c0_167], %575 {strides = array<i32>} : memref<8x4xf32, #tpu.memory_space<vmem>>, vector<8x4xf32>,
    return
  }
}

</mosaic_0001>

<llo_original>
// kernel: tpu_custom_call.1
$region0: #{tpu_custom_call.1}
  #allocation0 [shape = 'u32[]', space=smem, size = 0x4, offset = 0x4, fixed_abs, tag = 'smem constant byte address 0x4 - core index']
  #allocation1 [shape = 'u32[144,128]{1,0:T(1,128)}', space=vmem, size = 0x12000, scoped, tag = 'internal scratch']
  #allocation2 [shape = 'f32[64,384]{1,0:T(8,128)}', space=vmem, size = 0x18000, scoped, tag = 'scratch operand']
  #allocation3 [shape = 'f32[64,384]{1,0:T(8,128)}', space=vmem, size = 0x18000, scoped, tag = 'scratch operand']
  %s0 = inlined_call_operand.vmem [shape: f32[64,1], index: 0, kind: input, shape index: {}]
  %s1 = inlined_call_operand.vmem [shape: f32[8,384], index: 1, kind: input, shape index: {}]
  %s2 = inlined_call_operand.vmem [shape: f32[2,128,384], index: 2, kind: input, shape index: {}]
  %s3 = inlined_call_operand.vmem [shape: f32[8,256,4], index: 3, kind: input, shape index: {}]
  %s4 = inlined_call_operand.vmem [shape: f32[8,4], index: 4, kind: output, shape index: {}]
  %s5 = sld [smem:[#allocation0]]
  $region26: #{tpu_custom_call.1} parent=0
    _
  %s7 = ssub.s32 1, %s5
  %s8 = scalar_select 0, %s7, %s5
  // Predicated region
  $region2: #{tpu_custom_call.1} parent=0 // pred_check
    _
  $region3: #{tpu_custom_call.1} parent=0 // pred_check_branch
    %10 = sbr.rel (0) target = $region5
  $region4: #{tpu_custom_call.1} parent=0 // pred_region
    _
  $region5: #{tpu_custom_call.1} parent=0 // pred_fallthru
    _
  // Predicated region
  $region6: #{tpu_custom_call.1} parent=0 // pred_check
    _
  $region7: #{tpu_custom_call.1} parent=0 // pred_check_branch
    %12 = sbr.rel (0) target = $region9
  $region8: #{tpu_custom_call.1} parent=0 // pred_region
    _
  $region9: #{tpu_custom_call.1} parent=0 // pred_fallthru
    _
  // Predicated region
  $region10: #{tpu_custom_call.1} parent=0 // pred_check
    _
  $region11: #{tpu_custom_call.1} parent=0 // pred_check_branch
    %14 = sbr.rel (0) target = $region13
  $region12: #{tpu_custom_call.1} parent=0 // pred_region
    _
  $region13: #{tpu_custom_call.1} parent=0 // pred_fallthru
    _
  // Predicated region
  $region14: #{tpu_custom_call.1} parent=0 // pred_check
    _
  $region15: #{tpu_custom_call.1} parent=0 // pred_check_branch
    %16 = sbr.rel (0) target = $region17
  $region16: #{tpu_custom_call.1} parent=0 // pred_region
    _
  $region17: #{tpu_custom_call.1} parent=0 // pred_fallthru
    _
  %v17 = vld [vmem:[%s0] sm:$0xff]
  %v18 = vld [vmem:[%s0 + $0x8] sm:$0xff]
  %v19 = vld [vmem:[%s0 + $0x10] sm:$0xff]
  %v20 = vld [vmem:[%s0 + $0x18] sm:$0xff]
  %v21 = vld [vmem:[%s0 + $0x20] sm:$0xff]
  %v22 = vld [vmem:[%s0 + $0x28] sm:$0xff]
  %v23 = vld [vmem:[%s0 + $0x30] sm:$0xff]
  %v24 = vld [vmem:[%s0 + $0x38] sm:$0xff]
  %v25 = vld [vmem:[%s1] ss:$8 sm:$0x7]
  %27 = vset.pattern.permute.xlu0 0
  %28 = vperm.xlu0 %27, %v17
  %v29 = vpop.permute.xlu0 %28
  %32 = vset.pattern.permute.xlu0 0
  %33 = vperm.xlu0 %32, %v18
  %v34 = vpop.permute.xlu0 %33
  %37 = vset.pattern.permute.xlu0 0
  %38 = vperm.xlu0 %37, %v19
  %v39 = vpop.permute.xlu0 %38
  %42 = vset.pattern.permute.xlu0 0
  %43 = vperm.xlu0 %42, %v20
  %v44 = vpop.permute.xlu0 %43
  %47 = vset.pattern.permute.xlu0 0
  %48 = vperm.xlu0 %47, %v21
  %v49 = vpop.permute.xlu0 %48
  %52 = vset.pattern.permute.xlu0 0
  %53 = vperm.xlu0 %52, %v22
  %v54 = vpop.permute.xlu0 %53
  %57 = vset.pattern.permute.xlu0 0
  %58 = vperm.xlu0 %57, %v23
  %v59 = vpop.permute.xlu0 %58
  %62 = vset.pattern.permute.xlu0 0
  %63 = vperm.xlu0 %62, %v24
  %v64 = vpop.permute.xlu0 %63
  %v67 = vlaneseq
  %v68 = vshrl.u32 %v67, 7
  %v69 = vsub.s32 0, %v68
  %v70 = vrot.slane %v25, %v69
  %v71 = vlaneseq
  %v72 = vshrl.u32 %v71, 7
  %v73 = vsub.s32 1, %v72
  %v74 = vrot.slane %v25, %v73
  %v75 = vlaneseq
  %v76 = vshrl.u32 %v75, 7
  %v77 = vsub.s32 2, %v76
  %v78 = vrot.slane %v25, %v77
  %v82 = vmul.f32 %v29, %v70
  %v83 = vmul.f32 %v29, %v74
  %v84 = vmul.f32 %v29, %v78
  %v85 = vmul.f32 %v34, %v70
  %v86 = vmul.f32 %v34, %v74
  %v87 = vmul.f32 %v34, %v78
  %v88 = vmul.f32 %v39, %v70
  %v89 = vmul.f32 %v39, %v74
  %v90 = vmul.f32 %v39, %v78
  %v91 = vmul.f32 %v44, %v70
  %v92 = vmul.f32 %v44, %v74
  %v93 = vmul.f32 %v44, %v78
  %v94 = vmul.f32 %v49, %v70
  %v95 = vmul.f32 %v49, %v74
  %v96 = vmul.f32 %v49, %v78
  %v97 = vmul.f32 %v54, %v70
  %v98 = vmul.f32 %v54, %v74
  %v99 = vmul.f32 %v54, %v78
  %v100 = vmul.f32 %v59, %v70
  %v101 = vmul.f32 %v59, %v74
  %v102 = vmul.f32 %v59, %v78
  %v103 = vmul.f32 %v64, %v70
  %v104 = vmul.f32 %v64, %v74
  %v105 = vmul.f32 %v64, %v78
  %s106 = scalar_lea.vmem %s1, 1
  %v107 = vld [vmem:[%s106] ss:$8 sm:$0x7]
  %v109 = vlaneseq
  %v110 = vshrl.u32 %v109, 7
  %v111 = vsub.s32 0, %v110
  %v112 = vrot.slane %v107, %v111
  %v113 = vlaneseq
  %v114 = vshrl.u32 %v113, 7
  %v115 = vsub.s32 1, %v114
  %v116 = vrot.slane %v107, %v115
  %v117 = vlaneseq
  %v118 = vshrl.u32 %v117, 7
  %v119 = vsub.s32 2, %v118
  %v120 = vrot.slane %v107, %v119
  %v124 = vadd.f32 %v82, %v112
  %v125 = vadd.f32 %v83, %v116
  %v126 = vadd.f32 %v84, %v120
  %v127 = vadd.f32 %v85, %v112
  %v128 = vadd.f32 %v86, %v116
  %v129 = vadd.f32 %v87, %v120
  %v130 = vadd.f32 %v88, %v112
  %v131 = vadd.f32 %v89, %v116
  %v132 = vadd.f32 %v90, %v120
  %v133 = vadd.f32 %v91, %v112
  %v134 = vadd.f32 %v92, %v116
  %v135 = vadd.f32 %v93, %v120
  %v136 = vadd.f32 %v94, %v112
  %v137 = vadd.f32 %v95, %v116
  %v138 = vadd.f32 %v96, %v120
  %v139 = vadd.f32 %v97, %v112
  %v140 = vadd.f32 %v98, %v116
  %v141 = vadd.f32 %v99, %v120
  %v142 = vadd.f32 %v100, %v112
  %v143 = vadd.f32 %v101, %v116
  %v144 = vadd.f32 %v102, %v120
  %v145 = vadd.f32 %v103, %v112
  %v146 = vadd.f32 %v104, %v116
  %v147 = vadd.f32 %v105, %v120
  %148 = vst [vmem:[#allocation2] sm:$0xff] %v124
  %149 = vst [vmem:[#allocation2 + $0x8] sm:$0xff] %v125
  %150 = vst [vmem:[#allocation2 + $0x10] sm:$0xff] %v126
  %151 = vst [vmem:[#allocation2 + $0x18] sm:$0xff] %v127
  %152 = vst [vmem:[#allocation2 + $0x20] sm:$0xff] %v128
  %153 = vst [vmem:[#allocation2 + $0x28] sm:$0xff] %v129
  %154 = vst [vmem:[#allocation2 + $0x30] sm:$0xff] %v130
  %155 = vst [vmem:[#allocation2 + $0x38] sm:$0xff] %v131
  %156 = vst [vmem:[#allocation2 + $0x40] sm:$0xff] %v132
  %157 = vst [vmem:[#allocation2 + $0x48] sm:$0xff] %v133
  %158 = vst [vmem:[#allocation2 + $0x50] sm:$0xff] %v134
  %159 = vst [vmem:[#allocation2 + $0x58] sm:$0xff] %v135
  %160 = vst [vmem:[#allocation2 + $0x60] sm:$0xff] %v136
  %161 = vst [vmem:[#allocation2 + $0x68] sm:$0xff] %v137
  %162 = vst [vmem:[#allocation2 + $0x70] sm:$0xff] %v138
  %163 = vst [vmem:[#allocation2 + $0x78] sm:$0xff] %v139
  %164 = vst [vmem:[#allocation2 + $0x80] sm:$0xff] %v140
  %165 = vst [vmem:[#allocation2 + $0x88] sm:$0xff] %v141
  %166 = vst [vmem:[#allocation2 + $0x90] sm:$0xff] %v142
  %167 = vst [vmem:[#allocation2 + $0x98] sm:$0xff] %v143
  %168 = vst [vmem:[#allocation2 + $0xa0] sm:$0xff] %v144
  %169 = vst [vmem:[#allocation2 + $0xa8] sm:$0xff] %v145
  %170 = vst [vmem:[#allocation2 + $0xb0] sm:$0xff] %v146
  %171 = vst [vmem:[#allocation2 + $0xb8] sm:$0xff] %v147
  %s172 = scalar_lea.vmem %s1, 2
  %v173 = vld [vmem:[%s172] ss:$8 sm:$0x7]
  %v175 = vlaneseq
  %v176 = vshrl.u32 %v175, 7
  %v177 = vsub.s32 0, %v176
  %v178 = vrot.slane %v173, %v177
  %v179 = vlaneseq
  %v180 = vshrl.u32 %v179, 7
  %v181 = vsub.s32 1, %v180
  %v182 = vrot.slane %v173, %v181
  %v183 = vlaneseq
  %v184 = vshrl.u32 %v183, 7
  %v185 = vsub.s32 2, %v184
  %v186 = vrot.slane %v173, %v185
  %v190 = vmul.f32 %v29, %v178
  %v191 = vmul.f32 %v29, %v182
  %v192 = vmul.f32 %v29, %v186
  %v193 = vmul.f32 %v34, %v178
  %v194 = vmul.f32 %v34, %v182
  %v195 = vmul.f32 %v34, %v186
  %v196 = vmul.f32 %v39, %v178
  %v197 = vmul.f32 %v39, %v182
  %v198 = vmul.f32 %v39, %v186
  %v199 = vmul.f32 %v44, %v178
  %v200 = vmul.f32 %v44, %v182
  %v201 = vmul.f32 %v44, %v186
  %v202 = vmul.f32 %v49, %v178
  %v203 = vmul.f32 %v49, %v182
  %v204 = vmul.f32 %v49, %v186
  %v205 = vmul.f32 %v54, %v178
  %v206 = vmul.f32 %v54, %v182
  %v207 = vmul.f32 %v54, %v186
  %v208 = vmul.f32 %v59, %v178
  %v209 = vmul.f32 %v59, %v182
  %v210 = vmul.f32 %v59, %v186
  %v211 = vmul.f32 %v64, %v178
  %v212 = vmul.f32 %v64, %v182
  %v213 = vmul.f32 %v64, %v186
  %s214 = scalar_lea.vmem %s1, 3
  %v215 = vld [vmem:[%s214] ss:$8 sm:$0x7]
  %v217 = vlaneseq
  %v218 = vshrl.u32 %v217, 7
  %v219 = vsub.s32 0, %v218
  %v220 = vrot.slane %v215, %v219
  %v221 = vlaneseq
  %v222 = vshrl.u32 %v221, 7
  %v223 = vsub.s32 1, %v222
  %v224 = vrot.slane %v215, %v223
  %v225 = vlaneseq
  %v226 = vshrl.u32 %v225, 7
  %v227 = vsub.s32 2, %v226
  %v228 = vrot.slane %v215, %v227
  %v232 = vadd.f32 %v190, %v220
  %v233 = vadd.f32 %v191, %v224
  %v234 = vadd.f32 %v192, %v228
  %v235 = vadd.f32 %v193, %v220
  %v236 = vadd.f32 %v194, %v224
  %v237 = vadd.f32 %v195, %v228
  %v238 = vadd.f32 %v196, %v220
  %v239 = vadd.f32 %v197, %v224
  %v240 = vadd.f32 %v198, %v228
  %v241 = vadd.f32 %v199, %v220
  %v242 = vadd.f32 %v200, %v224
  %v243 = vadd.f32 %v201, %v228
  %v244 = vadd.f32 %v202, %v220
  %v245 = vadd.f32 %v203, %v224
  %v246 = vadd.f32 %v204, %v228
  %v247 = vadd.f32 %v205, %v220
  %v248 = vadd.f32 %v206, %v224
  %v249 = vadd.f32 %v207, %v228
  %v250 = vadd.f32 %v208, %v220
  %v251 = vadd.f32 %v209, %v224
  %v252 = vadd.f32 %v210, %v228
  %v253 = vadd.f32 %v211, %v220
  %v254 = vadd.f32 %v212, %v224
  %v255 = vadd.f32 %v213, %v228
  %256 = vst [vmem:[#allocation3] sm:$0xff] %v232
  %257 = vst [vmem:[#allocation3 + $0x8] sm:$0xff] %v233
  %258 = vst [vmem:[#allocation3 + $0x10] sm:$0xff] %v234
  %259 = vst [vmem:[#allocation3 + $0x18] sm:$0xff] %v235
  %260 = vst [vmem:[#allocation3 + $0x20] sm:$0xff] %v236
  %261 = vst [vmem:[#allocation3 + $0x28] sm:$0xff] %v237
  %262 = vst [vmem:[#allocation3 + $0x30] sm:$0xff] %v238
  %263 = vst [vmem:[#allocation3 + $0x38] sm:$0xff] %v239
  %264 = vst [vmem:[#allocation3 + $0x40] sm:$0xff] %v240
  %265 = vst [vmem:[#allocation3 + $0x48] sm:$0xff] %v241
  %266 = vst [vmem:[#allocation3 + $0x50] sm:$0xff] %v242
  %267 = vst [vmem:[#allocation3 + $0x58] sm:$0xff] %v243
  %268 = vst [vmem:[#allocation3 + $0x60] sm:$0xff] %v244
  %269 = vst [vmem:[#allocation3 + $0x68] sm:$0xff] %v245
  %270 = vst [vmem:[#allocation3 + $0x70] sm:$0xff] %v246
  %271 = vst [vmem:[#allocation3 + $0x78] sm:$0xff] %v247
  %272 = vst [vmem:[#allocation3 + $0x80] sm:$0xff] %v248
  %273 = vst [vmem:[#allocation3 + $0x88] sm:$0xff] %v249
  %274 = vst [vmem:[#allocation3 + $0x90] sm:$0xff] %v250
  %275 = vst [vmem:[#allocation3 + $0x98] sm:$0xff] %v251
  %276 = vst [vmem:[#allocation3 + $0xa0] sm:$0xff] %v252
  %277 = vst [vmem:[#allocation3 + $0xa8] sm:$0xff] %v253
  %278 = vst [vmem:[#allocation3 + $0xb0] sm:$0xff] %v254
  %279 = vst [vmem:[#allocation3 + $0xb8] sm:$0xff] %v255
  %v280 = vld [vmem:[%s1 + $0x4] ss:$0 sm:$0xff]
  %v281 = vld [vmem:[%s1 + $0x5] ss:$0 sm:$0xff]
  %v282 = vld [vmem:[#allocation2] sm:$0xff]
  %v283 = vld [vmem:[#allocation2 + $0x8] sm:$0xff]
  %v284 = vld [vmem:[#allocation2 + $0x10] sm:$0xff]
  %v285 = vld [vmem:[#allocation3 + $0xa8] sm:$0xff]
  %v286 = vld [vmem:[#allocation3 + $0xb0] sm:$0xff]
  %v287 = vld [vmem:[#allocation3 + $0xb8] sm:$0xff]
  %v288 = vld [vmem:[%s2] sm:$0xff]
  %v289 = vld [vmem:[%s2 + $0x8] sm:$0xff]
  %v290 = vld [vmem:[%s2 + $0x10] sm:$0xff]
  %v291 = vld [vmem:[%s2 + $0x18] sm:$0xff]
  %v292 = vld [vmem:[%s2 + $0x20] sm:$0xff]
  %v293 = vld [vmem:[%s2 + $0x28] sm:$0xff]
  %v294 = vld [vmem:[%s2 + $0x30] sm:$0xff]
  %v295 = vld [vmem:[%s2 + $0x38] sm:$0xff]
  %v296 = vld [vmem:[%s2 + $0x40] sm:$0xff]
  %v297 = vld [vmem:[%s2 + $0x48] sm:$0xff]
  %v298 = vld [vmem:[%s2 + $0x50] sm:$0xff]
  %v299 = vld [vmem:[%s2 + $0x58] sm:$0xff]
  %v300 = vld [vmem:[%s2 + $0x60] sm:$0xff]
  %v301 = vld [vmem:[%s2 + $0x68] sm:$0xff]
  %v302 = vld [vmem:[%s2 + $0x70] sm:$0xff]
  %v303 = vld [vmem:[%s2 + $0x78] sm:$0xff]
  %v304 = vld [vmem:[%s2 + $0x80] sm:$0xff]
  %v305 = vld [vmem:[%s2 + $0x88] sm:$0xff]
  %v306 = vld [vmem:[%s2 + $0x90] sm:$0xff]
  %v307 = vld [vmem:[%s2 + $0x98] sm:$0xff]
  %v308 = vld [vmem:[%s2 + $0xa0] sm:$0xff]
  %v309 = vld [vmem:[%s2 + $0xa8] sm:$0xff]
  %v310 = vld [vmem:[%s2 + $0xb0] sm:$0xff]
  %v311 = vld [vmem:[%s2 + $0xb8] sm:$0xff]
  %v312 = vld [vmem:[%s2 + $0xc0] sm:$0xff]
  %v313 = vld [vmem:[%s2 + $0xc8] sm:$0xff]
  %v314 = vld [vmem:[%s2 + $0xd0] sm:$0xff]
  %v315 = vld [vmem:[%s2 + $0xd8] sm:$0xff]
  %v316 = vld [vmem:[%s2 + $0xe0] sm:$0xff]
  %v317 = vld [vmem:[%s2 + $0xe8] sm:$0xff]
  %v318 = vld [vmem:[%s2 + $0xf0] sm:$0xff]
  %v319 = vld [vmem:[%s2 + $0xf8] sm:$0xff]
  %v320 = vld [vmem:[%s2 + $0x100] sm:$0xff]
  %v321 = vld [vmem:[%s2 + $0x108] sm:$0xff]
  %v322 = vld [vmem:[%s2 + $0x110] sm:$0xff]
  %v323 = vld [vmem:[%s2 + $0x118] sm:$0xff]
  %v324 = vld [vmem:[%s2 + $0x120] sm:$0xff]
  %v325 = vld [vmem:[%s2 + $0x128] sm:$0xff]
  %v326 = vld [vmem:[%s2 + $0x130] sm:$0xff]
  %v327 = vld [vmem:[%s2 + $0x138] sm:$0xff]
  %v328 = vld [vmem:[%s2 + $0x140] sm:$0xff]
  %v329 = vld [vmem:[%s2 + $0x148] sm:$0xff]
  %v330 = vld [vmem:[%s2 + $0x150] sm:$0xff]
  %v331 = vld [vmem:[%s2 + $0x158] sm:$0xff]
  %v332 = vld [vmem:[%s2 + $0x160] sm:$0xff]
  %v333 = vld [vmem:[%s2 + $0x168] sm:$0xff]
  %v334 = vld [vmem:[%s2 + $0x170] sm:$0xff]
  %v335 = vld [vmem:[%s2 + $0x178] sm:$0xff]
  %336 = vmatprep.subr.mxu0 %v289
  %337 = vmatpush1.msra.mxu0 %v288
  %338 = vmatprep.subr.mxu0 %v292
  %339 = vmatpush1.msra.mxu0 %v291
  %340 = vmatprep.subr.mxu0 %v295
  %341 = vmatpush1.msra.mxu0 %v294
  %342 = vmatprep.subr.mxu0 %v298
  %343 = vmatpush1.msra.mxu0 %v297
  %344 = vmatprep.subr.mxu0 %v301
  %345 = vmatpush1.msra.mxu0 %v300
  %346 = vmatprep.subr.mxu0 %v304
  %347 = vmatpush1.msra.mxu0 %v303
  %348 = vmatprep.subr.mxu0 %v307
  %349 = vmatpush1.msra.mxu0 %v306
  %350 = vmatprep.subr.mxu0 %v310
  %351 = vmatpush1.msra.mxu0 %v309
  %352 = vmatprep.subr.mxu0 %v313
  %353 = vmatpush1.msra.mxu0 %v312
  %354 = vmatprep.subr.mxu0 %v316
  %355 = vmatpush1.msra.mxu0 %v315
  %356 = vmatprep.subr.mxu0 %v319
  %357 = vmatpush1.msra.mxu0 %v318
  %358 = vmatprep.subr.mxu0 %v322
  %359 = vmatpush1.msra.mxu0 %v321
  %360 = vmatprep.subr.mxu0 %v325
  %361 = vmatpush1.msra.mxu0 %v324
  %362 = vmatprep.subr.mxu0 %v328
  %363 = vmatpush1.msra.mxu0 %v327
  %364 = vmatprep.subr.mxu0 %v331
  %365 = vmatpush1.msra.mxu0 %v330
  %366 = vmatprep.subr.mxu0 %v334
  %367 = vmatpush1.msra.mxu0 %v333
  %368 = vmatprep.subr.mxu0 0.0
  %369 = vmatpush1.msra.mxu0 0.0
  %370 = vmatprep.subr.mxu0 0.0
  %371 = vmatpush1.msra.mxu0 0.0
  %372 = vmatprep.subr.mxu0 0.0
  %373 = vmatpush1.msra.mxu0 0.0
  %374 = vmatprep.subr.mxu0 0.0
  %375 = vmatpush1.msra.mxu0 0.0
  %376 = vmatprep.subr.mxu0 0.0
  %377 = vmatpush1.msra.mxu0 0.0
  %378 = vmatprep.subr.mxu0 0.0
  %379 = vmatpush1.msra.mxu0 0.0
  %380 = vmatprep.subr.mxu0 0.0
  %381 = vmatpush1.msra.mxu0 0.0
  %382 = vmatprep.subr.mxu0 0.0
  %383 = vmatpush1.msra.mxu0 0.0
  %384 = vmatprep.subr.mxu0 0.0
  %385 = vmatpush1.msra.mxu0 0.0
  %386 = vmatprep.subr.mxu0 0.0
  %387 = vmatpush1.msra.mxu0 0.0
  %388 = vmatprep.subr.mxu0 0.0
  %389 = vmatpush1.msra.mxu0 0.0
  %390 = vmatprep.subr.mxu0 0.0
  %391 = vmatpush1.msra.mxu0 0.0
  %392 = vmatprep.subr.mxu0 0.0
  %393 = vmatpush1.msra.mxu0 0.0
  %394 = vmatprep.subr.mxu0 0.0
  %395 = vmatpush1.msra.mxu0 0.0
  %396 = vmatprep.subr.mxu0 0.0
  %397 = vmatpush1.msra.mxu0 0.0
  %398 = vmatprep.subr.mxu0 0.0
  %399 = vmatpush1.msra.mxu0 0.0
  %400 = vmatprep.mubr.f32.mxu0 0.0
  %401 = vmatmul.mubr.f32.gmra.mrb[0].mxu0 0.0
  %v402 = vpop.f32.mrb[0].mxu0
  %v403 = vadd.f32 0.0, %v402
  %v404 = vpop.f32.mrb[0].mxu0
  %v405 = vadd.f32 0.0, %v404
  %406 = vdwg.mxu0
  %407 = vmatprep.subr.mxu0 0.0
  %408 = vmatpush1.msra.mxu0 %v290
  %409 = vmatprep.subr.mxu0 0.0
  %410 = vmatpush1.msra.mxu0 %v293
  %411 = vmatprep.subr.mxu0 0.0
  %412 = vmatpush1.msra.mxu0 %v296
  %413 = vmatprep.subr.mxu0 0.0
  %414 = vmatpush1.msra.mxu0 %v299
  %415 = vmatprep.subr.mxu0 0.0
  %416 = vmatpush1.msra.mxu0 %v302
  %417 = vmatprep.subr.mxu0 0.0
  %418 = vmatpush1.msra.mxu0 %v305
  %419 = vmatprep.subr.mxu0 0.0
  %420 = vmatpush1.msra.mxu0 %v308
  %421 = vmatprep.subr.mxu0 0.0
  %422 = vmatpush1.msra.mxu0 %v311
  %423 = vmatprep.subr.mxu0 0.0
  %424 = vmatpush1.msra.mxu0 %v314
  %425 = vmatprep.subr.mxu0 0.0
  %426 = vmatpush1.msra.mxu0 %v317
  %427 = vmatprep.subr.mxu0 0.0
  %428 = vmatpush1.msra.mxu0 %v320
  %429 = vmatprep.subr.mxu0 0.0
  %430 = vmatpush1.msra.mxu0 %v323
  %431 = vmatprep.subr.mxu0 0.0
  %432 = vmatpush1.msra.mxu0 %v326
  %433 = vmatprep.subr.mxu0 0.0
  %434 = vmatpush1.msra.mxu0 %v329
  %435 = vmatprep.subr.mxu0 0.0
  %436 = vmatpush1.msra.mxu0 %v332
  %437 = vmatprep.subr.mxu0 0.0
  %438 = vmatpush1.msra.mxu0 %v335
  %439 = vmatprep.subr.mxu0 0.0
  %440 = vmatpush1.msra.mxu0 0.0
  %441 = vmatprep.subr.mxu0 0.0
  %442 = vmatpush1.msra.mxu0 0.0
  %443 = vmatprep.subr.mxu0 0.0
  %444 = vmatpush1.msra.mxu0 0.0
  %445 = vmatprep.subr.mxu0 0.0
  %446 = vmatpush1.msra.mxu0 0.0
  %447 = vmatprep.subr.mxu0 0.0
  %448 = vmatpush1.msra.mxu0 0.0
  %449 = vmatprep.subr.mxu0 0.0
  %450 = vmatpush1.msra.mxu0 0.0
  %451 = vmatprep.subr.mxu0 0.0
  %452 = vmatpush1.msra.mxu0 0.0
  %453 = vmatprep.subr.mxu0 0.0
  %454 = vmatpush1.msra.mxu0 0.0
  %455 = vmatprep.subr.mxu0 0.0
  %456 = vmatpush1.msra.mxu0 0.0
  %457 = vmatprep.subr.mxu0 0.0
  %458 = vmatpush1.msra.mxu0 0.0
  %459 = vmatprep.subr.mxu0 0.0
  %460 = vmatpush1.msra.mxu0 0.0
  %461 = vmatprep.subr.mxu0 0.0
  %462 = vmatpush1.msra.mxu0 0.0
  %463 = vmatprep.subr.mxu0 0.0
  %464 = vmatpush1.msra.mxu0 0.0
  %465 = vmatprep.subr.mxu0 0.0
  %466 = vmatpush1.msra.mxu0 0.0
  %467 = vmatprep.subr.mxu0 0.0
  %468 = vmatpush1.msra.mxu0 0.0
  %469 = vmatprep.subr.mxu0 0.0
  %470 = vmatpush1.msra.mxu0 0.0
  %471 = vmatprep.mubr.f32.mxu0 0.0
  %472 = vmatmul.mubr.f32.gmra.mrb[0].mxu0 0.0
  %v473 = vpop.f32.mrb[0].mxu0
  %v474 = vadd.f32 0.0, %v473
  %v475 = vpop.f32.mrb[0].mxu0
  %476 = vdwg.mxu0
  %s477 = scalar_lea.vmem %s2, 384
  %v478 = vld [vmem:[%s477] sm:$0xff]
  %v479 = vld [vmem:[%s477 + $0x8] sm:$0xff]
  %v480 = vld [vmem:[%s477 + $0x10] sm:$0xff]
  %v481 = vld [vmem:[%s477 + $0x18] sm:$0xff]
  %v482 = vld [vmem:[%s477 + $0x20] sm:$0xff]
  %v483 = vld [vmem:[%s477 + $0x28] sm:$0xff]
  %v484 = vld [vmem:[%s477 + $0x30] sm:$0xff]
  %v485 = vld [vmem:[%s477 + $0x38] sm:$0xff]
  %v486 = vld [vmem:[%s477 + $0x40] sm:$0xff]
  %v487 = vld [vmem:[%s477 + $0x48] sm:$0xff]
  %v488 = vld [vmem:[%s477 + $0x50] sm:$0xff]
  %v489 = vld [vmem:[%s477 + $0x58] sm:$0xff]
  %v490 = vld [vmem:[%s477 + $0x60] sm:$0xff]
  %v491 = vld [vmem:[%s477 + $0x68] sm:$0xff]
  %v492 = vld [vmem:[%s477 + $0x70] sm:$0xff]
  %v493 = vld [vmem:[%s477 + $0x78] sm:$0xff]
  %v494 = vld [vmem:[%s477 + $0x80] sm:$0xff]
  %v495 = vld [vmem:[%s477 + $0x88] sm:$0xff]
  %v496 = vld [vmem:[%s477 + $0x90] sm:$0xff]
  %v497 = vld [vmem:[%s477 + $0x98] sm:$0xff]
  %v498 = vld [vmem:[%s477 + $0xa0] sm:$0xff]
  %v499 = vld [vmem:[%s477 + $0xa8] sm:$0xff]
  %v500 = vld [vmem:[%s477 + $0xb0] sm:$0xff]
  %v501 = vld [vmem:[%s477 + $0xb8] sm:$0xff]
  %v502 = vld [vmem:[%s477 + $0xc0] sm:$0xff]
  %v503 = vld [vmem:[%s477 + $0xc8] sm:$0xff]
  %v504 = vld [vmem:[%s477 + $0xd0] sm:$0xff]
  %v505 = vld [vmem:[%s477 + $0xd8] sm:$0xff]
  %v506 = vld [vmem:[%s477 + $0xe0] sm:$0xff]
  %v507 = vld [vmem:[%s477 + $0xe8] sm:$0xff]
  %v508 = vld [vmem:[%s477 + $0xf0] sm:$0xff]
  %v509 = vld [vmem:[%s477 + $0xf8] sm:$0xff]
  %v510 = vld [vmem:[%s477 + $0x100] sm:$0xff]
  %v511 = vld [vmem:[%s477 + $0x108] sm:$0xff]
  %v512 = vld [vmem:[%s477 + $0x110] sm:$0xff]
  %v513 = vld [vmem:[%s477 + $0x118] sm:$0xff]
  %v514 = vld [vmem:[%s477 + $0x120] sm:$0xff]
  %v515 = vld [vmem:[%s477 + $0x128] sm:$0xff]
  %v516 = vld [vmem:[%s477 + $0x130] sm:$0xff]
  %v517 = vld [vmem:[%s477 + $0x138] sm:$0xff]
  %v518 = vld [vmem:[%s477 + $0x140] sm:$0xff]
  %v519 = vld [vmem:[%s477 + $0x148] sm:$0xff]
  %v520 = vld [vmem:[%s477 + $0x150] sm:$0xff]
  %v521 = vld [vmem:[%s477 + $0x158] sm:$0xff]
  %v522 = vld [vmem:[%s477 + $0x160] sm:$0xff]
  %v523 = vld [vmem:[%s477 + $0x168] sm:$0xff]
  %v524 = vld [vmem:[%s477 + $0x170] sm:$0xff]
  %v525 = vld [vmem:[%s477 + $0x178] sm:$0xff]
  %526 = vmatprep.subr.mxu0 %v479
  %527 = vmatpush1.msra.mxu0 %v478
  %528 = vmatprep.subr.mxu0 %v482
  %529 = vmatpush1.msra.mxu0 %v481
  %530 = vmatprep.subr.mxu0 %v485
  %531 = vmatpush1.msra.mxu0 %v484
  %532 = vmatprep.subr.mxu0 %v488
  %533 = vmatpush1.msra.mxu0 %v487
  %534 = vmatprep.subr.mxu0 %v491
  %535 = vmatpush1.msra.mxu0 %v490
  %536 = vmatprep.subr.mxu0 %v494
  %537 = vmatpush1.msra.mxu0 %v493
  %538 = vmatprep.subr.mxu0 %v497
  %539 = vmatpush1.msra.mxu0 %v496
  %540 = vmatprep.subr.mxu0 %v500
  %541 = vmatpush1.msra.mxu0 %v499
  %542 = vmatprep.subr.mxu0 %v503
  %543 = vmatpush1.msra.mxu0 %v502
  %544 = vmatprep.subr.mxu0 %v506
  %545 = vmatpush1.msra.mxu0 %v505
  %546 = vmatprep.subr.mxu0 %v509
  %547 = vmatpush1.msra.mxu0 %v508
  %548 = vmatprep.subr.mxu0 %v512
  %549 = vmatpush1.msra.mxu0 %v511
  %550 = vmatprep.subr.mxu0 %v515
  %551 = vmatpush1.msra.mxu0 %v514
  %552 = vmatprep.subr.mxu0 %v518
  %553 = vmatpush1.msra.mxu0 %v517
  %554 = vmatprep.subr.mxu0 %v521
  %555 = vmatpush1.msra.mxu0 %v520
  %556 = vmatprep.subr.mxu0 %v524
  %557 = vmatpush1.msra.mxu0 %v523
  %558 = vmatprep.subr.mxu0 0.0
  %559 = vmatpush1.msra.mxu0 0.0
  %560 = vmatprep.subr.mxu0 0.0
  %561 = vmatpush1.msra.mxu0 0.0
  %562 = vmatprep.subr.mxu0 0.0
  %563 = vmatpush1.msra.mxu0 0.0
  %564 = vmatprep.subr.mxu0 0.0
  %565 = vmatpush1.msra.mxu0 0.0
  %566 = vmatprep.subr.mxu0 0.0
  %567 = vmatpush1.msra.mxu0 0.0
  %568 = vmatprep.subr.mxu0 0.0
  %569 = vmatpush1.msra.mxu0 0.0
  %570 = vmatprep.subr.mxu0 0.0
  %571 = vmatpush1.msra.mxu0 0.0
  %572 = vmatprep.subr.mxu0 0.0
  %573 = vmatpush1.msra.mxu0 0.0
  %574 = vmatprep.subr.mxu0 0.0
  %575 = vmatpush1.msra.mxu0 0.0
  %576 = vmatprep.subr.mxu0 0.0
  %577 = vmatpush1.msra.mxu0 0.0
  %578 = vmatprep.subr.mxu0 0.0
  %579 = vmatpush1.msra.mxu0 0.0
  %580 = vmatprep.subr.mxu0 0.0
  %581 = vmatpush1.msra.mxu0 0.0
  %582 = vmatprep.subr.mxu0 0.0
  %583 = vmatpush1.msra.mxu0 0.0
  %584 = vmatprep.subr.mxu0 0.0
  %585 = vmatpush1.msra.mxu0 0.0
  %586 = vmatprep.subr.mxu0 0.0
  %587 = vmatpush1.msra.mxu0 0.0
  %588 = vmatprep.subr.mxu0 0.0
  %589 = vmatpush1.msra.mxu0 0.0
  %590 = vmatprep.mubr.f32.mxu0 0.0
  %591 = vmatmul.mubr.f32.gmra.mrb[0].mxu0 0.0
  %v592 = vpop.f32.mrb[0].mxu0
  %v593 = vadd.f32 0.0, %v592
  %v594 = vpop.f32.mrb[0].mxu0
  %v595 = vadd.f32 0.0, %v594
  %596 = vdwg.mxu0
  %597 = vmatprep.subr.mxu0 0.0
  %598 = vmatpush1.msra.mxu0 %v480
  %599 = vmatprep.subr.mxu0 0.0
  %600 = vmatpush1.msra.mxu0 %v483
  %601 = vmatprep.subr.mxu0 0.0
  %602 = vmatpush1.msra.mxu0 %v486
  %603 = vmatprep.subr.mxu0 0.0
  %604 = vmatpush1.msra.mxu0 %v489
  %605 = vmatprep.subr.mxu0 0.0
  %606 = vmatpush1.msra.mxu0 %v492
  %607 = vmatprep.subr.mxu0 0.0
  %608 = vmatpush1.msra.mxu0 %v495
  %609 = vmatprep.subr.mxu0 0.0
  %610 = vmatpush1.msra.mxu0 %v498
  %611 = vmatprep.subr.mxu0 0.0
  %612 = vmatpush1.msra.mxu0 %v501
  %613 = vmatprep.subr.mxu0 0.0
  %614 = vmatpush1.msra.mxu0 %v504
  %615 = vmatprep.subr.mxu0 0.0
  %616 = vmatpush1.msra.mxu0 %v507
  %617 = vmatprep.subr.mxu0 0.0
  %618 = vmatpush1.msra.mxu0 %v510
  %619 = vmatprep.subr.mxu0 0.0
  %620 = vmatpush1.msra.mxu0 %v513
  %621 = vmatprep.subr.mxu0 0.0
  %622 = vmatpush1.msra.mxu0 %v516
  %623 = vmatprep.subr.mxu0 0.0
  %624 = vmatpush1.msra.mxu0 %v519
  %625 = vmatprep.subr.mxu0 0.0
  %626 = vmatpush1.msra.mxu0 %v522
  %627 = vmatprep.subr.mxu0 0.0
  %628 = vmatpush1.msra.mxu0 %v525
  %629 = vmatprep.subr.mxu0 0.0
  %630 = vmatpush1.msra.mxu0 0.0
  %631 = vmatprep.subr.mxu0 0.0
  %632 = vmatpush1.msra.mxu0 0.0
  %633 = vmatprep.subr.mxu0 0.0
  %634 = vmatpush1.msra.mxu0 0.0
  %635 = vmatprep.subr.mxu0 0.0
  %636 = vmatpush1.msra.mxu0 0.0
  %637 = vmatprep.subr.mxu0 0.0
  %638 = vmatpush1.msra.mxu0 0.0
  %639 = vmatprep.subr.mxu0 0.0
  %640 = vmatpush1.msra.mxu0 0.0
  %641 = vmatprep.subr.mxu0 0.0
  %642 = vmatpush1.msra.mxu0 0.0
  %643 = vmatprep.subr.mxu0 0.0
  %644 = vmatpush1.msra.mxu0 0.0
  %645 = vmatprep.subr.mxu0 0.0
  %646 = vmatpush1.msra.mxu0 0.0
  %647 = vmatprep.subr.mxu0 0.0
  %648 = vmatpush1.msra.mxu0 0.0
  %649 = vmatprep.subr.mxu0 0.0
  %650 = vmatpush1.msra.mxu0 0.0
  %651 = vmatprep.subr.mxu0 0.0
  %652 = vmatpush1.msra.mxu0 0.0
  %653 = vmatprep.subr.mxu0 0.0
  %654 = vmatpush1.msra.mxu0 0.0
  %655 = vmatprep.subr.mxu0 0.0
  %656 = vmatpush1.msra.mxu0 0.0
  %657 = vmatprep.subr.mxu0 0.0
  %658 = vmatpush1.msra.mxu0 0.0
  %659 = vmatprep.subr.mxu0 0.0
  %660 = vmatpush1.msra.mxu0 0.0
  %661 = vmatprep.mubr.f32.mxu0 0.0
  %662 = vmatmul.mubr.f32.gmra.mrb[0].mxu0 0.0
  %v663 = vpop.f32.mrb[0].mxu0
  %v664 = vadd.f32 0.0, %v663
  %v665 = vpop.f32.mrb[0].mxu0
  %666 = vdwg.mxu0
  %v667 = vadd.f32 %v282, %v403
  %v668 = vxor.u32 %v667, 2147483648
  %v669 = vmul.f32 %v668, 1.442695
  %v670 = vpow.pop %v669
  %v671 = vadd.f32 %v670, 1.0
  %v672 = vrcp.pop %v671
  %v673 = vmul.f32 1.0, %v672
  %v674 = vadd.f32 %v283, %v405
  %v675 = vxor.u32 %v674, 2147483648
  %v676 = vmul.f32 %v675, 1.442695
  %v677 = vpow.pop %v676
  %v678 = vadd.f32 %v677, 1.0
  %v679 = vrcp.pop %v678
  %v680 = vmul.f32 1.0, %v679
  %v681 = vadd.f32 %v474, %v280
  %v682 = vmul.f32 %v673, %v681
  %v683 = vadd.f32 %v284, %v682
  %v684 = vtanh.pop %v683
  %v685 = vadd.f32 %v285, %v593
  %v686 = vxor.u32 %v685, 2147483648
  %v687 = vmul.f32 %v686, 1.442695
  %v688 = vpow.pop %v687
  %v689 = vadd.f32 %v688, 1.0
  %v690 = vrcp.pop %v689
  %v691 = vmul.f32 1.0, %v690
  %v692 = vadd.f32 %v286, %v595
  %v693 = vxor.u32 %v692, 2147483648
  %v694 = vmul.f32 %v693, 1.442695
  %v695 = vpow.pop %v694
  %v696 = vadd.f32 %v695, 1.0
  %v697 = vrcp.pop %v696
  %v698 = vmul.f32 1.0, %v697
  %v699 = vadd.f32 %v664, %v281
  %v700 = vmul.f32 %v691, %v699
  %v701 = vadd.f32 %v287, %v700
  %v702 = vtanh.pop %v701
  %v703 = vsub.f32 0.0, %v684
  %v704 = vmul.f32 %v680, %v703
  %v705 = vadd.f32 %v684, %v704
  %v706 = vsub.f32 0.0, %v702
  %v707 = vmul.f32 %v698, %v706
  %v708 = vadd.f32 %v702, %v707
  %v709 = vld [vmem:[%s3] sm:$0xff]
  %v710 = vld [vmem:[%s3 + $0x8] sm:$0xff]
  %v711 = vld [vmem:[%s3 + $0x10] sm:$0xff]
  %v712 = vld [vmem:[%s3 + $0x18] sm:$0xff]
  %v713 = vld [vmem:[%s3 + $0x20] sm:$0xff]
  %v714 = vld [vmem:[%s3 + $0x28] sm:$0xff]
  %v715 = vld [vmem:[%s3 + $0x30] sm:$0xff]
  %v716 = vld [vmem:[%s3 + $0x38] sm:$0xff]
  %v717 = vld [vmem:[%s3 + $0x40] sm:$0xff]
  %v718 = vld [vmem:[%s3 + $0x48] sm:$0xff]
  %v719 = vld [vmem:[%s3 + $0x50] sm:$0xff]
  %v720 = vld [vmem:[%s3 + $0x58] sm:$0xff]
  %v721 = vld [vmem:[%s3 + $0x60] sm:$0xff]
  %v722 = vld [vmem:[%s3 + $0x68] sm:$0xff]
  %v723 = vld [vmem:[%s3 + $0x70] sm:$0xff]
  %v724 = vld [vmem:[%s3 + $0x78] sm:$0xff]
  %v725 = vld [vmem:[%s3 + $0x80] sm:$0xff]
  %v726 = vld [vmem:[%s3 + $0x88] sm:$0xff]
  %v727 = vld [vmem:[%s3 + $0x90] sm:$0xff]
  %v728 = vld [vmem:[%s3 + $0x98] sm:$0xff]
  %v729 = vld [vmem:[%s3 + $0xa0] sm:$0xff]
  %v730 = vld [vmem:[%s3 + $0xa8] sm:$0xff]
  %v731 = vld [vmem:[%s3 + $0xb0] sm:$0xff]
  %v732 = vld [vmem:[%s3 + $0xb8] sm:$0xff]
  %v733 = vld [vmem:[%s3 + $0xc0] sm:$0xff]
  %v734 = vld [vmem:[%s3 + $0xc8] sm:$0xff]
  %v735 = vld [vmem:[%s3 + $0xd0] sm:$0xff]
  %v736 = vld [vmem:[%s3 + $0xd8] sm:$0xff]
  %v737 = vld [vmem:[%s3 + $0xe0] sm:$0xff]
  %v738 = vld [vmem:[%s3 + $0xe8] sm:$0xff]
  %v739 = vld [vmem:[%s3 + $0xf0] sm:$0xff]
  %v740 = vld [vmem:[%s3 + $0xf8] sm:$0xff]
  %v741 = vld [vmem:[#allocation2 + $0x18] sm:$0xff]
  %v742 = vld [vmem:[#allocation2 + $0x20] sm:$0xff]
  %v743 = vld [vmem:[#allocation2 + $0x28] sm:$0xff]
  %v744 = vld [vmem:[#allocation3 + $0x90] sm:$0xff]
  %v745 = vld [vmem:[#allocation3 + $0x98] sm:$0xff]
  %v746 = vld [vmem:[#allocation3 + $0xa0] sm:$0xff]
  %747 = vmatprep.subr.mxu0 %v289
  %748 = vmatpush1.msra.mxu0 %v288
  %749 = vmatprep.subr.mxu0 %v292
  %750 = vmatpush1.msra.mxu0 %v291
  %751 = vmatprep.subr.mxu0 %v295
  %752 = vmatpush1.msra.mxu0 %v294
  %753 = vmatprep.subr.mxu0 %v298
  %754 = vmatpush1.msra.mxu0 %v297
  %755 = vmatprep.subr.mxu0 %v301
  %756 = vmatpush1.msra.mxu0 %v300
  %757 = vmatprep.subr.mxu0 %v304
  %758 = vmatpush1.msra.mxu0 %v303
  %759 = vmatprep.subr.mxu0 %v307
  %760 = vmatpush1.msra.mxu0 %v306
  %761 = vmatprep.subr.mxu0 %v310
  %762 = vmatpush1.msra.mxu0 %v309
  %763 = vmatprep.subr.mxu0 %v313
  %764 = vmatpush1.msra.mxu0 %v312
  %765 = vmatprep.subr.mxu0 %v316
  %766 = vmatpush1.msra.mxu0 %v315
  %767 = vmatprep.subr.mxu0 %v319
  %768 = vmatpush1.msra.mxu0 %v318
  %769 = vmatprep.subr.mxu0 %v322
  %770 = vmatpush1.msra.mxu0 %v321
  %771 = vmatprep.subr.mxu0 %v325
  %772 = vmatpush1.msra.mxu0 %v324
  %773 = vmatprep.subr.mxu0 %v328
  %774 = vmatpush1.msra.mxu0 %v327
  %775 = vmatprep.subr.mxu0 %v331
  %776 = vmatpush1.msra.mxu0 %v330
  %777 = vmatprep.subr.mxu0 %v334
  %778 = vmatpush1.msra.mxu0 %v333
  %779 = vmatprep.subr.mxu0 0.0
  %780 = vmatpush1.msra.mxu0 0.0
  %781 = vmatprep.subr.mxu0 0.0
  %782 = vmatpush1.msra.mxu0 0.0
  %783 = vmatprep.subr.mxu0 0.0
  %784 = vmatpush1.msra.mxu0 0.0
  %785 = vmatprep.subr.mxu0 0.0
  %786 = vmatpush1.msra.mxu0 0.0
  %787 = vmatprep.subr.mxu0 0.0
  %788 = vmatpush1.msra.mxu0 0.0
  %789 = vmatprep.subr.mxu0 0.0
  %790 = vmatpush1.msra.mxu0 0.0
  %791 = vmatprep.subr.mxu0 0.0
  %792 = vmatpush1.msra.mxu0 0.0
  %793 = vmatprep.subr.mxu0 0.0
  %794 = vmatpush1.msra.mxu0 0.0
  %795 = vmatprep.subr.mxu0 0.0
  %796 = vmatpush1.msra.mxu0 0.0
  %797 = vmatprep.subr.mxu0 0.0
  %798 = vmatpush1.msra.mxu0 0.0
  %799 = vmatprep.subr.mxu0 0.0
  %800 = vmatpush1.msra.mxu0 0.0
  %801 = vmatprep.subr.mxu0 0.0
  %802 = vmatpush1.msra.mxu0 0.0
  %803 = vmatprep.subr.mxu0 0.0
  %804 = vmatpush1.msra.mxu0 0.0
  %805 = vmatprep.subr.mxu0 0.0
  %806 = vmatpush1.msra.mxu0 0.0
  %807 = vmatprep.subr.mxu0 0.0
  %808 = vmatpush1.msra.mxu0 0.0
  %809 = vmatprep.subr.mxu0 0.0
  %810 = vmatpush1.msra.mxu0 0.0
  %811 = vmatprep.mubr.f32.mxu0 0.0
  %812 = vmatmul.mubr.f32.gmra.mrb[0].mxu0 %v705
  %v813 = vpop.f32.mrb[0].mxu0
  %v814 = vadd.f32 0.0, %v813
  %v815 = vpop.f32.mrb[0].mxu0
  %v816 = vadd.f32 0.0, %v815
  %817 = vdwg.mxu0
  %818 = vmatprep.subr.mxu0 0.0
  %819 = vmatpush1.msra.mxu0 %v290
  %820 = vmatprep.subr.mxu0 0.0
  %821 = vmatpush1.msra.mxu0 %v293
  %822 = vmatprep.subr.mxu0 0.0
  %823 = vmatpush1.msra.mxu0 %v296
  %824 = vmatprep.subr.mxu0 0.0
  %825 = vmatpush1.msra.mxu0 %v299
  %826 = vmatprep.subr.mxu0 0.0
  %827 = vmatpush1.msra.mxu0 %v302
  %828 = vmatprep.subr.mxu0 0.0
  %829 = vmatpush1.msra.mxu0 %v305
  %830 = vmatprep.subr.mxu0 0.0
  %831 = vmatpush1.msra.mxu0 %v308
  %832 = vmatprep.subr.mxu0 0.0
  %833 = vmatpush1.msra.mxu0 %v311
  %834 = vmatprep.subr.mxu0 0.0
  %835 = vmatpush1.msra.mxu0 %v314
  %836 = vmatprep.subr.mxu0 0.0
  %837 = vmatpush1.msra.mxu0 %v317
  %838 = vmatprep.subr.mxu0 0.0
  %839 = vmatpush1.msra.mxu0 %v320
  %840 = vmatprep.subr.mxu0 0.0
  %841 = vmatpush1.msra.mxu0 %v323
  %842 = vmatprep.subr.mxu0 0.0
  %843 = vmatpush1.msra.mxu0 %v326
  %844 = vmatprep.subr.mxu0 0.0
  %845 = vmatpush1.msra.mxu0 %v329
  %846 = vmatprep.subr.mxu0 0.0
  %847 = vmatpush1.msra.mxu0 %v332
  %848 = vmatprep.subr.mxu0 0.0
  %849 = vmatpush1.msra.mxu0 %v335
  %850 = vmatprep.subr.mxu0 0.0
  %851 = vmatpush1.msra.mxu0 0.0
  %852 = vmatprep.subr.mxu0 0.0
  %853 = vmatpush1.msra.mxu0 0.0
  %854 = vmatprep.subr.mxu0 0.0
  %855 = vmatpush1.msra.mxu0 0.0
  %856 = vmatprep.subr.mxu0 0.0
  %857 = vmatpush1.msra.mxu0 0.0
  %858 = vmatprep.subr.mxu0 0.0
  %859 = vmatpush1.msra.mxu0 0.0
  %860 = vmatprep.subr.mxu0 0.0
  %861 = vmatpush1.msra.mxu0 0.0
  %862 = vmatprep.subr.mxu0 0.0
  %863 = vmatpush1.msra.mxu0 0.0
  %864 = vmatprep.subr.mxu0 0.0
  %865 = vmatpush1.msra.mxu0 0.0
  %866 = vmatprep.subr.mxu0 0.0
  %867 = vmatpush1.msra.mxu0 0.0
  %868 = vmatprep.subr.mxu0 0.0
  %869 = vmatpush1.msra.mxu0 0.0
  %870 = vmatprep.subr.mxu0 0.0
  %871 = vmatpush1.msra.mxu0 0.0
  %872 = vmatprep.subr.mxu0 0.0
  %873 = vmatpush1.msra.mxu0 0.0
  %874 = vmatprep.subr.mxu0 0.0
  %875 = vmatpush1.msra.mxu0 0.0
  %876 = vmatprep.subr.mxu0 0.0
  %877 = vmatpush1.msra.mxu0 0.0
  %878 = vmatprep.subr.mxu0 0.0
  %879 = vmatpush1.msra.mxu0 0.0
  %880 = vmatprep.subr.mxu0 0.0
  %881 = vmatpush1.msra.mxu0 0.0
  %882 = vmatprep.mubr.f32.mxu0 0.0
  %883 = vmatmul.mubr.f32.gmra.mrb[0].mxu0 %v705
  %v884 = vpop.f32.mrb[0].mxu0
  %v885 = vadd.f32 0.0, %v884
  %v886 = vpop.f32.mrb[0].mxu0
  %887 = vdwg.mxu0
  %888 = vmatprep.subr.mxu0 %v479
  %889 = vmatpush1.msra.mxu0 %v478
  %890 = vmatprep.subr.mxu0 %v482
  %891 = vmatpush1.msra.mxu0 %v481
  %892 = vmatprep.subr.mxu0 %v485
  %893 = vmatpush1.msra.mxu0 %v484
  %894 = vmatprep.subr.mxu0 %v488
  %895 = vmatpush1.msra.mxu0 %v487
  %896 = vmatprep.subr.mxu0 %v491
  %897 = vmatpush1.msra.mxu0 %v490
  %898 = vmatprep.subr.mxu0 %v494
  %899 = vmatpush1.msra.mxu0 %v493
  %900 = vmatprep.subr.mxu0 %v497
  %901 = vmatpush1.msra.mxu0 %v496
  %902 = vmatprep.subr.mxu0 %v500
  %903 = vmatpush1.msra.mxu0 %v499
  %904 = vmatprep.subr.mxu0 %v503
  %905 = vmatpush1.msra.mxu0 %v502
  %906 = vmatprep.subr.mxu0 %v506
  %907 = vmatpush1.msra.mxu0 %v505
  %908 = vmatprep.subr.mxu0 %v509
  %909 = vmatpush1.msra.mxu0 %v508
  %910 = vmatprep.subr.mxu0 %v512
  %911 = vmatpush1.msra.mxu0 %v511
  %912 = vmatprep.subr.mxu0 %v515
  %913 = vmatpush1.msra.mxu0 %v514
  %914 = vmatprep.subr.mxu0 %v518
  %915 = vmatpush1.msra.mxu0 %v517
  %916 = vmatprep.subr.mxu0 %v521
  %917 = vmatpush1.msra.mxu0 %v520
  %918 = vmatprep.subr.mxu0 %v524
  %919 = vmatpush1.msra.mxu0 %v523
  %920 = vmatprep.subr.mxu0 0.0
  %921 = vmatpush1.msra.mxu0 0.0
  %922 = vmatprep.subr.mxu0 0.0
  %923 = vmatpush1.msra.mxu0 0.0
  %924 = vmatprep.subr.mxu0 0.0
  %925 = vmatpush1.msra.mxu0 0.0
  %926 = vmatprep.subr.mxu0 0.0
  %927 = vmatpush1.msra.mxu0 0.0
  %928 = vmatprep.subr.mxu0 0.0
  %929 = vmatpush1.msra.mxu0 0.0
  %930 = vmatprep.subr.mxu0 0.0
  %931 = vmatpush1.msra.mxu0 0.0
  %932 = vmatprep.subr.mxu0 0.0
  %933 = vmatpush1.msra.mxu0 0.0
  %934 = vmatprep.subr.mxu0 0.0
  %935 = vmatpush1.msra.mxu0 0.0
  %936 = vmatprep.subr.mxu0 0.0
  %937 = vmatpush1.msra.mxu0 0.0
  %938 = vmatprep.subr.mxu0 0.0
  %939 = vmatpush1.msra.mxu0 0.0
  %940 = vmatprep.subr.mxu0 0.0
  %941 = vmatpush1.msra.mxu0 0.0
  %942 = vmatprep.subr.mxu0 0.0
  %943 = vmatpush1.msra.mxu0 0.0
  %944 = vmatprep.subr.mxu0 0.0
  %945 = vmatpush1.msra.mxu0 0.0
  %946 = vmatprep.subr.mxu0 0.0
  %947 = vmatpush1.msra.mxu0 0.0
  %948 = vmatprep.subr.mxu0 0.0
  %949 = vmatpush1.msra.mxu0 0.0
  %950 = vmatprep.subr.mxu0 0.0
  %951 = vmatpush1.msra.mxu0 0.0
  %952 = vmatprep.mubr.f32.mxu0 0.0
  %953 = vmatmul.mubr.f32.gmra.mrb[0].mxu0 %v708
  %v954 = vpop.f32.mrb[0].mxu0
  %v955 = vadd.f32 0.0, %v954
  %v956 = vpop.f32.mrb[0].mxu0
  %v957 = vadd.f32 0.0, %v956
  %958 = vdwg.mxu0
  %959 = vmatprep.subr.mxu0 0.0
  %960 = vmatpush1.msra.mxu0 %v480
  %961 = vmatprep.subr.mxu0 0.0
  %962 = vmatpush1.msra.mxu0 %v483
  %963 = vmatprep.subr.mxu0 0.0
  %964 = vmatpush1.msra.mxu0 %v486
  %965 = vmatprep.subr.mxu0 0.0
  %966 = vmatpush1.msra.mxu0 %v489
  %967 = vmatprep.subr.mxu0 0.0
  %968 = vmatpush1.msra.mxu0 %v492
  %969 = vmatprep.subr.mxu0 0.0
  %970 = vmatpush1.msra.mxu0 %v495
  %971 = vmatprep.subr.mxu0 0.0
  %972 = vmatpush1.msra.mxu0 %v498
  %973 = vmatprep.subr.mxu0 0.0
  %974 = vmatpush1.msra.mxu0 %v501
  %975 = vmatprep.subr.mxu0 0.0
  %976 = vmatpush1.msra.mxu0 %v504
  %977 = vmatprep.subr.mxu0 0.0
  %978 = vmatpush1.msra.mxu0 %v507
  %979 = vmatprep.subr.mxu0 0.0
  %980 = vmatpush1.msra.mxu0 %v510
  %981 = vmatprep.subr.mxu0 0.0
  %982 = vmatpush1.msra.mxu0 %v513
  %983 = vmatprep.subr.mxu0 0.0
  %984 = vmatpush1.msra.mxu0 %v516
  %985 = vmatprep.subr.mxu0 0.0
  %986 = vmatpush1.msra.mxu0 %v519
  %987 = vmatprep.subr.mxu0 0.0
  %988 = vmatpush1.msra.mxu0 %v522
  %989 = vmatprep.subr.mxu0 0.0
  %990 = vmatpush1.msra.mxu0 %v525
  %991 = vmatprep.subr.mxu0 0.0
  %992 = vmatpush1.msra.mxu0 0.0
  %993 = vmatprep.subr.mxu0 0.0
  %994 = vmatpush1.msra.mxu0 0.0
  %995 = vmatprep.subr.mxu0 0.0
  %996 = vmatpush1.msra.mxu0 0.0
  %997 = vmatprep.subr.mxu0 0.0
  %998 = vmatpush1.msra.mxu0 0.0
  %999 = vmatprep.subr.mxu0 0.0
  %1000 = vmatpush1.msra.mxu0 0.0
  %1001 = vmatprep.subr.mxu0 0.0
  %1002 = vmatpush1.msra.mxu0 0.0
  %1003 = vmatprep.subr.mxu0 0.0
  %1004 = vmatpush1.msra.mxu0 0.0
  %1005 = vmatprep.subr.mxu0 0.0
  %1006 = vmatpush1.msra.mxu0 0.0
  %1007 = vmatprep.subr.mxu0 0.0
  %1008 = vmatpush1.msra.mxu0 0.0
  %1009 = vmatprep.subr.mxu0 0.0
  %1010 = vmatpush1.msra.mxu0 0.0
  %1011 = vmatprep.subr.mxu0 0.0
  %1012 = vmatpush1.msra.mxu0 0.0
  %1013 = vmatprep.subr.mxu0 0.0
  %1014 = vmatpush1.msra.mxu0 0.0
  %1015 = vmatprep.subr.mxu0 0.0
  %1016 = vmatpush1.msra.mxu0 0.0
  %1017 = vmatprep.subr.mxu0 0.0
  %1018 = vmatpush1.msra.mxu0 0.0
  %1019 = vmatprep.subr.mxu0 0.0
  %1020 = vmatpush1.msra.mxu0 0.0
  %1021 = vmatprep.subr.mxu0 0.0
  %1022 = vmatpush1.msra.mxu0 0.0
  %1023 = vmatprep.mubr.f32.mxu0 0.0
  %1024 = vmatmul.mubr.f32.gmra.mrb[0].mxu0 %v708
  %v1025 = vpop.f32.mrb[0].mxu0
  %v1026 = vadd.f32 0.0, %v1025
  %v1027 = vpop.f32.mrb[0].mxu0
  %1028 = vdwg.mxu0
  %v1029 = vadd.f32 %v741, %v814
  %v1030 = vxor.u32 %v1029, 2147483648
  %v1031 = vmul.f32 %v1030, 1.442695
  %v1032 = vpow.pop %v1031
  %v1033 = vadd.f32 %v1032, 1.0
  %v1034 = vrcp.pop %v1033
  %v1035 = vmul.f32 1.0, %v1034
  %v1036 = vadd.f32 %v742, %v816
  %v1037 = vxor.u32 %v1036, 2147483648
  %v1038 = vmul.f32 %v1037, 1.442695
  %v1039 = vpow.pop %v1038
  %v1040 = vadd.f32 %v1039, 1.0
  %v1041 = vrcp.pop %v1040
  %v1042 = vmul.f32 1.0, %v1041
  %v1043 = vadd.f32 %v885, %v280
  %v1044 = vmul.f32 %v1035, %v1043
  %v1045 = vadd.f32 %v743, %v1044
  %v1046 = vtanh.pop %v1045
  %v1047 = vadd.f32 %v744, %v955
  %v1048 = vxor.u32 %v1047, 2147483648
  %v1049 = vmul.f32 %v1048, 1.442695
  %v1050 = vpow.pop %v1049
  %v1051 = vadd.f32 %v1050, 1.0
  %v1052 = vrcp.pop %v1051
  %v1053 = vmul.f32 1.0, %v1052
  %v1054 = vadd.f32 %v745, %v957
  %v1055 = vxor.u32 %v1054, 2147483648
  %v1056 = vmul.f32 %v1055, 1.442695
  %v1057 = vpow.pop %v1056
  %v1058 = vadd.f32 %v1057, 1.0
  %v1059 = vrcp.pop %v1058
  %v1060 = vmul.f32 1.0, %v1059
  %v1061 = vadd.f32 %v1026, %v281
  %v1062 = vmul.f32 %v1053, %v1061
  %v1063 = vadd.f32 %v746, %v1062
  %v1064 = vtanh.pop %v1063
  %v1065 = vsub.f32 %v705, %v1046
  %v1066 = vmul.f32 %v1042, %v1065
  %v1067 = vadd.f32 %v1046, %v1066
  %v1068 = vsub.f32 %v708, %v1064
  %v1069 = vmul.f32 %v1060, %v1068
  %v1070 = vadd.f32 %v1064, %v1069
  %s1071 = scalar_lea.vmem %s3, 256
  %v1072 = vld [vmem:[%s1071] sm:$0xff]
  %v1073 = vld [vmem:[%s1071 + $0x8] sm:$0xff]
  %v1074 = vld [vmem:[%s1071 + $0x10] sm:$0xff]
  %v1075 = vld [vmem:[%s1071 + $0x18] sm:$0xff]
  %v1076 = vld [vmem:[%s1071 + $0x20] sm:$0xff]
  %v1077 = vld [vmem:[%s1071 + $0x28] sm:$0xff]
  %v1078 = vld [vmem:[%s1071 + $0x30] sm:$0xff]
  %v1079 = vld [vmem:[%s1071 + $0x38] sm:$0xff]
  %v1080 = vld [vmem:[%s1071 + $0x40] sm:$0xff]
  %v1081 = vld [vmem:[%s1071 + $0x48] sm:$0xff]
  %v1082 = vld [vmem:[%s1071 + $0x50] sm:$0xff]
  %v1083 = vld [vmem:[%s1071 + $0x58] sm:$0xff]
  %v1084 = vld [vmem:[%s1071 + $0x60] sm:$0xff]
  %v1085 = vld [vmem:[%s1071 + $0x68] sm:$0xff]
  %v1086 = vld [vmem:[%s1071 + $0x70] sm:$0xff]
  %v1087 = vld [vmem:[%s1071 + $0x78] sm:$0xff]
  %v1088 = vld [vmem:[%s1071 + $0x80] sm:$0xff]
  %v1089 = vld [vmem:[%s1071 + $0x88] sm:$0xff]
  %v1090 = vld [vmem:[%s1071 + $0x90] sm:$0xff]
  %v1091 = vld [vmem:[%s1071 + $0x98] sm:$0xff]
  %v1092 = vld [vmem:[%s1071 + $0xa0] sm:$0xff]
  %v1093 = vld [vmem:[%s1071 + $0xa8] sm:$0xff]
  %v1094 = vld [vmem:[%s1071 + $0xb0] sm:$0xff]
  %v1095 = vld [vmem:[%s1071 + $0xb8] sm:$0xff]
  %v1096 = vld [vmem:[%s1071 + $0xc0] sm:$0xff]
  %v1097 = vld [vmem:[%s1071 + $0xc8] sm:$0xff]
  %v1098 = vld [vmem:[%s1071 + $0xd0] sm:$0xff]
  %v1099 = vld [vmem:[%s1071 + $0xd8] sm:$0xff]
  %v1100 = vld [vmem:[%s1071 + $0xe0] sm:$0xff]
  %v1101 = vld [vmem:[%s1071 + $0xe8] sm:$0xff]
  %v1102 = vld [vmem:[%s1071 + $0xf0] sm:$0xff]
  %v1103 = vld [vmem:[%s1071 + $0xf8] sm:$0xff]
  %1104 = vmatprep.subr.mxu0 0.0
  %1105 = vmatpush1.msra.mxu0 %v1072
  %1106 = vmatprep.subr.mxu0 0.0
  %1107 = vmatpush1.msra.mxu0 %v1073
  %1108 = vmatprep.subr.mxu0 0.0
  %1109 = vmatpush1.msra.mxu0 %v1074
  %1110 = vmatprep.subr.mxu0 0.0
  %1111 = vmatpush1.msra.mxu0 %v1075
  %1112 = vmatprep.subr.mxu0 0.0
  %1113 = vmatpush1.msra.mxu0 %v1076
  %1114 = vmatprep.subr.mxu0 0.0
  %1115 = vmatpush1.msra.mxu0 %v1077
  %1116 = vmatprep.subr.mxu0 0.0
  %1117 = vmatpush1.msra.mxu0 %v1078
  %1118 = vmatprep.subr.mxu0 0.0
  %1119 = vmatpush1.msra.mxu0 %v1079
  %1120 = vmatprep.subr.mxu0 0.0
  %1121 = vmatpush1.msra.mxu0 %v1080
  %1122 = vmatprep.subr.mxu0 0.0
  %1123 = vmatpush1.msra.mxu0 %v1081
  %1124 = vmatprep.subr.mxu0 0.0
  %1125 = vmatpush1.msra.mxu0 %v1082
  %1126 = vmatprep.subr.mxu0 0.0
  %1127 = vmatpush1.msra.mxu0 %v1083
  %1128 = vmatprep.subr.mxu0 0.0
  %1129 = vmatpush1.msra.mxu0 %v1084
  %1130 = vmatprep.subr.mxu0 0.0
  %1131 = vmatpush1.msra.mxu0 %v1085
  %1132 = vmatprep.subr.mxu0 0.0
  %1133 = vmatpush1.msra.mxu0 %v1086
  %1134 = vmatprep.subr.mxu0 0.0
  %1135 = vmatpush1.msra.mxu0 %v1087
  %1136 = vmatprep.subr.mxu0 0.0
  %1137 = vmatpush1.msra.mxu0 %v1088
  %1138 = vmatprep.subr.mxu0 0.0
  %1139 = vmatpush1.msra.mxu0 %v1089
  %1140 = vmatprep.subr.mxu0 0.0
  %1141 = vmatpush1.msra.mxu0 %v1090
  %1142 = vmatprep.subr.mxu0 0.0
  %1143 = vmatpush1.msra.mxu0 %v1091
  %1144 = vmatprep.subr.mxu0 0.0
  %1145 = vmatpush1.msra.mxu0 %v1092
  %1146 = vmatprep.subr.mxu0 0.0
  %1147 = vmatpush1.msra.mxu0 %v1093
  %1148 = vmatprep.subr.mxu0 0.0
  %1149 = vmatpush1.msra.mxu0 %v1094
  %1150 = vmatprep.subr.mxu0 0.0
  %1151 = vmatpush1.msra.mxu0 %v1095
  %1152 = vmatprep.subr.mxu0 0.0
  %1153 = vmatpush1.msra.mxu0 %v1096
  %1154 = vmatprep.subr.mxu0 0.0
  %1155 = vmatpush1.msra.mxu0 %v1097
  %1156 = vmatprep.subr.mxu0 0.0
  %1157 = vmatpush1.msra.mxu0 %v1098
  %1158 = vmatprep.subr.mxu0 0.0
  %1159 = vmatpush1.msra.mxu0 %v1099
  %1160 = vmatprep.subr.mxu0 0.0
  %1161 = vmatpush1.msra.mxu0 %v1100
  %1162 = vmatprep.subr.mxu0 0.0
  %1163 = vmatpush1.msra.mxu0 %v1101
  %1164 = vmatprep.subr.mxu0 0.0
  %1165 = vmatpush1.msra.mxu0 %v1102
  %1166 = vmatprep.subr.mxu0 0.0
  %1167 = vmatpush1.msra.mxu0 %v1103
  %1168 = vmatprep.mubr.f32.mxu0 %v1070
  %1169 = vmatmul.mubr.f32.gmra.mrb[0].mxu0 %v1067
  %v1170 = vpop.f32.mrb[0].mxu0
  %v1171 = vadd.f32 0.0, %v1170
  %v1172 = vpop.f32.mrb[0].mxu0
  %1173 = vdwg.mxu0
  %1174 = vmatprep.subr.mxu0 0.0
  %1175 = vmatpush1.msra.mxu0 %v709
  %1176 = vmatprep.subr.mxu0 0.0
  %1177 = vmatpush1.msra.mxu0 %v710
  %1178 = vmatprep.subr.mxu0 0.0
  %1179 = vmatpush1.msra.mxu0 %v711
  %1180 = vmatprep.subr.mxu0 0.0
  %1181 = vmatpush1.msra.mxu0 %v712
  %1182 = vmatprep.subr.mxu0 0.0
  %1183 = vmatpush1.msra.mxu0 %v713
  %1184 = vmatprep.subr.mxu0 0.0
  %1185 = vmatpush1.msra.mxu0 %v714
  %1186 = vmatprep.subr.mxu0 0.0
  %1187 = vmatpush1.msra.mxu0 %v715
  %1188 = vmatprep.subr.mxu0 0.0
  %1189 = vmatpush1.msra.mxu0 %v716
  %1190 = vmatprep.subr.mxu0 0.0
  %1191 = vmatpush1.msra.mxu0 %v717
  %1192 = vmatprep.subr.mxu0 0.0
  %1193 = vmatpush1.msra.mxu0 %v718
  %1194 = vmatprep.subr.mxu0 0.0
  %1195 = vmatpush1.msra.mxu0 %v719
  %1196 = vmatprep.subr.mxu0 0.0
  %1197 = vmatpush1.msra.mxu0 %v720
  %1198 = vmatprep.subr.mxu0 0.0
  %1199 = vmatpush1.msra.mxu0 %v721
  %1200 = vmatprep.subr.mxu0 0.0
  %1201 = vmatpush1.msra.mxu0 %v722
  %1202 = vmatprep.subr.mxu0 0.0
  %1203 = vmatpush1.msra.mxu0 %v723
  %1204 = vmatprep.subr.mxu0 0.0
  %1205 = vmatpush1.msra.mxu0 %v724
  %1206 = vmatprep.subr.mxu0 0.0
  %1207 = vmatpush1.msra.mxu0 %v725
  %1208 = vmatprep.subr.mxu0 0.0
  %1209 = vmatpush1.msra.mxu0 %v726
  %1210 = vmatprep.subr.mxu0 0.0
  %1211 = vmatpush1.msra.mxu0 %v727
  %1212 = vmatprep.subr.mxu0 0.0
  %1213 = vmatpush1.msra.mxu0 %v728
  %1214 = vmatprep.subr.mxu0 0.0
  %1215 = vmatpush1.msra.mxu0 %v729
  %1216 = vmatprep.subr.mxu0 0.0
  %1217 = vmatpush1.msra.mxu0 %v730
  %1218 = vmatprep.subr.mxu0 0.0
  %1219 = vmatpush1.msra.mxu0 %v731
  %1220 = vmatprep.subr.mxu0 0.0
  %1221 = vmatpush1.msra.mxu0 %v732
  %1222 = vmatprep.subr.mxu0 0.0
  %1223 = vmatpush1.msra.mxu0 %v733
  %1224 = vmatprep.subr.mxu0 0.0
  %1225 = vmatpush1.msra.mxu0 %v734
  %1226 = vmatprep.subr.mxu0 0.0
  %1227 = vmatpush1.msra.mxu0 %v735
  %1228 = vmatprep.subr.mxu0 0.0
  %1229 = vmatpush1.msra.mxu0 %v736
  %1230 = vmatprep.subr.mxu0 0.0
  %1231 = vmatpush1.msra.mxu0 %v737
  %1232 = vmatprep.subr.mxu0 0.0
  %1233 = vmatpush1.msra.mxu0 %v738
  %1234 = vmatprep.subr.mxu0 0.0
  %1235 = vmatpush1.msra.mxu0 %v739
  %1236 = vmatprep.subr.mxu0 0.0
  %1237 = vmatpush1.msra.mxu0 %v740
  %1238 = vmatprep.mubr.f32.mxu0 %v708
  %1239 = vmatmul.mubr.f32.gmra.mrb[0].mxu0 %v705
  %v1240 = vpop.f32.mrb[0].mxu0
  %v1241 = vadd.f32 %v1171, %v1240
  %v1242 = vpop.f32.mrb[0].mxu0
  %1243 = vdwg.mxu0
  %v1244 = vld [vmem:[#allocation2 + $0x30] sm:$0xff]
  %v1245 = vld [vmem:[#allocation2 + $0x38] sm:$0xff]
  %v1246 = vld [vmem:[#allocation2 + $0x40] sm:$0xff]
  %v1247 = vld [vmem:[#allocation3 + $0x78] sm:$0xff]
  %v1248 = vld [vmem:[#allocation3 + $0x80] sm:$0xff]
  %v1249 = vld [vmem:[#allocation3 + $0x88] sm:$0xff]
  %1250 = vmatprep.subr.mxu0 %v289
  %1251 = vmatpush1.msra.mxu0 %v288
  %1252 = vmatprep.subr.mxu0 %v292
  %1253 = vmatpush1.msra.mxu0 %v291
  %1254 = vmatprep.subr.mxu0 %v295
  %1255 = vmatpush1.msra.mxu0 %v294
  %1256 = vmatprep.subr.mxu0 %v298
  %1257 = vmatpush1.msra.mxu0 %v297
  %1258 = vmatprep.subr.mxu0 %v301
  %1259 = vmatpush1.msra.mxu0 %v300
  %1260 = vmatprep.subr.mxu0 %v304
  %1261 = vmatpush1.msra.mxu0 %v303
  %1262 = vmatprep.subr.mxu0 %v307
  %1263 = vmatpush1.msra.mxu0 %v306
  %1264 = vmatprep.subr.mxu0 %v310
  %1265 = vmatpush1.msra.mxu0 %v309
  %1266 = vmatprep.subr.mxu0 %v313
  %1267 = vmatpush1.msra.mxu0 %v312
  %1268 = vmatprep.subr.mxu0 %v316
  %1269 = vmatpush1.msra.mxu0 %v315
  %1270 = vmatprep.subr.mxu0 %v319
  %1271 = vmatpush1.msra.mxu0 %v318
  %1272 = vmatprep.subr.mxu0 %v322
  %1273 = vmatpush1.msra.mxu0 %v321
  %1274 = vmatprep.subr.mxu0 %v325
  %1275 = vmatpush1.msra.mxu0 %v324
  %1276 = vmatprep.subr.mxu0 %v328
  %1277 = vmatpush1.msra.mxu0 %v327
  %1278 = vmatprep.subr.mxu0 %v331
  %1279 = vmatpush1.msra.mxu0 %v330
  %1280 = vmatprep.subr.mxu0 %v334
  %1281 = vmatpush1.msra.mxu0 %v333
  %1282 = vmatprep.subr.mxu0 0.0
  %1283 = vmatpush1.msra.mxu0 0.0
  %1284 = vmatprep.subr.mxu0 0.0
  %1285 = vmatpush1.msra.mxu0 0.0
  %1286 = vmatprep.subr.mxu0 0.0
  %1287 = vmatpush1.msra.mxu0 0.0
  %1288 = vmatprep.subr.mxu0 0.0
  %1289 = vmatpush1.msra.mxu0 0.0
  %1290 = vmatprep.subr.mxu0 0.0
  %1291 = vmatpush1.msra.mxu0 0.0
  %1292 = vmatprep.subr.mxu0 0.0
  %1293 = vmatpush1.msra.mxu0 0.0
  %1294 = vmatprep.subr.mxu0 0.0
  %1295 = vmatpush1.msra.mxu0 0.0
  %1296 = vmatprep.subr.mxu0 0.0
  %1297 = vmatpush1.msra.mxu0 0.0
  %1298 = vmatprep.subr.mxu0 0.0
  %1299 = vmatpush1.msra.mxu0 0.0
  %1300 = vmatprep.subr.mxu0 0.0
  %1301 = vmatpush1.msra.mxu0 0.0
  %1302 = vmatprep.subr.mxu0 0.0
  %1303 = vmatpush1.msra.mxu0 0.0
  %1304 = vmatprep.subr.mxu0 0.0
  %1305 = vmatpush1.msra.mxu0 0.0
  %1306 = vmatprep.subr.mxu0 0.0
  %1307 = vmatpush1.msra.mxu0 0.0
  %1308 = vmatprep.subr.mxu0 0.0
  %1309 = vmatpush1.msra.mxu0 0.0
  %1310 = vmatprep.subr.mxu0 0.0
  %1311 = vmatpush1.msra.mxu0 0.0
  %1312 = vmatprep.subr.mxu0 0.0
  %1313 = vmatpush1.msra.mxu0 0.0
  %1314 = vmatprep.mubr.f32.mxu0 0.0
  %1315 = vmatmul.mubr.f32.gmra.mrb[0].mxu0 %v1067
  %v1316 = vpop.f32.mrb[0].mxu0
  %v1317 = vadd.f32 0.0, %v1316
  %v1318 = vpop.f32.mrb[0].mxu0
  %v1319 = vadd.f32 0.0, %v1318
  %1320 = vdwg.mxu0
  %1321 = vmatprep.subr.mxu0 0.0
  %1322 = vmatpush1.msra.mxu0 %v290
  %1323 = vmatprep.subr.mxu0 0.0
  %1324 = vmatpush1.msra.mxu0 %v293
  %1325 = vmatprep.subr.mxu0 0.0
  %1326 = vmatpush1.msra.mxu0 %v296
  %1327 = vmatprep.subr.mxu0 0.0
  %1328 = vmatpush1.msra.mxu0 %v299
  %1329 = vmatprep.subr.mxu0 0.0
  %1330 = vmatpush1.msra.mxu0 %v302
  %1331 = vmatprep.subr.mxu0 0.0
  %1332 = vmatpush1.msra.mxu0 %v305
  %1333 = vmatprep.subr.mxu0 0.0
  %1334 = vmatpush1.msra.mxu0 %v308
  %1335 = vmatprep.subr.mxu0 0.0
  %1336 = vmatpush1.msra.mxu0 %v311
  %1337 = vmatprep.subr.mxu0 0.0
  %1338 = vmatpush1.msra.mxu0 %v314
  %1339 = vmatprep.subr.mxu0 0.0
  %1340 = vmatpush1.msra.mxu0 %v317
  %1341 = vmatprep.subr.mxu0 0.0
  %1342 = vmatpush1.msra.mxu0 %v320
  %1343 = vmatprep.subr.mxu0 0.0
  %1344 = vmatpush1.msra.mxu0 %v323
  %1345 = vmatprep.subr.mxu0 0.0
  %1346 = vmatpush1.msra.mxu0 %v326
  %1347 = vmatprep.subr.mxu0 0.0
  %1348 = vmatpush1.msra.mxu0 %v329
  %1349 = vmatprep.subr.mxu0 0.0
  %1350 = vmatpush1.msra.mxu0 %v332
  %1351 = vmatprep.subr.mxu0 0.0
  %1352 = vmatpush1.msra.mxu0 %v335
  %1353 = vmatprep.subr.mxu0 0.0
  %1354 = vmatpush1.msra.mxu0 0.0
  %1355 = vmatprep.subr.mxu0 0.0
  %1356 = vmatpush1.msra.mxu0 0.0
  %1357 = vmatprep.subr.mxu0 0.0
  %1358 = vmatpush1.msra.mxu0 0.0
  %1359 = vmatprep.subr.mxu0 0.0
  %1360 = vmatpush1.msra.mxu0 0.0
  %1361 = vmatprep.subr.mxu0 0.0
  %1362 = vmatpush1.msra.mxu0 0.0
  %1363 = vmatprep.subr.mxu0 0.0
  %1364 = vmatpush1.msra.mxu0 0.0
  %1365 = vmatprep.subr.mxu0 0.0
  %1366 = vmatpush1.msra.mxu0 0.0
  %1367 = vmatprep.subr.mxu0 0.0
  %1368 = vmatpush1.msra.mxu0 0.0
  %1369 = vmatprep.subr.mxu0 0.0
  %1370 = vmatpush1.msra.mxu0 0.0
  %1371 = vmatprep.subr.mxu0 0.0
  %1372 = vmatpush1.msra.mxu0 0.0
  %1373 = vmatprep.subr.mxu0 0.0
  %1374 = vmatpush1.msra.mxu0 0.0
  %1375 = vmatprep.subr.mxu0 0.0
  %1376 = vmatpush1.msra.mxu0 0.0
  %1377 = vmatprep.subr.mxu0 0.0
  %1378 = vmatpush1.msra.mxu0 0.0
  %1379 = vmatprep.subr.mxu0 0.0
  %1380 = vmatpush1.msra.mxu0 0.0
  %1381 = vmatprep.subr.mxu0 0.0
  %1382 = vmatpush1.msra.mxu0 0.0
  %1383 = vmatprep.subr.mxu0 0.0
  %1384 = vmatpush1.msra.mxu0 0.0
  %1385 = vmatprep.mubr.f32.mxu0 0.0
  %1386 = vmatmul.mubr.f32.gmra.mrb[0].mxu0 %v1067
  %v1387 = vpop.f32.mrb[0].mxu0
  %v1388 = vadd.f32 0.0, %v1387
  %v1389 = vpop.f32.mrb[0].mxu0
  %1390 = vdwg.mxu0
  %1391 = vmatprep.subr.mxu0 %v479
  %1392 = vmatpush1.msra.mxu0 %v478
  %1393 = vmatprep.subr.mxu0 %v482
  %1394 = vmatpush1.msra.mxu0 %v481
  %1395 = vmatprep.subr.mxu0 %v485
  %1396 = vmatpush1.msra.mxu0 %v484
  %1397 = vmatprep.subr.mxu0 %v488
  %1398 = vmatpush1.msra.mxu0 %v487
  %1399 = vmatprep.subr.mxu0 %v491
  %1400 = vmatpush1.msra.mxu0 %v490
  %1401 = vmatprep.subr.mxu0 %v494
  %1402 = vmatpush1.msra.mxu0 %v493
  %1403 = vmatprep.subr.mxu0 %v497
  %1404 = vmatpush1.msra.mxu0 %v496
  %1405 = vmatprep.subr.mxu0 %v500
  %1406 = vmatpush1.msra.mxu0 %v499
  %1407 = vmatprep.subr.mxu0 %v503
  %1408 = vmatpush1.msra.mxu0 %v502
  %1409 = vmatprep.subr.mxu0 %v506
  %1410 = vmatpush1.msra.mxu0 %v505
  %1411 = vmatprep.subr.mxu0 %v509
  %1412 = vmatpush1.msra.mxu0 %v508
  %1413 = vmatprep.subr.mxu0 %v512
  %1414 = vmatpush1.msra.mxu0 %v511
  %1415 = vmatprep.subr.mxu0 %v515
  %1416 = vmatpush1.msra.mxu0 %v514
  %1417 = vmatprep.subr.mxu0 %v518
  %1418 = vmatpush1.msra.mxu0 %v517
  %1419 = vmatprep.subr.mxu0 %v521
  %1420 = vmatpush1.msra.mxu0 %v520
  %1421 = vmatprep.subr.mxu0 %v524
  %1422 = vmatpush1.msra.mxu0 %v523
  %1423 = vmatprep.subr.mxu0 0.0
  %1424 = vmatpush1.msra.mxu0 0.0
  %1425 = vmatprep.subr.mxu0 0.0
  %1426 = vmatpush1.msra.mxu0 0.0
  %1427 = vmatprep.subr.mxu0 0.0
  %1428 = vmatpush1.msra.mxu0 0.0
  %1429 = vmatprep.subr.mxu0 0.0
  %1430 = vmatpush1.msra.mxu0 0.0
  %1431 = vmatprep.subr.mxu0 0.0
  %1432 = vmatpush1.msra.mxu0 0.0
  %1433 = vmatprep.subr.mxu0 0.0
  %1434 = vmatpush1.msra.mxu0 0.0
  %1435 = vmatprep.subr.mxu0 0.0
  %1436 = vmatpush1.msra.mxu0 0.0
  %1437 = vmatprep.subr.mxu0 0.0
  %1438 = vmatpush1.msra.mxu0 0.0
  %1439 = vmatprep.subr.mxu0 0.0
  %1440 = vmatpush1.msra.mxu0 0.0
  %1441 = vmatprep.subr.mxu0 0.0
  %1442 = vmatpush1.msra.mxu0 0.0
  %1443 = vmatprep.subr.mxu0 0.0
  %1444 = vmatpush1.msra.mxu0 0.0
  %1445 = vmatprep.subr.mxu0 0.0
  %1446 = vmatpush1.msra.mxu0 0.0
  %1447 = vmatprep.subr.mxu0 0.0
  %1448 = vmatpush1.msra.mxu0 0.0
  %1449 = vmatprep.subr.mxu0 0.0
  %1450 = vmatpush1.msra.mxu0 0.0
  %1451 = vmatprep.subr.mxu0 0.0
  %1452 = vmatpush1.msra.mxu0 0.0
  %1453 = vmatprep.subr.mxu0 0.0
  %1454 = vmatpush1.msra.mxu0 0.0
  %1455 = vmatprep.mubr.f32.mxu0 0.0
  %1456 = vmatmul.mubr.f32.gmra.mrb[0].mxu0 %v1070
  %v1457 = vpop.f32.mrb[0].mxu0
  %v1458 = vadd.f32 0.0, %v1457
  %v1459 = vpop.f32.mrb[0].mxu0
  %v1460 = vadd.f32 0.0, %v1459
  %1461 = vdwg.mxu0
  %1462 = vmatprep.subr.mxu0 0.0
  %1463 = vmatpush1.msra.mxu0 %v480
  %1464 = vmatprep.subr.mxu0 0.0
  %1465 = vmatpush1.msra.mxu0 %v483
  %1466 = vmatprep.subr.mxu0 0.0
  %1467 = vmatpush1.msra.mxu0 %v486
  %1468 = vmatprep.subr.mxu0 0.0
  %1469 = vmatpush1.msra.mxu0 %v489
  %1470 = vmatprep.subr.mxu0 0.0
  %1471 = vmatpush1.msra.mxu0 %v492
  %1472 = vmatprep.subr.mxu0 0.0
  %1473 = vmatpush1.msra.mxu0 %v495
  %1474 = vmatprep.subr.mxu0 0.0
  %1475 = vmatpush1.msra.mxu0 %v498
  %1476 = vmatprep.subr.mxu0 0.0
  %1477 = vmatpush1.msra.mxu0 %v501
  %1478 = vmatprep.subr.mxu0 0.0
  %1479 = vmatpush1.msra.mxu0 %v504
  %1480 = vmatprep.subr.mxu0 0.0
  %1481 = vmatpush1.msra.mxu0 %v507
  %1482 = vmatprep.subr.mxu0 0.0
  %1483 = vmatpush1.msra.mxu0 %v510
  %1484 = vmatprep.subr.mxu0 0.0
  %1485 = vmatpush1.msra.mxu0 %v513
  %1486 = vmatprep.subr.mxu0 0.0
  %1487 = vmatpush1.msra.mxu0 %v516
  %1488 = vmatprep.subr.mxu0 0.0
  %1489 = vmatpush1.msra.mxu0 %v519
  %1490 = vmatprep.subr.mxu0 0.0
  %1491 = vmatpush1.msra.mxu0 %v522
  %1492 = vmatprep.subr.mxu0 0.0
  %1493 = vmatpush1.msra.mxu0 %v525
  %1494 = vmatprep.subr.mxu0 0.0
  %1495 = vmatpush1.msra.mxu0 0.0
  %1496 = vmatprep.subr.mxu0 0.0
  %1497 = vmatpush1.msra.mxu0 0.0
  %1498 = vmatprep.subr.mxu0 0.0
  %1499 = vmatpush1.msra.mxu0 0.0
  %1500 = vmatprep.subr.mxu0 0.0
  %1501 = vmatpush1.msra.mxu0 0.0
  %1502 = vmatprep.subr.mxu0 0.0
  %1503 = vmatpush1.msra.mxu0 0.0
  %1504 = vmatprep.subr.mxu0 0.0
  %1505 = vmatpush1.msra.mxu0 0.0
  %1506 = vmatprep.subr.mxu0 0.0
  %1507 = vmatpush1.msra.mxu0 0.0
  %1508 = vmatprep.subr.mxu0 0.0
  %1509 = vmatpush1.msra.mxu0 0.0
  %1510 = vmatprep.subr.mxu0 0.0
  %1511 = vmatpush1.msra.mxu0 0.0
  %1512 = vmatprep.subr.mxu0 0.0
  %1513 = vmatpush1.msra.mxu0 0.0
  %1514 = vmatprep.subr.mxu0 0.0
  %1515 = vmatpush1.msra.mxu0 0.0
  %1516 = vmatprep.subr.mxu0 0.0
  %1517 = vmatpush1.msra.mxu0 0.0
  %1518 = vmatprep.subr.mxu0 0.0
  %1519 = vmatpush1.msra.mxu0 0.0
  %1520 = vmatprep.subr.mxu0 0.0
  %1521 = vmatpush1.msra.mxu0 0.0
  %1522 = vmatprep.subr.mxu0 0.0
  %1523 = vmatpush1.msra.mxu0 0.0
  %1524 = vmatprep.subr.mxu0 0.0
  %1525 = vmatpush1.msra.mxu0 0.0
  %1526 = vmatprep.mubr.f32.mxu0 0.0
  %1527 = vmatmul.mubr.f32.gmra.mrb[0].mxu0 %v1070
  %v1528 = vpop.f32.mrb[0].mxu0
  %v1529 = vadd.f32 0.0, %v1528
  %v1530 = vpop.f32.mrb[0].mxu0
  %1531 = vdwg.mxu0
  %v1532 = vadd.f32 %v1244, %v1317
  %v1533 = vxor.u32 %v1532, 2147483648
  %v1534 = vmul.f32 %v1533, 1.442695
  %v1535 = vpow.pop %v1534
  %v1536 = vadd.f32 %v1535, 1.0
  %v1537 = vrcp.pop %v1536
  %v1538 = vmul.f32 1.0, %v1537
  %v1539 = vadd.f32 %v1245, %v1319
  %v1540 = vxor.u32 %v1539, 2147483648
  %v1541 = vmul.f32 %v1540, 1.442695
  %v1542 = vpow.pop %v1541
  %v1543 = vadd.f32 %v1542, 1.0
  %v1544 = vrcp.pop %v1543
  %v1545 = vmul.f32 1.0, %v1544
  %v1546 = vadd.f32 %v1388, %v280
  %v1547 = vmul.f32 %v1538, %v1546
  %v1548 = vadd.f32 %v1246, %v1547
  %v1549 = vtanh.pop %v1548
  %v1550 = vadd.f32 %v1247, %v1458
  %v1551 = vxor.u32 %v1550, 2147483648
  %v1552 = vmul.f32 %v1551, 1.442695
  %v1553 = vpow.pop %v1552
  %v1554 = vadd.f32 %v1553, 1.0
  %v1555 = vrcp.pop %v1554
  %v1556 = vmul.f32 1.0, %v1555
  %v1557 = vadd.f32 %v1248, %v1460
  %v1558 = vxor.u32 %v1557, 2147483648
  %v1559 = vmul.f32 %v1558, 1.442695
  %v1560 = vpow.pop %v1559
  %v1561 = vadd.f32 %v1560, 1.0
  %v1562 = vrcp.pop %v1561
  %v1563 = vmul.f32 1.0, %v1562
  %v1564 = vadd.f32 %v1529, %v281
  %v1565 = vmul.f32 %v1556, %v1564
  %v1566 = vadd.f32 %v1249, %v1565
  %v1567 = vtanh.pop %v1566
  %v1568 = vsub.f32 %v1067, %v1549
  %v1569 = vmul.f32 %v1545, %v1568
  %v1570 = vadd.f32 %v1549, %v1569
  %v1571 = vsub.f32 %v1070, %v1567
  %v1572 = vmul.f32 %v1563, %v1571
  %v1573 = vadd.f32 %v1567, %v1572
  %s1574 = scalar_lea.vmem %s3, 512
  %v1575 = vld [vmem:[%s1574] sm:$0xff]
  %v1576 = vld [vmem:[%s1574 + $0x8] sm:$0xff]
  %v1577 = vld [vmem:[%s1574 + $0x10] sm:$0xff]
  %v1578 = vld [vmem:[%s1574 + $0x18] sm:$0xff]
  %v1579 = vld [vmem:[%s1574 + $0x20] sm:$0xff]
  %v1580 = vld [vmem:[%s1574 + $0x28] sm:$0xff]
  %v1581 = vld [vmem:[%s1574 + $0x30] sm:$0xff]
  %v1582 = vld [vmem:[%s1574 + $0x38] sm:$0xff]
  %v1583 = vld [vmem:[%s1574 + $0x40] sm:$0xff]
  %v1584 = vld [vmem:[%s1574 + $0x48] sm:$0xff]
  %v1585 = vld [vmem:[%s1574 + $0x50] sm:$0xff]
  %v1586 = vld [vmem:[%s1574 + $0x58] sm:$0xff]
  %v1587 = vld [vmem:[%s1574 + $0x60] sm:$0xff]
  %v1588 = vld [vmem:[%s1574 + $0x68] sm:$0xff]
  %v1589 = vld [vmem:[%s1574 + $0x70] sm:$0xff]
  %v1590 = vld [vmem:[%s1574 + $0x78] sm:$0xff]
  %v1591 = vld [vmem:[%s1574 + $0x80] sm:$0xff]
  %v1592 = vld [vmem:[%s1574 + $0x88] sm:$0xff]
  %v1593 = vld [vmem:[%s1574 + $0x90] sm:$0xff]
  %v1594 = vld [vmem:[%s1574 + $0x98] sm:$0xff]
  %v1595 = vld [vmem:[%s1574 + $0xa0] sm:$0xff]
  %v1596 = vld [vmem:[%s1574 + $0xa8] sm:$0xff]
  %v1597 = vld [vmem:[%s1574 + $0xb0] sm:$0xff]
  %v1598 = vld [vmem:[%s1574 + $0xb8] sm:$0xff]
  %v1599 = vld [vmem:[%s1574 + $0xc0] sm:$0xff]
  %v1600 = vld [vmem:[%s1574 + $0xc8] sm:$0xff]
  %v1601 = vld [vmem:[%s1574 + $0xd0] sm:$0xff]
  %v1602 = vld [vmem:[%s1574 + $0xd8] sm:$0xff]
  %v1603 = vld [vmem:[%s1574 + $0xe0] sm:$0xff]
  %v1604 = vld [vmem:[%s1574 + $0xe8] sm:$0xff]
  %v1605 = vld [vmem:[%s1574 + $0xf0] sm:$0xff]
  %v1606 = vld [vmem:[%s1574 + $0xf8] sm:$0xff]
  %1607 = vmatprep.subr.mxu0 0.0
  %1608 = vmatpush1.msra.mxu0 %v1575
  %1609 = vmatprep.subr.mxu0 0.0
  %1610 = vmatpush1.msra.mxu0 %v1576
  %1611 = vmatprep.subr.mxu0 0.0
  %1612 = vmatpush1.msra.mxu0 %v1577
  %1613 = vmatprep.subr.mxu0 0.0
  %1614 = vmatpush1.msra.mxu0 %v1578
  %1615 = vmatprep.subr.mxu0 0.0
  %1616 = vmatpush1.msra.mxu0 %v1579
  %1617 = vmatprep.subr.mxu0 0.0
  %1618 = vmatpush1.msra.mxu0 %v1580
  %1619 = vmatprep.subr.mxu0 0.0
  %1620 = vmatpush1.msra.mxu0 %v1581
  %1621 = vmatprep.subr.mxu0 0.0
  %1622 = vmatpush1.msra.mxu0 %v1582
  %1623 = vmatprep.subr.mxu0 0.0
  %1624 = vmatpush1.msra.mxu0 %v1583
  %1625 = vmatprep.subr.mxu0 0.0
  %1626 = vmatpush1.msra.mxu0 %v1584
  %1627 = vmatprep.subr.mxu0 0.0
  %1628 = vmatpush1.msra.mxu0 %v1585
  %1629 = vmatprep.subr.mxu0 0.0
  %1630 = vmatpush1.msra.mxu0 %v1586
  %1631 = vmatprep.subr.mxu0 0.0
  %1632 = vmatpush1.msra.mxu0 %v1587
  %1633 = vmatprep.subr.mxu0 0.0
  %1634 = vmatpush1.msra.mxu0 %v1588
  %1635 = vmatprep.subr.mxu0 0.0
  %1636 = vmatpush1.msra.mxu0 %v1589
  %1637 = vmatprep.subr.mxu0 0.0
  %1638 = vmatpush1.msra.mxu0 %v1590
  %1639 = vmatprep.subr.mxu0 0.0
  %1640 = vmatpush1.msra.mxu0 %v1591
  %1641 = vmatprep.subr.mxu0 0.0
  %1642 = vmatpush1.msra.mxu0 %v1592
  %1643 = vmatprep.subr.mxu0 0.0
  %1644 = vmatpush1.msra.mxu0 %v1593
  %1645 = vmatprep.subr.mxu0 0.0
  %1646 = vmatpush1.msra.mxu0 %v1594
  %1647 = vmatprep.subr.mxu0 0.0
  %1648 = vmatpush1.msra.mxu0 %v1595
  %1649 = vmatprep.subr.mxu0 0.0
  %1650 = vmatpush1.msra.mxu0 %v1596
  %1651 = vmatprep.subr.mxu0 0.0
  %1652 = vmatpush1.msra.mxu0 %v1597
  %1653 = vmatprep.subr.mxu0 0.0
  %1654 = vmatpush1.msra.mxu0 %v1598
  %1655 = vmatprep.subr.mxu0 0.0
  %1656 = vmatpush1.msra.mxu0 %v1599
  %1657 = vmatprep.subr.mxu0 0.0
  %1658 = vmatpush1.msra.mxu0 %v1600
  %1659 = vmatprep.subr.mxu0 0.0
  %1660 = vmatpush1.msra.mxu0 %v1601
  %1661 = vmatprep.subr.mxu0 0.0
  %1662 = vmatpush1.msra.mxu0 %v1602
  %1663 = vmatprep.subr.mxu0 0.0
  %1664 = vmatpush1.msra.mxu0 %v1603
  %1665 = vmatprep.subr.mxu0 0.0
  %1666 = vmatpush1.msra.mxu0 %v1604
  %1667 = vmatprep.subr.mxu0 0.0
  %1668 = vmatpush1.msra.mxu0 %v1605
  %1669 = vmatprep.subr.mxu0 0.0
  %1670 = vmatpush1.msra.mxu0 %v1606
  %1671 = vmatprep.mubr.f32.mxu0 %v1573
  %1672 = vmatmul.mubr.f32.gmra.mrb[0].mxu0 %v1570
  %v1673 = vpop.f32.mrb[0].mxu0
  %v1674 = vadd.f32 0.0, %v1673
  %v1675 = vpop.f32.mrb[0].mxu0
  %1676 = vdwg.mxu0
  %v1677 = vadd.f32 %v1241, %v1674
  %v1678 = vld [vmem:[#allocation2 + $0x48] sm:$0xff]
  %v1679 = vld [vmem:[#allocation2 + $0x50] sm:$0xff]
  %v1680 = vld [vmem:[#allocation2 + $0x58] sm:$0xff]
  %v1681 = vld [vmem:[#allocation3 + $0x60] sm:$0xff]
  %v1682 = vld [vmem:[#allocation3 + $0x68] sm:$0xff]
  %v1683 = vld [vmem:[#allocation3 + $0x70] sm:$0xff]
  %1684 = vmatprep.subr.mxu0 %v289
  %1685 = vmatpush1.msra.mxu0 %v288
  %1686 = vmatprep.subr.mxu0 %v292
  %1687 = vmatpush1.msra.mxu0 %v291
  %1688 = vmatprep.subr.mxu0 %v295
  %1689 = vmatpush1.msra.mxu0 %v294
  %1690 = vmatprep.subr.mxu0 %v298
  %1691 = vmatpush1.msra.mxu0 %v297
  %1692 = vmatprep.subr.mxu0 %v301
  %1693 = vmatpush1.msra.mxu0 %v300
  %1694 = vmatprep.subr.mxu0 %v304
  %1695 = vmatpush1.msra.mxu0 %v303
  %1696 = vmatprep.subr.mxu0 %v307
  %1697 = vmatpush1.msra.mxu0 %v306
  %1698 = vmatprep.subr.mxu0 %v310
  %1699 = vmatpush1.msra.mxu0 %v309
  %1700 = vmatprep.subr.mxu0 %v313
  %1701 = vmatpush1.msra.mxu0 %v312
  %1702 = vmatprep.subr.mxu0 %v316
  %1703 = vmatpush1.msra.mxu0 %v315
  %1704 = vmatprep.subr.mxu0 %v319
  %1705 = vmatpush1.msra.mxu0 %v318
  %1706 = vmatprep.subr.mxu0 %v322
  %1707 = vmatpush1.msra.mxu0 %v321
  %1708 = vmatprep.subr.mxu0 %v325
  %1709 = vmatpush1.msra.mxu0 %v324
  %1710 = vmatprep.subr.mxu0 %v328
  %1711 = vmatpush1.msra.mxu0 %v327
  %1712 = vmatprep.subr.mxu0 %v331
  %1713 = vmatpush1.msra.mxu0 %v330
  %1714 = vmatprep.subr.mxu0 %v334
  %1715 = vmatpush1.msra.mxu0 %v333
  %1716 = vmatprep.subr.mxu0 0.0
  %1717 = vmatpush1.msra.mxu0 0.0
  %1718 = vmatprep.subr.mxu0 0.0
  %1719 = vmatpush1.msra.mxu0 0.0
  %1720 = vmatprep.subr.mxu0 0.0
  %1721 = vmatpush1.msra.mxu0 0.0
  %1722 = vmatprep.subr.mxu0 0.0
  %1723 = vmatpush1.msra.mxu0 0.0
  %1724 = vmatprep.subr.mxu0 0.0
  %1725 = vmatpush1.msra.mxu0 0.0
  %1726 = vmatprep.subr.mxu0 0.0
  %1727 = vmatpush1.msra.mxu0 0.0
  %1728 = vmatprep.subr.mxu0 0.0
  %1729 = vmatpush1.msra.mxu0 0.0
  %1730 = vmatprep.subr.mxu0 0.0
  %1731 = vmatpush1.msra.mxu0 0.0
  %1732 = vmatprep.subr.mxu0 0.0
  %1733 = vmatpush1.msra.mxu0 0.0
  %1734 = vmatprep.subr.mxu0 0.0
  %1735 = vmatpush1.msra.mxu0 0.0
  %1736 = vmatprep.subr.mxu0 0.0
  %1737 = vmatpush1.msra.mxu0 0.0
  %1738 = vmatprep.subr.mxu0 0.0
  %1739 = vmatpush1.msra.mxu0 0.0
  %1740 = vmatprep.subr.mxu0 0.0
  %1741 = vmatpush1.msra.mxu0 0.0
  %1742 = vmatprep.subr.mxu0 0.0
  %1743 = vmatpush1.msra.mxu0 0.0
  %1744 = vmatprep.subr.mxu0 0.0
  %1745 = vmatpush1.msra.mxu0 0.0
  %1746 = vmatprep.subr.mxu0 0.0
  %1747 = vmatpush1.msra.mxu0 0.0
  %1748 = vmatprep.mubr.f32.mxu0 0.0
  %1749 = vmatmul.mubr.f32.gmra.mrb[0].mxu0 %v1570
  %v1750 = vpop.f32.mrb[0].mxu0
  %v1751 = vadd.f32 0.0, %v1750
  %v1752 = vpop.f32.mrb[0].mxu0
  %v1753 = vadd.f32 0.0, %v1752
  %1754 = vdwg.mxu0
  %1755 = vmatprep.subr.mxu0 0.0
  %1756 = vmatpush1.msra.mxu0 %v290
  %1757 = vmatprep.subr.mxu0 0.0
  %1758 = vmatpush1.msra.mxu0 %v293
  %1759 = vmatprep.subr.mxu0 0.0
  %1760 = vmatpush1.msra.mxu0 %v296
  %1761 = vmatprep.subr.mxu0 0.0
  %1762 = vmatpush1.msra.mxu0 %v299
  %1763 = vmatprep.subr.mxu0 0.0
  %1764 = vmatpush1.msra.mxu0 %v302
  %1765 = vmatprep.subr.mxu0 0.0
  %1766 = vmatpush1.msra.mxu0 %v305
  %1767 = vmatprep.subr.mxu0 0.0
  %1768 = vmatpush1.msra.mxu0 %v308
  %1769 = vmatprep.subr.mxu0 0.0
  %1770 = vmatpush1.msra.mxu0 %v311
  %1771 = vmatprep.subr.mxu0 0.0
  %1772 = vmatpush1.msra.mxu0 %v314
  %1773 = vmatprep.subr.mxu0 0.0
  %1774 = vmatpush1.msra.mxu0 %v317
  %1775 = vmatprep.subr.mxu0 0.0
  %1776 = vmatpush1.msra.mxu0 %v320
  %1777 = vmatprep.subr.mxu0 0.0
  %1778 = vmatpush1.msra.mxu0 %v323
  %1779 = vmatprep.subr.mxu0 0.0
  %1780 = vmatpush1.msra.mxu0 %v326
  %1781 = vmatprep.subr.mxu0 0.0
  %1782 = vmatpush1.msra.mxu0 %v329
  %1783 = vmatprep.subr.mxu0 0.0
  %1784 = vmatpush1.msra.mxu0 %v332
  %1785 = vmatprep.subr.mxu0 0.0
  %1786 = vmatpush1.msra.mxu0 %v335
  %1787 = vmatprep.subr.mxu0 0.0
  %1788 = vmatpush1.msra.mxu0 0.0
  %1789 = vmatprep.subr.mxu0 0.0
  %1790 = vmatpush1.msra.mxu0 0.0
  %1791 = vmatprep.subr.mxu0 0.0
  %1792 = vmatpush1.msra.mxu0 0.0
  %1793 = vmatprep.subr.mxu0 0.0
  %1794 = vmatpush1.msra.mxu0 0.0
  %1795 = vmatprep.subr.mxu0 0.0
  %1796 = vmatpush1.msra.mxu0 0.0
  %1797 = vmatprep.subr.mxu0 0.0
  %1798 = vmatpush1.msra.mxu0 0.0
  %1799 = vmatprep.subr.mxu0 0.0
  %1800 = vmatpush1.msra.mxu0 0.0
  %1801 = vmatprep.subr.mxu0 0.0
  %1802 = vmatpush1.msra.mxu0 0.0
  %1803 = vmatprep.subr.mxu0 0.0
  %1804 = vmatpush1.msra.mxu0 0.0
  %1805 = vmatprep.subr.mxu0 0.0
  %1806 = vmatpush1.msra.mxu0 0.0
  %1807 = vmatprep.subr.mxu0 0.0
  %1808 = vmatpush1.msra.mxu0 0.0
  %1809 = vmatprep.subr.mxu0 0.0
  %1810 = vmatpush1.msra.mxu0 0.0
  %1811 = vmatprep.subr.mxu0 0.0
  %1812 = vmatpush1.msra.mxu0 0.0
  %1813 = vmatprep.subr.mxu0 0.0
  %1814 = vmatpush1.msra.mxu0 0.0
  %1815 = vmatprep.subr.mxu0 0.0
  %1816 = vmatpush1.msra.mxu0 0.0
  %1817 = vmatprep.subr.mxu0 0.0
  %1818 = vmatpush1.msra.mxu0 0.0
  %1819 = vmatprep.mubr.f32.mxu0 0.0
  %1820 = vmatmul.mubr.f32.gmra.mrb[0].mxu0 %v1570
  %v1821 = vpop.f32.mrb[0].mxu0
  %v1822 = vadd.f32 0.0, %v1821
  %v1823 = vpop.f32.mrb[0].mxu0
  %1824 = vdwg.mxu0
  %1825 = vmatprep.subr.mxu0 %v479
  %1826 = vmatpush1.msra.mxu0 %v478
  %1827 = vmatprep.subr.mxu0 %v482
  %1828 = vmatpush1.msra.mxu0 %v481
  %1829 = vmatprep.subr.mxu0 %v485
  %1830 = vmatpush1.msra.mxu0 %v484
  %1831 = vmatprep.subr.mxu0 %v488
  %1832 = vmatpush1.msra.mxu0 %v487
  %1833 = vmatprep.subr.mxu0 %v491
  %1834 = vmatpush1.msra.mxu0 %v490
  %1835 = vmatprep.subr.mxu0 %v494
  %1836 = vmatpush1.msra.mxu0 %v493
  %1837 = vmatprep.subr.mxu0 %v497
  %1838 = vmatpush1.msra.mxu0 %v496
  %1839 = vmatprep.subr.mxu0 %v500
  %1840 = vmatpush1.msra.mxu0 %v499
  %1841 = vmatprep.subr.mxu0 %v503
  %1842 = vmatpush1.msra.mxu0 %v502
  %1843 = vmatprep.subr.mxu0 %v506
  %1844 = vmatpush1.msra.mxu0 %v505
  %1845 = vmatprep.subr.mxu0 %v509
  %1846 = vmatpush1.msra.mxu0 %v508
  %1847 = vmatprep.subr.mxu0 %v512
  %1848 = vmatpush1.msra.mxu0 %v511
  %1849 = vmatprep.subr.mxu0 %v515
  %1850 = vmatpush1.msra.mxu0 %v514
  %1851 = vmatprep.subr.mxu0 %v518
  %1852 = vmatpush1.msra.mxu0 %v517
  %1853 = vmatprep.subr.mxu0 %v521
  %1854 = vmatpush1.msra.mxu0 %v520
  %1855 = vmatprep.subr.mxu0 %v524
  %1856 = vmatpush1.msra.mxu0 %v523
  %1857 = vmatprep.subr.mxu0 0.0
  %1858 = vmatpush1.msra.mxu0 0.0
  %1859 = vmatprep.subr.mxu0 0.0
  %1860 = vmatpush1.msra.mxu0 0.0
  %1861 = vmatprep.subr.mxu0 0.0
  %1862 = vmatpush1.msra.mxu0 0.0
  %1863 = vmatprep.subr.mxu0 0.0
  %1864 = vmatpush1.msra.mxu0 0.0
  %1865 = vmatprep.subr.mxu0 0.0
  %1866 = vmatpush1.msra.mxu0 0.0
  %1867 = vmatprep.subr.mxu0 0.0
  %1868 = vmatpush1.msra.mxu0 0.0
  %1869 = vmatprep.subr.mxu0 0.0
  %1870 = vmatpush1.msra.mxu0 0.0
  %1871 = vmatprep.subr.mxu0 0.0
  %1872 = vmatpush1.msra.mxu0 0.0
  %1873 = vmatprep.subr.mxu0 0.0
  %1874 = vmatpush1.msra.mxu0 0.0
  %1875 = vmatprep.subr.mxu0 0.0
  %1876 = vmatpush1.msra.mxu0 0.0
  %1877 = vmatprep.subr.mxu0 0.0
  %1878 = vmatpush1.msra.mxu0 0.0
  %1879 = vmatprep.subr.mxu0 0.0
  %1880 = vmatpush1.msra.mxu0 0.0
  %1881 = vmatprep.subr.mxu0 0.0
  %1882 = vmatpush1.msra.mxu0 0.0
  %1883 = vmatprep.subr.mxu0 0.0
  %1884 = vmatpush1.msra.mxu0 0.0
  %1885 = vmatprep.subr.mxu0 0.0
  %1886 = vmatpush1.msra.mxu0 0.0
  %1887 = vmatprep.subr.mxu0 0.0
  %1888 = vmatpush1.msra.mxu0 0.0
  %1889 = vmatprep.mubr.f32.mxu0 0.0
  %1890 = vmatmul.mubr.f32.gmra.mrb[0].mxu0 %v1573
  %v1891 = vpop.f32.mrb[0].mxu0
  %v1892 = vadd.f32 0.0, %v1891
  %v1893 = vpop.f32.mrb[0].mxu0
  %v1894 = vadd.f32 0.0, %v1893
  %1895 = vdwg.mxu0
  %1896 = vmatprep.subr.mxu0 0.0
  %1897 = vmatpush1.msra.mxu0 %v480
  %1898 = vmatprep.subr.mxu0 0.0
  %1899 = vmatpush1.msra.mxu0 %v483
  %1900 = vmatprep.subr.mxu0 0.0
  %1901 = vmatpush1.msra.mxu0 %v486
  %1902 = vmatprep.subr.mxu0 0.0
  %1903 = vmatpush1.msra.mxu0 %v489
  %1904 = vmatprep.subr.mxu0 0.0
  %1905 = vmatpush1.msra.mxu0 %v492
  %1906 = vmatprep.subr.mxu0 0.0
  %1907 = vmatpush1.msra.mxu0 %v495
  %1908 = vmatprep.subr.mxu0 0.0
  %1909 = vmatpush1.msra.mxu0 %v498
  %1910 = vmatprep.subr.mxu0 0.0
  %1911 = vmatpush1.msra.mxu0 %v501
  %1912 = vmatprep.subr.mxu0 0.0
  %1913 = vmatpush1.msra.mxu0 %v504
  %1914 = vmatprep.subr.mxu0 0.0
  %1915 = vmatpush1.msra.mxu0 %v507
  %1916 = vmatprep.subr.mxu0 0.0
  %1917 = vmatpush1.msra.mxu0 %v510
  %1918 = vmatprep.subr.mxu0 0.0
  %1919 = vmatpush1.msra.mxu0 %v513
  %1920 = vmatprep.subr.mxu0 0.0
  %1921 = vmatpush1.msra.mxu0 %v516
  %1922 = vmatprep.subr.mxu0 0.0
  %1923 = vmatpush1.msra.mxu0 %v519
  %1924 = vmatprep.subr.mxu0 0.0
  %1925 = vmatpush1.msra.mxu0 %v522
  %1926 = vmatprep.subr.mxu0 0.0
  %1927 = vmatpush1.msra.mxu0 %v525
  %1928 = vmatprep.subr.mxu0 0.0
  %1929 = vmatpush1.msra.mxu0 0.0
  %1930 = vmatprep.subr.mxu0 0.0
  %1931 = vmatpush1.msra.mxu0 0.0
  %1932 = vmatprep.subr.mxu0 0.0
  %1933 = vmatpush1.msra.mxu0 0.0
  %1934 = vmatprep.subr.mxu0 0.0
  %1935 = vmatpush1.msra.mxu0 0.0
  %1936 = vmatprep.subr.mxu0 0.0
  %1937 = vmatpush1.msra.mxu0 0.0
  %1938 = vmatprep.subr.mxu0 0.0
  %1939 = vmatpush1.msra.mxu0 0.0
  %1940 = vmatprep.subr.mxu0 0.0
  %1941 = vmatpush1.msra.mxu0 0.0
  %1942 = vmatprep.subr.mxu0 0.0
  %1943 = vmatpush1.msra.mxu0 0.0
  %1944 = vmatprep.subr.mxu0 0.0
  %1945 = vmatpush1.msra.mxu0 0.0
  %1946 = vmatprep.subr.mxu0 0.0
  %1947 = vmatpush1.msra.mxu0 0.0
  %1948 = vmatprep.subr.mxu0 0.0
  %1949 = vmatpush1.msra.mxu0 0.0
  %1950 = vmatprep.subr.mxu0 0.0
  %1951 = vmatpush1.msra.mxu0 0.0
  %1952 = vmatprep.subr.mxu0 0.0
  %1953 = vmatpush1.msra.mxu0 0.0
  %1954 = vmatprep.subr.mxu0 0.0
  %1955 = vmatpush1.msra.mxu0 0.0
  %1956 = vmatprep.subr.mxu0 0.0
  %1957 = vmatpush1.msra.mxu0 0.0
  %1958 = vmatprep.subr.mxu0 0.0
  %1959 = vmatpush1.msra.mxu0 0.0
  %1960 = vmatprep.mubr.f32.mxu0 0.0
  %1961 = vmatmul.mubr.f32.gmra.mrb[0].mxu0 %v1573
  %v1962 = vpop.f32.mrb[0].mxu0
  %v1963 = vadd.f32 0.0, %v1962
  %v1964 = vpop.f32.mrb[0].mxu0
  %1965 = vdwg.mxu0
  %v1966 = vadd.f32 %v1678, %v1751
  %v1967 = vxor.u32 %v1966, 2147483648
  %v1968 = vmul.f32 %v1967, 1.442695
  %v1969 = vpow.pop %v1968
  %v1970 = vadd.f32 %v1969, 1.0
  %v1971 = vrcp.pop %v1970
  %v1972 = vmul.f32 1.0, %v1971
  %v1973 = vadd.f32 %v1679, %v1753
  %v1974 = vxor.u32 %v1973, 2147483648
  %v1975 = vmul.f32 %v1974, 1.442695
  %v1976 = vpow.pop %v1975
  %v1977 = vadd.f32 %v1976, 1.0
  %v1978 = vrcp.pop %v1977
  %v1979 = vmul.f32 1.0, %v1978
  %v1980 = vadd.f32 %v1822, %v280
  %v1981 = vmul.f32 %v1972, %v1980
  %v1982 = vadd.f32 %v1680, %v1981
  %v1983 = vtanh.pop %v1982
  %v1984 = vadd.f32 %v1681, %v1892
  %v1985 = vxor.u32 %v1984, 2147483648
  %v1986 = vmul.f32 %v1985, 1.442695
  %v1987 = vpow.pop %v1986
  %v1988 = vadd.f32 %v1987, 1.0
  %v1989 = vrcp.pop %v1988
  %v1990 = vmul.f32 1.0, %v1989
  %v1991 = vadd.f32 %v1682, %v1894
  %v1992 = vxor.u32 %v1991, 2147483648
  %v1993 = vmul.f32 %v1992, 1.442695
  %v1994 = vpow.pop %v1993
  %v1995 = vadd.f32 %v1994, 1.0
  %v1996 = vrcp.pop %v1995
  %v1997 = vmul.f32 1.0, %v1996
  %v1998 = vadd.f32 %v1963, %v281
  %v1999 = vmul.f32 %v1990, %v1998
  %v2000 = vadd.f32 %v1683, %v1999
  %v2001 = vtanh.pop %v2000
  %v2002 = vsub.f32 %v1570, %v1983
  %v2003 = vmul.f32 %v1979, %v2002
  %v2004 = vadd.f32 %v1983, %v2003
  %v2005 = vsub.f32 %v1573, %v2001
  %v2006 = vmul.f32 %v1997, %v2005
  %v2007 = vadd.f32 %v2001, %v2006
  %s2008 = scalar_lea.vmem %s3, 768
  %v2009 = vld [vmem:[%s2008] sm:$0xff]
  %v2010 = vld [vmem:[%s2008 + $0x8] sm:$0xff]
  %v2011 = vld [vmem:[%s2008 + $0x10] sm:$0xff]
  %v2012 = vld [vmem:[%s2008 + $0x18] sm:$0xff]
  %v2013 = vld [vmem:[%s2008 + $0x20] sm:$0xff]
  %v2014 = vld [vmem:[%s2008 + $0x28] sm:$0xff]
  %v2015 = vld [vmem:[%s2008 + $0x30] sm:$0xff]
  %v2016 = vld [vmem:[%s2008 + $0x38] sm:$0xff]
  %v2017 = vld [vmem:[%s2008 + $0x40] sm:$0xff]
  %v2018 = vld [vmem:[%s2008 + $0x48] sm:$0xff]
  %v2019 = vld [vmem:[%s2008 + $0x50] sm:$0xff]
  %v2020 = vld [vmem:[%s2008 + $0x58] sm:$0xff]
  %v2021 = vld [vmem:[%s2008 + $0x60] sm:$0xff]
  %v2022 = vld [vmem:[%s2008 + $0x68] sm:$0xff]
  %v2023 = vld [vmem:[%s2008 + $0x70] sm:$0xff]
  %v2024 = vld [vmem:[%s2008 + $0x78] sm:$0xff]
  %v2025 = vld [vmem:[%s2008 + $0x80] sm:$0xff]
  %v2026 = vld [vmem:[%s2008 + $0x88] sm:$0xff]
  %v2027 = vld [vmem:[%s2008 + $0x90] sm:$0xff]
  %v2028 = vld [vmem:[%s2008 + $0x98] sm:$0xff]
  %v2029 = vld [vmem:[%s2008 + $0xa0] sm:$0xff]
  %v2030 = vld [vmem:[%s2008 + $0xa8] sm:$0xff]
  %v2031 = vld [vmem:[%s2008 + $0xb0] sm:$0xff]
  %v2032 = vld [vmem:[%s2008 + $0xb8] sm:$0xff]
  %v2033 = vld [vmem:[%s2008 + $0xc0] sm:$0xff]
  %v2034 = vld [vmem:[%s2008 + $0xc8] sm:$0xff]
  %v2035 = vld [vmem:[%s2008 + $0xd0] sm:$0xff]
  %v2036 = vld [vmem:[%s2008 + $0xd8] sm:$0xff]
  %v2037 = vld [vmem:[%s2008 + $0xe0] sm:$0xff]
  %v2038 = vld [vmem:[%s2008 + $0xe8] sm:$0xff]
  %v2039 = vld [vmem:[%s2008 + $0xf0] sm:$0xff]
  %v2040 = vld [vmem:[%s2008 + $0xf8] sm:$0xff]
  %2041 = vmatprep.subr.mxu0 0.0
  %2042 = vmatpush1.msra.mxu0 %v2009
  %2043 = vmatprep.subr.mxu0 0.0
  %2044 = vmatpush1.msra.mxu0 %v2010
  %2045 = vmatprep.subr.mxu0 0.0
  %2046 = vmatpush1.msra.mxu0 %v2011
  %2047 = vmatprep.subr.mxu0 0.0
  %2048 = vmatpush1.msra.mxu0 %v2012
  %2049 = vmatprep.subr.mxu0 0.0
  %2050 = vmatpush1.msra.mxu0 %v2013
  %2051 = vmatprep.subr.mxu0 0.0
  %2052 = vmatpush1.msra.mxu0 %v2014
  %2053 = vmatprep.subr.mxu0 0.0
  %2054 = vmatpush1.msra.mxu0 %v2015
  %2055 = vmatprep.subr.mxu0 0.0
  %2056 = vmatpush1.msra.mxu0 %v2016
  %2057 = vmatprep.subr.mxu0 0.0
  %2058 = vmatpush1.msra.mxu0 %v2017
  %2059 = vmatprep.subr.mxu0 0.0
  %2060 = vmatpush1.msra.mxu0 %v2018
  %2061 = vmatprep.subr.mxu0 0.0
  %2062 = vmatpush1.msra.mxu0 %v2019
  %2063 = vmatprep.subr.mxu0 0.0
  %2064 = vmatpush1.msra.mxu0 %v2020
  %2065 = vmatprep.subr.mxu0 0.0
  %2066 = vmatpush1.msra.mxu0 %v2021
  %2067 = vmatprep.subr.mxu0 0.0
  %2068 = vmatpush1.msra.mxu0 %v2022
  %2069 = vmatprep.subr.mxu0 0.0
  %2070 = vmatpush1.msra.mxu0 %v2023
  %2071 = vmatprep.subr.mxu0 0.0
  %2072 = vmatpush1.msra.mxu0 %v2024
  %2073 = vmatprep.subr.mxu0 0.0
  %2074 = vmatpush1.msra.mxu0 %v2025
  %2075 = vmatprep.subr.mxu0 0.0
  %2076 = vmatpush1.msra.mxu0 %v2026
  %2077 = vmatprep.subr.mxu0 0.0
  %2078 = vmatpush1.msra.mxu0 %v2027
  %2079 = vmatprep.subr.mxu0 0.0
  %2080 = vmatpush1.msra.mxu0 %v2028
  %2081 = vmatprep.subr.mxu0 0.0
  %2082 = vmatpush1.msra.mxu0 %v2029
  %2083 = vmatprep.subr.mxu0 0.0
  %2084 = vmatpush1.msra.mxu0 %v2030
  %2085 = vmatprep.subr.mxu0 0.0
  %2086 = vmatpush1.msra.mxu0 %v2031
  %2087 = vmatprep.subr.mxu0 0.0
  %2088 = vmatpush1.msra.mxu0 %v2032
  %2089 = vmatprep.subr.mxu0 0.0
  %2090 = vmatpush1.msra.mxu0 %v2033
  %2091 = vmatprep.subr.mxu0 0.0
  %2092 = vmatpush1.msra.mxu0 %v2034
  %2093 = vmatprep.subr.mxu0 0.0
  %2094 = vmatpush1.msra.mxu0 %v2035
  %2095 = vmatprep.subr.mxu0 0.0
  %2096 = vmatpush1.msra.mxu0 %v2036
  %2097 = vmatprep.subr.mxu0 0.0
  %2098 = vmatpush1.msra.mxu0 %v2037
  %2099 = vmatprep.subr.mxu0 0.0
  %2100 = vmatpush1.msra.mxu0 %v2038
  %2101 = vmatprep.subr.mxu0 0.0
  %2102 = vmatpush1.msra.mxu0 %v2039
  %2103 = vmatprep.subr.mxu0 0.0
  %2104 = vmatpush1.msra.mxu0 %v2040
  %2105 = vmatprep.mubr.f32.mxu0 %v2007
  %2106 = vmatmul.mubr.f32.gmra.mrb[0].mxu0 %v2004
  %v2107 = vpop.f32.mrb[0].mxu0
  %v2108 = vadd.f32 0.0, %v2107
  %v2109 = vpop.f32.mrb[0].mxu0
  %2110 = vdwg.mxu0
  %v2111 = vadd.f32 %v1677, %v2108
  %v2112 = vld [vmem:[#allocation2 + $0x60] sm:$0xff]
  %v2113 = vld [vmem:[#allocation2 + $0x68] sm:$0xff]
  %v2114 = vld [vmem:[#allocation2 + $0x70] sm:$0xff]
  %v2115 = vld [vmem:[#allocation3 + $0x48] sm:$0xff]
  %v2116 = vld [vmem:[#allocation3 + $0x50] sm:$0xff]
  %v2117 = vld [vmem:[#allocation3 + $0x58] sm:$0xff]
  %2118 = vmatprep.subr.mxu0 %v289
  %2119 = vmatpush1.msra.mxu0 %v288
  %2120 = vmatprep.subr.mxu0 %v292
  %2121 = vmatpush1.msra.mxu0 %v291
  %2122 = vmatprep.subr.mxu0 %v295
  %2123 = vmatpush1.msra.mxu0 %v294
  %2124 = vmatprep.subr.mxu0 %v298
  %2125 = vmatpush1.msra.mxu0 %v297
  %2126 = vmatprep.subr.mxu0 %v301
  %2127 = vmatpush1.msra.mxu0 %v300
  %2128 = vmatprep.subr.mxu0 %v304
  %2129 = vmatpush1.msra.mxu0 %v303
  %2130 = vmatprep.subr.mxu0 %v307
  %2131 = vmatpush1.msra.mxu0 %v306
  %2132 = vmatprep.subr.mxu0 %v310
  %2133 = vmatpush1.msra.mxu0 %v309
  %2134 = vmatprep.subr.mxu0 %v313
  %2135 = vmatpush1.msra.mxu0 %v312
  %2136 = vmatprep.subr.mxu0 %v316
  %2137 = vmatpush1.msra.mxu0 %v315
  %2138 = vmatprep.subr.mxu0 %v319
  %2139 = vmatpush1.msra.mxu0 %v318
  %2140 = vmatprep.subr.mxu0 %v322
  %2141 = vmatpush1.msra.mxu0 %v321
  %2142 = vmatprep.subr.mxu0 %v325
  %2143 = vmatpush1.msra.mxu0 %v324
  %2144 = vmatprep.subr.mxu0 %v328
  %2145 = vmatpush1.msra.mxu0 %v327
  %2146 = vmatprep.subr.mxu0 %v331
  %2147 = vmatpush1.msra.mxu0 %v330
  %2148 = vmatprep.subr.mxu0 %v334
  %2149 = vmatpush1.msra.mxu0 %v333
  %2150 = vmatprep.subr.mxu0 0.0
  %2151 = vmatpush1.msra.mxu0 0.0
  %2152 = vmatprep.subr.mxu0 0.0
  %2153 = vmatpush1.msra.mxu0 0.0
  %2154 = vmatprep.subr.mxu0 0.0
  %2155 = vmatpush1.msra.mxu0 0.0
  %2156 = vmatprep.subr.mxu0 0.0
  %2157 = vmatpush1.msra.mxu0 0.0
  %2158 = vmatprep.subr.mxu0 0.0
  %2159 = vmatpush1.msra.mxu0 0.0
  %2160 = vmatprep.subr.mxu0 0.0
  %2161 = vmatpush1.msra.mxu0 0.0
  %2162 = vmatprep.subr.mxu0 0.0
  %2163 = vmatpush1.msra.mxu0 0.0
  %2164 = vmatprep.subr.mxu0 0.0
  %2165 = vmatpush1.msra.mxu0 0.0
  %2166 = vmatprep.subr.mxu0 0.0
  %2167 = vmatpush1.msra.mxu0 0.0
  %2168 = vmatprep.subr.mxu0 0.0
  %2169 = vmatpush1.msra.mxu0 0.0
  %2170 = vmatprep.subr.mxu0 0.0
  %2171 = vmatpush1.msra.mxu0 0.0
  %2172 = vmatprep.subr.mxu0 0.0
  %2173 = vmatpush1.msra.mxu0 0.0
  %2174 = vmatprep.subr.mxu0 0.0
  %2175 = vmatpush1.msra.mxu0 0.0
  %2176 = vmatprep.subr.mxu0 0.0
  %2177 = vmatpush1.msra.mxu0 0.0
  %2178 = vmatprep.subr.mxu0 0.0
  %2179 = vmatpush1.msra.mxu0 0.0
  %2180 = vmatprep.subr.mxu0 0.0
  %2181 = vmatpush1.msra.mxu0 0.0
  %2182 = vmatprep.mubr.f32.mxu0 0.0
  %2183 = vmatmul.mubr.f32.gmra.mrb[0].mxu0 %v2004
  %v2184 = vpop.f32.mrb[0].mxu0
  %v2185 = vadd.f32 0.0, %v2184
  %v2186 = vpop.f32.mrb[0].mxu0
  %v2187 = vadd.f32 0.0, %v2186
  %2188 = vdwg.mxu0
  %2189 = vmatprep.subr.mxu0 0.0
  %2190 = vmatpush1.msra.mxu0 %v290
  %2191 = vmatprep.subr.mxu0 0.0
  %2192 = vmatpush1.msra.mxu0 %v293
  %2193 = vmatprep.subr.mxu0 0.0
  %2194 = vmatpush1.msra.mxu0 %v296
  %2195 = vmatprep.subr.mxu0 0.0
  %2196 = vmatpush1.msra.mxu0 %v299
  %2197 = vmatprep.subr.mxu0 0.0
  %2198 = vmatpush1.msra.mxu0 %v302
  %2199 = vmatprep.subr.mxu0 0.0
  %2200 = vmatpush1.msra.mxu0 %v305
  %2201 = vmatprep.subr.mxu0 0.0
  %2202 = vmatpush1.msra.mxu0 %v308
  %2203 = vmatprep.subr.mxu0 0.0
  %2204 = vmatpush1.msra.mxu0 %v311
  %2205 = vmatprep.subr.mxu0 0.0
  %2206 = vmatpush1.msra.mxu0 %v314
  %2207 = vmatprep.subr.mxu0 0.0
  %2208 = vmatpush1.msra.mxu0 %v317
  %2209 = vmatprep.subr.mxu0 0.0
  %2210 = vmatpush1.msra.mxu0 %v320
  %2211 = vmatprep.subr.mxu0 0.0
  %2212 = vmatpush1.msra.mxu0 %v323
  %2213 = vmatprep.subr.mxu0 0.0
  %2214 = vmatpush1.msra.mxu0 %v326
  %2215 = vmatprep.subr.mxu0 0.0
  %2216 = vmatpush1.msra.mxu0 %v329
  %2217 = vmatprep.subr.mxu0 0.0
  %2218 = vmatpush1.msra.mxu0 %v332
  %2219 = vmatprep.subr.mxu0 0.0
  %2220 = vmatpush1.msra.mxu0 %v335
  %2221 = vmatprep.subr.mxu0 0.0
  %2222 = vmatpush1.msra.mxu0 0.0
  %2223 = vmatprep.subr.mxu0 0.0
  %2224 = vmatpush1.msra.mxu0 0.0
  %2225 = vmatprep.subr.mxu0 0.0
  %2226 = vmatpush1.msra.mxu0 0.0
  %2227 = vmatprep.subr.mxu0 0.0
  %2228 = vmatpush1.msra.mxu0 0.0
  %2229 = vmatprep.subr.mxu0 0.0
  %2230 = vmatpush1.msra.mxu0 0.0
  %2231 = vmatprep.subr.mxu0 0.0
  %2232 = vmatpush1.msra.mxu0 0.0
  %2233 = vmatprep.subr.mxu0 0.0
  %2234 = vmatpush1.msra.mxu0 0.0
  %2235 = vmatprep.subr.mxu0 0.0
  %2236 = vmatpush1.msra.mxu0 0.0
  %2237 = vmatprep.subr.mxu0 0.0
  %2238 = vmatpush1.msra.mxu0 0.0
  %2239 = vmatprep.subr.mxu0 0.0
  %2240 = vmatpush1.msra.mxu0 0.0
  %2241 = vmatprep.subr.mxu0 0.0
  %2242 = vmatpush1.msra.mxu0 0.0
  %2243 = vmatprep.subr.mxu0 0.0
  %2244 = vmatpush1.msra.mxu0 0.0
  %2245 = vmatprep.subr.mxu0 0.0
  %2246 = vmatpush1.msra.mxu0 0.0
  %2247 = vmatprep.subr.mxu0 0.0
  %2248 = vmatpush1.msra.mxu0 0.0
  %2249 = vmatprep.subr.mxu0 0.0
  %2250 = vmatpush1.msra.mxu0 0.0
  %2251 = vmatprep.subr.mxu0 0.0
  %2252 = vmatpush1.msra.mxu0 0.0
  %2253 = vmatprep.mubr.f32.mxu0 0.0
  %2254 = vmatmul.mubr.f32.gmra.mrb[0].mxu0 %v2004
  %v2255 = vpop.f32.mrb[0].mxu0
  %v2256 = vadd.f32 0.0, %v2255
  %v2257 = vpop.f32.mrb[0].mxu0
  %2258 = vdwg.mxu0
  %2259 = vmatprep.subr.mxu0 %v479
  %2260 = vmatpush1.msra.mxu0 %v478
  %2261 = vmatprep.subr.mxu0 %v482
  %2262 = vmatpush1.msra.mxu0 %v481
  %2263 = vmatprep.subr.mxu0 %v485
  %2264 = vmatpush1.msra.mxu0 %v484
  %2265 = vmatprep.subr.mxu0 %v488
  %2266 = vmatpush1.msra.mxu0 %v487
  %2267 = vmatprep.subr.mxu0 %v491
  %2268 = vmatpush1.msra.mxu0 %v490
  %2269 = vmatprep.subr.mxu0 %v494
  %2270 = vmatpush1.msra.mxu0 %v493
  %2271 = vmatprep.subr.mxu0 %v497
  %2272 = vmatpush1.msra.mxu0 %v496
  %2273 = vmatprep.subr.mxu0 %v500
  %2274 = vmatpush1.msra.mxu0 %v499
  %2275 = vmatprep.subr.mxu0 %v503
  %2276 = vmatpush1.msra.mxu0 %v502
  %2277 = vmatprep.subr.mxu0 %v506
  %2278 = vmatpush1.msra.mxu0 %v505
  %2279 = vmatprep.subr.mxu0 %v509
  %2280 = vmatpush1.msra.mxu0 %v508
  %2281 = vmatprep.subr.mxu0 %v512
  %2282 = vmatpush1.msra.mxu0 %v511
  %2283 = vmatprep.subr.mxu0 %v515
  %2284 = vmatpush1.msra.mxu0 %v514
  %2285 = vmatprep.subr.mxu0 %v518
  %2286 = vmatpush1.msra.mxu0 %v517
  %2287 = vmatprep.subr.mxu0 %v521
  %2288 = vmatpush1.msra.mxu0 %v520
  %2289 = vmatprep.subr.mxu0 %v524
  %2290 = vmatpush1.msra.mxu0 %v523
  %2291 = vmatprep.subr.mxu0 0.0
  %2292 = vmatpush1.msra.mxu0 0.0
  %2293 = vmatprep.subr.mxu0 0.0
  %2294 = vmatpush1.msra.mxu0 0.0
  %2295 = vmatprep.subr.mxu0 0.0
  %2296 = vmatpush1.msra.mxu0 0.0
  %2297 = vmatprep.subr.mxu0 0.0
  %2298 = vmatpush1.msra.mxu0 0.0
  %2299 = vmatprep.subr.mxu0 0.0
  %2300 = vmatpush1.msra.mxu0 0.0
  %2301 = vmatprep.subr.mxu0 0.0
  %2302 = vmatpush1.msra.mxu0 0.0
  %2303 = vmatprep.subr.mxu0 0.0
  %2304 = vmatpush1.msra.mxu0 0.0
  %2305 = vmatprep.subr.mxu0 0.0
  %2306 = vmatpush1.msra.mxu0 0.0
  %2307 = vmatprep.subr.mxu0 0.0
  %2308 = vmatpush1.msra.mxu0 0.0
  %2309 = vmatprep.subr.mxu0 0.0
  %2310 = vmatpush1.msra.mxu0 0.0
  %2311 = vmatprep.subr.mxu0 0.0
  %2312 = vmatpush1.msra.mxu0 0.0
  %2313 = vmatprep.subr.mxu0 0.0
  %2314 = vmatpush1.msra.mxu0 0.0
  %2315 = vmatprep.subr.mxu0 0.0
  %2316 = vmatpush1.msra.mxu0 0.0
  %2317 = vmatprep.subr.mxu0 0.0
  %2318 = vmatpush1.msra.mxu0 0.0
  %2319 = vmatprep.subr.mxu0 0.0
  %2320 = vmatpush1.msra.mxu0 0.0
  %2321 = vmatprep.subr.mxu0 0.0
  %2322 = vmatpush1.msra.mxu0 0.0
  %2323 = vmatprep.mubr.f32.mxu0 0.0
  %2324 = vmatmul.mubr.f32.gmra.mrb[0].mxu0 %v2007
  %v2325 = vpop.f32.mrb[0].mxu0
  %v2326 = vadd.f32 0.0, %v2325
  %v2327 = vpop.f32.mrb[0].mxu0
  %v2328 = vadd.f32 0.0, %v2327
  %2329 = vdwg.mxu0
  %2330 = vmatprep.subr.mxu0 0.0
  %2331 = vmatpush1.msra.mxu0 %v480
  %2332 = vmatprep.subr.mxu0 0.0
  %2333 = vmatpush1.msra.mxu0 %v483
  %2334 = vmatprep.subr.mxu0 0.0
  %2335 = vmatpush1.msra.mxu0 %v486
  %2336 = vmatprep.subr.mxu0 0.0
  %2337 = vmatpush1.msra.mxu0 %v489
  %2338 = vmatprep.subr.mxu0 0.0
  %2339 = vmatpush1.msra.mxu0 %v492
  %2340 = vmatprep.subr.mxu0 0.0
  %2341 = vmatpush1.msra.mxu0 %v495
  %2342 = vmatprep.subr.mxu0 0.0
  %2343 = vmatpush1.msra.mxu0 %v498
  %2344 = vmatprep.subr.mxu0 0.0
  %2345 = vmatpush1.msra.mxu0 %v501
  %2346 = vmatprep.subr.mxu0 0.0
  %2347 = vmatpush1.msra.mxu0 %v504
  %2348 = vmatprep.subr.mxu0 0.0
  %2349 = vmatpush1.msra.mxu0 %v507
  %2350 = vmatprep.subr.mxu0 0.0
  %2351 = vmatpush1.msra.mxu0 %v510
  %2352 = vmatprep.subr.mxu0 0.0
  %2353 = vmatpush1.msra.mxu0 %v513
  %2354 = vmatprep.subr.mxu0 0.0
  %2355 = vmatpush1.msra.mxu0 %v516
  %2356 = vmatprep.subr.mxu0 0.0
  %2357 = vmatpush1.msra.mxu0 %v519
  %2358 = vmatprep.subr.mxu0 0.0
  %2359 = vmatpush1.msra.mxu0 %v522
  %2360 = vmatprep.subr.mxu0 0.0
  %2361 = vmatpush1.msra.mxu0 %v525
  %2362 = vmatprep.subr.mxu0 0.0
  %2363 = vmatpush1.msra.mxu0 0.0
  %2364 = vmatprep.subr.mxu0 0.0
  %2365 = vmatpush1.msra.mxu0 0.0
  %2366 = vmatprep.subr.mxu0 0.0
  %2367 = vmatpush1.msra.mxu0 0.0
  %2368 = vmatprep.subr.mxu0 0.0
  %2369 = vmatpush1.msra.mxu0 0.0
  %2370 = vmatprep.subr.mxu0 0.0
  %2371 = vmatpush1.msra.mxu0 0.0
  %2372 = vmatprep.subr.mxu0 0.0
  %2373 = vmatpush1.msra.mxu0 0.0
  %2374 = vmatprep.subr.mxu0 0.0
  %2375 = vmatpush1.msra.mxu0 0.0
  %2376 = vmatprep.subr.mxu0 0.0
  %2377 = vmatpush1.msra.mxu0 0.0
  %2378 = vmatprep.subr.mxu0 0.0
  %2379 = vmatpush1.msra.mxu0 0.0
  %2380 = vmatprep.subr.mxu0 0.0
  %2381 = vmatpush1.msra.mxu0 0.0
  %2382 = vmatprep.subr.mxu0 0.0
  %2383 = vmatpush1.msra.mxu0 0.0
  %2384 = vmatprep.subr.mxu0 0.0
  %2385 = vmatpush1.msra.mxu0 0.0
  %2386 = vmatprep.subr.mxu0 0.0
  %2387 = vmatpush1.msra.mxu0 0.0
  %2388 = vmatprep.subr.mxu0 0.0
  %2389 = vmatpush1.msra.mxu0 0.0
  %2390 = vmatprep.subr.mxu0 0.0
  %2391 = vmatpush1.msra.mxu0 0.0
  %2392 = vmatprep.subr.mxu0 0.0
  %2393 = vmatpush1.msra.mxu0 0.0
  %2394 = vmatprep.mubr.f32.mxu0 0.0
  %2395 = vmatmul.mubr.f32.gmra.mrb[0].mxu0 %v2007
  %v2396 = vpop.f32.mrb[0].mxu0
  %v2397 = vadd.f32 0.0, %v2396
  %v2398 = vpop.f32.mrb[0].mxu0
  %2399 = vdwg.mxu0
  %v2400 = vadd.f32 %v2112, %v2185
  %v2401 = vxor.u32 %v2400, 2147483648
  %v2402 = vmul.f32 %v2401, 1.442695
  %v2403 = vpow.pop %v2402
  %v2404 = vadd.f32 %v2403, 1.0
  %v2405 = vrcp.pop %v2404
  %v2406 = vmul.f32 1.0, %v2405
  %v2407 = vadd.f32 %v2113, %v2187
  %v2408 = vxor.u32 %v2407, 2147483648
  %v2409 = vmul.f32 %v2408, 1.442695
  %v2410 = vpow.pop %v2409
  %v2411 = vadd.f32 %v2410, 1.0
  %v2412 = vrcp.pop %v2411
  %v2413 = vmul.f32 1.0, %v2412
  %v2414 = vadd.f32 %v2256, %v280
  %v2415 = vmul.f32 %v2406, %v2414
  %v2416 = vadd.f32 %v2114, %v2415
  %v2417 = vtanh.pop %v2416
  %v2418 = vadd.f32 %v2115, %v2326
  %v2419 = vxor.u32 %v2418, 2147483648
  %v2420 = vmul.f32 %v2419, 1.442695
  %v2421 = vpow.pop %v2420
  %v2422 = vadd.f32 %v2421, 1.0
  %v2423 = vrcp.pop %v2422
  %v2424 = vmul.f32 1.0, %v2423
  %v2425 = vadd.f32 %v2116, %v2328
  %v2426 = vxor.u32 %v2425, 2147483648
  %v2427 = vmul.f32 %v2426, 1.442695
  %v2428 = vpow.pop %v2427
  %v2429 = vadd.f32 %v2428, 1.0
  %v2430 = vrcp.pop %v2429
  %v2431 = vmul.f32 1.0, %v2430
  %v2432 = vadd.f32 %v2397, %v281
  %v2433 = vmul.f32 %v2424, %v2432
  %v2434 = vadd.f32 %v2117, %v2433
  %v2435 = vtanh.pop %v2434
  %v2436 = vsub.f32 %v2004, %v2417
  %v2437 = vmul.f32 %v2413, %v2436
  %v2438 = vadd.f32 %v2417, %v2437
  %v2439 = vsub.f32 %v2007, %v2435
  %v2440 = vmul.f32 %v2431, %v2439
  %v2441 = vadd.f32 %v2435, %v2440
  %s2442 = scalar_lea.vmem %s3, 1024
  %v2443 = vld [vmem:[%s2442] sm:$0xff]
  %v2444 = vld [vmem:[%s2442 + $0x8] sm:$0xff]
  %v2445 = vld [vmem:[%s2442 + $0x10] sm:$0xff]
  %v2446 = vld [vmem:[%s2442 + $0x18] sm:$0xff]
  %v2447 = vld [vmem:[%s2442 + $0x20] sm:$0xff]
  %v2448 = vld [vmem:[%s2442 + $0x28] sm:$0xff]
  %v2449 = vld [vmem:[%s2442 + $0x30] sm:$0xff]
  %v2450 = vld [vmem:[%s2442 + $0x38] sm:$0xff]
  %v2451 = vld [vmem:[%s2442 + $0x40] sm:$0xff]
  %v2452 = vld [vmem:[%s2442 + $0x48] sm:$0xff]
  %v2453 = vld [vmem:[%s2442 + $0x50] sm:$0xff]
  %v2454 = vld [vmem:[%s2442 + $0x58] sm:$0xff]
  %v2455 = vld [vmem:[%s2442 + $0x60] sm:$0xff]
  %v2456 = vld [vmem:[%s2442 + $0x68] sm:$0xff]
  %v2457 = vld [vmem:[%s2442 + $0x70] sm:$0xff]
  %v2458 = vld [vmem:[%s2442 + $0x78] sm:$0xff]
  %v2459 = vld [vmem:[%s2442 + $0x80] sm:$0xff]
  %v2460 = vld [vmem:[%s2442 + $0x88] sm:$0xff]
  %v2461 = vld [vmem:[%s2442 + $0x90] sm:$0xff]
  %v2462 = vld [vmem:[%s2442 + $0x98] sm:$0xff]
  %v2463 = vld [vmem:[%s2442 + $0xa0] sm:$0xff]
  %v2464 = vld [vmem:[%s2442 + $0xa8] sm:$0xff]
  %v2465 = vld [vmem:[%s2442 + $0xb0] sm:$0xff]
  %v2466 = vld [vmem:[%s2442 + $0xb8] sm:$0xff]
  %v2467 = vld [vmem:[%s2442 + $0xc0] sm:$0xff]
  %v2468 = vld [vmem:[%s2442 + $0xc8] sm:$0xff]
  %v2469 = vld [vmem:[%s2442 + $0xd0] sm:$0xff]
  %v2470 = vld [vmem:[%s2442 + $0xd8] sm:$0xff]
  %v2471 = vld [vmem:[%s2442 + $0xe0] sm:$0xff]
  %v2472 = vld [vmem:[%s2442 + $0xe8] sm:$0xff]
  %v2473 = vld [vmem:[%s2442 + $0xf0] sm:$0xff]
  %v2474 = vld [vmem:[%s2442 + $0xf8] sm:$0xff]
  %2475 = vmatprep.subr.mxu0 0.0
  %2476 = vmatpush1.msra.mxu0 %v2443
  %2477 = vmatprep.subr.mxu0 0.0
  %2478 = vmatpush1.msra.mxu0 %v2444
  %2479 = vmatprep.subr.mxu0 0.0
  %2480 = vmatpush1.msra.mxu0 %v2445
  %2481 = vmatprep.subr.mxu0 0.0
  %2482 = vmatpush1.msra.mxu0 %v2446
  %2483 = vmatprep.subr.mxu0 0.0
  %2484 = vmatpush1.msra.mxu0 %v2447
  %2485 = vmatprep.subr.mxu0 0.0
  %2486 = vmatpush1.msra.mxu0 %v2448
  %2487 = vmatprep.subr.mxu0 0.0
  %2488 = vmatpush1.msra.mxu0 %v2449
  %2489 = vmatprep.subr.mxu0 0.0
  %2490 = vmatpush1.msra.mxu0 %v2450
  %2491 = vmatprep.subr.mxu0 0.0
  %2492 = vmatpush1.msra.mxu0 %v2451
  %2493 = vmatprep.subr.mxu0 0.0
  %2494 = vmatpush1.msra.mxu0 %v2452
  %2495 = vmatprep.subr.mxu0 0.0
  %2496 = vmatpush1.msra.mxu0 %v2453
  %2497 = vmatprep.subr.mxu0 0.0
  %2498 = vmatpush1.msra.mxu0 %v2454
  %2499 = vmatprep.subr.mxu0 0.0
  %2500 = vmatpush1.msra.mxu0 %v2455
  %2501 = vmatprep.subr.mxu0 0.0
  %2502 = vmatpush1.msra.mxu0 %v2456
  %2503 = vmatprep.subr.mxu0 0.0
  %2504 = vmatpush1.msra.mxu0 %v2457
  %2505 = vmatprep.subr.mxu0 0.0
  %2506 = vmatpush1.msra.mxu0 %v2458
  %2507 = vmatprep.subr.mxu0 0.0
  %2508 = vmatpush1.msra.mxu0 %v2459
  %2509 = vmatprep.subr.mxu0 0.0
  %2510 = vmatpush1.msra.mxu0 %v2460
  %2511 = vmatprep.subr.mxu0 0.0
  %2512 = vmatpush1.msra.mxu0 %v2461
  %2513 = vmatprep.subr.mxu0 0.0
  %2514 = vmatpush1.msra.mxu0 %v2462
  %2515 = vmatprep.subr.mxu0 0.0
  %2516 = vmatpush1.msra.mxu0 %v2463
  %2517 = vmatprep.subr.mxu0 0.0
  %2518 = vmatpush1.msra.mxu0 %v2464
  %2519 = vmatprep.subr.mxu0 0.0
  %2520 = vmatpush1.msra.mxu0 %v2465
  %2521 = vmatprep.subr.mxu0 0.0
  %2522 = vmatpush1.msra.mxu0 %v2466
  %2523 = vmatprep.subr.mxu0 0.0
  %2524 = vmatpush1.msra.mxu0 %v2467
  %2525 = vmatprep.subr.mxu0 0.0
  %2526 = vmatpush1.msra.mxu0 %v2468
  %2527 = vmatprep.subr.mxu0 0.0
  %2528 = vmatpush1.msra.mxu0 %v2469
  %2529 = vmatprep.subr.mxu0 0.0
  %2530 = vmatpush1.msra.mxu0 %v2470
  %2531 = vmatprep.subr.mxu0 0.0
  %2532 = vmatpush1.msra.mxu0 %v2471
  %2533 = vmatprep.subr.mxu0 0.0
  %2534 = vmatpush1.msra.mxu0 %v2472
  %2535 = vmatprep.subr.mxu0 0.0
  %2536 = vmatpush1.msra.mxu0 %v2473
  %2537 = vmatprep.subr.mxu0 0.0
  %2538 = vmatpush1.msra.mxu0 %v2474
  %2539 = vmatprep.mubr.f32.mxu0 %v2441
  %2540 = vmatmul.mubr.f32.gmra.mrb[0].mxu0 %v2438
  %v2541 = vpop.f32.mrb[0].mxu0
  %v2542 = vadd.f32 0.0, %v2541
  %v2543 = vpop.f32.mrb[0].mxu0
  %2544 = vdwg.mxu0
  %v2545 = vadd.f32 %v2111, %v2542
  %v2546 = vld [vmem:[#allocation2 + $0x78] sm:$0xff]
  %v2547 = vld [vmem:[#allocation2 + $0x80] sm:$0xff]
  %v2548 = vld [vmem:[#allocation2 + $0x88] sm:$0xff]
  %v2549 = vld [vmem:[#allocation3 + $0x30] sm:$0xff]
  %v2550 = vld [vmem:[#allocation3 + $0x38] sm:$0xff]
  %v2551 = vld [vmem:[#allocation3 + $0x40] sm:$0xff]
  %2552 = vmatprep.subr.mxu0 %v289
  %2553 = vmatpush1.msra.mxu0 %v288
  %2554 = vmatprep.subr.mxu0 %v292
  %2555 = vmatpush1.msra.mxu0 %v291
  %2556 = vmatprep.subr.mxu0 %v295
  %2557 = vmatpush1.msra.mxu0 %v294
  %2558 = vmatprep.subr.mxu0 %v298
  %2559 = vmatpush1.msra.mxu0 %v297
  %2560 = vmatprep.subr.mxu0 %v301
  %2561 = vmatpush1.msra.mxu0 %v300
  %2562 = vmatprep.subr.mxu0 %v304
  %2563 = vmatpush1.msra.mxu0 %v303
  %2564 = vmatprep.subr.mxu0 %v307
  %2565 = vmatpush1.msra.mxu0 %v306
  %2566 = vmatprep.subr.mxu0 %v310
  %2567 = vmatpush1.msra.mxu0 %v309
  %2568 = vmatprep.subr.mxu0 %v313
  %2569 = vmatpush1.msra.mxu0 %v312
  %2570 = vmatprep.subr.mxu0 %v316
  %2571 = vmatpush1.msra.mxu0 %v315
  %2572 = vmatprep.subr.mxu0 %v319
  %2573 = vmatpush1.msra.mxu0 %v318
  %2574 = vmatprep.subr.mxu0 %v322
  %2575 = vmatpush1.msra.mxu0 %v321
  %2576 = vmatprep.subr.mxu0 %v325
  %2577 = vmatpush1.msra.mxu0 %v324
  %2578 = vmatprep.subr.mxu0 %v328
  %2579 = vmatpush1.msra.mxu0 %v327
  %2580 = vmatprep.subr.mxu0 %v331
  %2581 = vmatpush1.msra.mxu0 %v330
  %2582 = vmatprep.subr.mxu0 %v334
  %2583 = vmatpush1.msra.mxu0 %v333
  %2584 = vmatprep.subr.mxu0 0.0
  %2585 = vmatpush1.msra.mxu0 0.0
  %2586 = vmatprep.subr.mxu0 0.0
  %2587 = vmatpush1.msra.mxu0 0.0
  %2588 = vmatprep.subr.mxu0 0.0
  %2589 = vmatpush1.msra.mxu0 0.0
  %2590 = vmatprep.subr.mxu0 0.0
  %2591 = vmatpush1.msra.mxu0 0.0
  %2592 = vmatprep.subr.mxu0 0.0
  %2593 = vmatpush1.msra.mxu0 0.0
  %2594 = vmatprep.subr.mxu0 0.0
  %2595 = vmatpush1.msra.mxu0 0.0
  %2596 = vmatprep.subr.mxu0 0.0
  %2597 = vmatpush1.msra.mxu0 0.0
  %2598 = vmatprep.subr.mxu0 0.0
  %2599 = vmatpush1.msra.mxu0 0.0
  %2600 = vmatprep.subr.mxu0 0.0
  %2601 = vmatpush1.msra.mxu0 0.0
  %2602 = vmatprep.subr.mxu0 0.0
  %2603 = vmatpush1.msra.mxu0 0.0
  %2604 = vmatprep.subr.mxu0 0.0
  %2605 = vmatpush1.msra.mxu0 0.0
  %2606 = vmatprep.subr.mxu0 0.0
  %2607 = vmatpush1.msra.mxu0 0.0
  %2608 = vmatprep.subr.mxu0 0.0
  %2609 = vmatpush1.msra.mxu0 0.0
  %2610 = vmatprep.subr.mxu0 0.0
  %2611 = vmatpush1.msra.mxu0 0.0
  %2612 = vmatprep.subr.mxu0 0.0
  %2613 = vmatpush1.msra.mxu0 0.0
  %2614 = vmatprep.subr.mxu0 0.0
  %2615 = vmatpush1.msra.mxu0 0.0
  %2616 = vmatprep.mubr.f32.mxu0 0.0
  %2617 = vmatmul.mubr.f32.gmra.mrb[0].mxu0 %v2438
  %v2618 = vpop.f32.mrb[0].mxu0
  %v2619 = vadd.f32 0.0, %v2618
  %v2620 = vpop.f32.mrb[0].mxu0
  %v2621 = vadd.f32 0.0, %v2620
  %2622 = vdwg.mxu0
  %2623 = vmatprep.subr.mxu0 0.0
  %2624 = vmatpush1.msra.mxu0 %v290
  %2625 = vmatprep.subr.mxu0 0.0
  %2626 = vmatpush1.msra.mxu0 %v293
  %2627 = vmatprep.subr.mxu0 0.0
  %2628 = vmatpush1.msra.mxu0 %v296
  %2629 = vmatprep.subr.mxu0 0.0
  %2630 = vmatpush1.msra.mxu0 %v299
  %2631 = vmatprep.subr.mxu0 0.0
  %2632 = vmatpush1.msra.mxu0 %v302
  %2633 = vmatprep.subr.mxu0 0.0
  %2634 = vmatpush1.msra.mxu0 %v305
  %2635 = vmatprep.subr.mxu0 0.0
  %2636 = vmatpush1.msra.mxu0 %v308
  %2637 = vmatprep.subr.mxu0 0.0
  %2638 = vmatpush1.msra.mxu0 %v311
  %2639 = vmatprep.subr.mxu0 0.0
  %2640 = vmatpush1.msra.mxu0 %v314
  %2641 = vmatprep.subr.mxu0 0.0
  %2642 = vmatpush1.msra.mxu0 %v317
  %2643 = vmatprep.subr.mxu0 0.0
  %2644 = vmatpush1.msra.mxu0 %v320
  %2645 = vmatprep.subr.mxu0 0.0
  %2646 = vmatpush1.msra.mxu0 %v323
  %2647 = vmatprep.subr.mxu0 0.0
  %2648 = vmatpush1.msra.mxu0 %v326
  %2649 = vmatprep.subr.mxu0 0.0
  %2650 = vmatpush1.msra.mxu0 %v329
  %2651 = vmatprep.subr.mxu0 0.0
  %2652 = vmatpush1.msra.mxu0 %v332
  %2653 = vmatprep.subr.mxu0 0.0
  %2654 = vmatpush1.msra.mxu0 %v335
  %2655 = vmatprep.subr.mxu0 0.0
  %2656 = vmatpush1.msra.mxu0 0.0
  %2657 = vmatprep.subr.mxu0 0.0
  %2658 = vmatpush1.msra.mxu0 0.0
  %2659 = vmatprep.subr.mxu0 0.0
  %2660 = vmatpush1.msra.mxu0 0.0
  %2661 = vmatprep.subr.mxu0 0.0
  %2662 = vmatpush1.msra.mxu0 0.0
  %2663 = vmatprep.subr.mxu0 0.0
  %2664 = vmatpush1.msra.mxu0 0.0
  %2665 = vmatprep.subr.mxu0 0.0
  %2666 = vmatpush1.msra.mxu0 0.0
  %2667 = vmatprep.subr.mxu0 0.0
  %2668 = vmatpush1.msra.mxu0 0.0
  %2669 = vmatprep.subr.mxu0 0.0
  %2670 = vmatpush1.msra.mxu0 0.0
  %2671 = vmatprep.subr.mxu0 0.0
  %2672 = vmatpush1.msra.mxu0 0.0
  %2673 = vmatprep.subr.mxu0 0.0
  %2674 = vmatpush1.msra.mxu0 0.0
  %2675 = vmatprep.subr.mxu0 0.0
  %2676 = vmatpush1.msra.mxu0 0.0
  %2677 = vmatprep.subr.mxu0 0.0
  %2678 = vmatpush1.msra.mxu0 0.0
  %2679 = vmatprep.subr.mxu0 0.0
  %2680 = vmatpush1.msra.mxu0 0.0
  %2681 = vmatprep.subr.mxu0 0.0
  %2682 = vmatpush1.msra.mxu0 0.0
  %2683 = vmatprep.subr.mxu0 0.0
  %2684 = vmatpush1.msra.mxu0 0.0
  %2685 = vmatprep.subr.mxu0 0.0
  %2686 = vmatpush1.msra.mxu0 0.0
  %2687 = vmatprep.mubr.f32.mxu0 0.0
  %2688 = vmatmul.mubr.f32.gmra.mrb[0].mxu0 %v2438
  %v2689 = vpop.f32.mrb[0].mxu0
  %v2690 = vadd.f32 0.0, %v2689
  %v2691 = vpop.f32.mrb[0].mxu0
  %2692 = vdwg.mxu0
  %2693 = vmatprep.subr.mxu0 %v479
  %2694 = vmatpush1.msra.mxu0 %v478
  %2695 = vmatprep.subr.mxu0 %v482
  %2696 = vmatpush1.msra.mxu0 %v481
  %2697 = vmatprep.subr.mxu0 %v485
  %2698 = vmatpush1.msra.mxu0 %v484
  %2699 = vmatprep.subr.mxu0 %v488
  %2700 = vmatpush1.msra.mxu0 %v487
  %2701 = vmatprep.subr.mxu0 %v491
  %2702 = vmatpush1.msra.mxu0 %v490
  %2703 = vmatprep.subr.mxu0 %v494
  %2704 = vmatpush1.msra.mxu0 %v493
  %2705 = vmatprep.subr.mxu0 %v497
  %2706 = vmatpush1.msra.mxu0 %v496
  %2707 = vmatprep.subr.mxu0 %v500
  %2708 = vmatpush1.msra.mxu0 %v499
  %2709 = vmatprep.subr.mxu0 %v503
  %2710 = vmatpush1.msra.mxu0 %v502
  %2711 = vmatprep.subr.mxu0 %v506
  %2712 = vmatpush1.msra.mxu0 %v505
  %2713 = vmatprep.subr.mxu0 %v509
  %2714 = vmatpush1.msra.mxu0 %v508
  %2715 = vmatprep.subr.mxu0 %v512
  %2716 = vmatpush1.msra.mxu0 %v511
  %2717 = vmatprep.subr.mxu0 %v515
  %2718 = vmatpush1.msra.mxu0 %v514
  %2719 = vmatprep.subr.mxu0 %v518
  %2720 = vmatpush1.msra.mxu0 %v517
  %2721 = vmatprep.subr.mxu0 %v521
  %2722 = vmatpush1.msra.mxu0 %v520
  %2723 = vmatprep.subr.mxu0 %v524
  %2724 = vmatpush1.msra.mxu0 %v523
  %2725 = vmatprep.subr.mxu0 0.0
  %2726 = vmatpush1.msra.mxu0 0.0
  %2727 = vmatprep.subr.mxu0 0.0
  %2728 = vmatpush1.msra.mxu0 0.0
  %2729 = vmatprep.subr.mxu0 0.0
  %2730 = vmatpush1.msra.mxu0 0.0
  %2731 = vmatprep.subr.mxu0 0.0
  %2732 = vmatpush1.msra.mxu0 0.0
  %2733 = vmatprep.subr.mxu0 0.0
  %2734 = vmatpush1.msra.mxu0 0.0
  %2735 = vmatprep.subr.mxu0 0.0
  %2736 = vmatpush1.msra.mxu0 0.0
  %2737 = vmatprep.subr.mxu0 0.0
  %2738 = vmatpush1.msra.mxu0 0.0
  %2739 = vmatprep.subr.mxu0 0.0
  %2740 = vmatpush1.msra.mxu0 0.0
  %2741 = vmatprep.subr.mxu0 0.0
  %2742 = vmatpush1.msra.mxu0 0.0
  %2743 = vmatprep.subr.mxu0 0.0
  %2744 = vmatpush1.msra.mxu0 0.0
  %2745 = vmatprep.subr.mxu0 0.0
  %2746 = vmatpush1.msra.mxu0 0.0
  %2747 = vmatprep.subr.mxu0 0.0
  %2748 = vmatpush1.msra.mxu0 0.0
  %2749 = vmatprep.subr.mxu0 0.0
  %2750 = vmatpush1.msra.mxu0 0.0
  %2751 = vmatprep.subr.mxu0 0.0
  %2752 = vmatpush1.msra.mxu0 0.0
  %2753 = vmatprep.subr.mxu0 0.0
  %2754 = vmatpush1.msra.mxu0 0.0
  %2755 = vmatprep.subr.mxu0 0.0
  %2756 = vmatpush1.msra.mxu0 0.0
  %2757 = vmatprep.mubr.f32.mxu0 0.0
  %2758 = vmatmul.mubr.f32.gmra.mrb[0].mxu0 %v2441
  %v2759 = vpop.f32.mrb[0].mxu0
  %v2760 = vadd.f32 0.0, %v2759
  %v2761 = vpop.f32.mrb[0].mxu0
  %v2762 = vadd.f32 0.0, %v2761
  %2763 = vdwg.mxu0
  %2764 = vmatprep.subr.mxu0 0.0
  %2765 = vmatpush1.msra.mxu0 %v480
  %2766 = vmatprep.subr.mxu0 0.0
  %2767 = vmatpush1.msra.mxu0 %v483
  %2768 = vmatprep.subr.mxu0 0.0
  %2769 = vmatpush1.msra.mxu0 %v486
  %2770 = vmatprep.subr.mxu0 0.0
  %2771 = vmatpush1.msra.mxu0 %v489
  %2772 = vmatprep.subr.mxu0 0.0
  %2773 = vmatpush1.msra.mxu0 %v492
  %2774 = vmatprep.subr.mxu0 0.0
  %2775 = vmatpush1.msra.mxu0 %v495
  %2776 = vmatprep.subr.mxu0 0.0
  %2777 = vmatpush1.msra.mxu0 %v498
  %2778 = vmatprep.subr.mxu0 0.0
  %2779 = vmatpush1.msra.mxu0 %v501
  %2780 = vmatprep.subr.mxu0 0.0
  %2781 = vmatpush1.msra.mxu0 %v504
  %2782 = vmatprep.subr.mxu0 0.0
  %2783 = vmatpush1.msra.mxu0 %v507
  %2784 = vmatprep.subr.mxu0 0.0
  %2785 = vmatpush1.msra.mxu0 %v510
  %2786 = vmatprep.subr.mxu0 0.0
  %2787 = vmatpush1.msra.mxu0 %v513
  %2788 = vmatprep.subr.mxu0 0.0
  %2789 = vmatpush1.msra.mxu0 %v516
  %2790 = vmatprep.subr.mxu0 0.0
  %2791 = vmatpush1.msra.mxu0 %v519
  %2792 = vmatprep.subr.mxu0 0.0
  %2793 = vmatpush1.msra.mxu0 %v522
  %2794 = vmatprep.subr.mxu0 0.0
  %2795 = vmatpush1.msra.mxu0 %v525
  %2796 = vmatprep.subr.mxu0 0.0
  %2797 = vmatpush1.msra.mxu0 0.0
  %2798 = vmatprep.subr.mxu0 0.0
  %2799 = vmatpush1.msra.mxu0 0.0
  %2800 = vmatprep.subr.mxu0 0.0
  %2801 = vmatpush1.msra.mxu0 0.0
  %2802 = vmatprep.subr.mxu0 0.0
  %2803 = vmatpush1.msra.mxu0 0.0
  %2804 = vmatprep.subr.mxu0 0.0
  %2805 = vmatpush1.msra.mxu0 0.0
  %2806 = vmatprep.subr.mxu0 0.0
  %2807 = vmatpush1.msra.mxu0 0.0
  %2808 = vmatprep.subr.mxu0 0.0
  %2809 = vmatpush1.msra.mxu0 0.0
  %2810 = vmatprep.subr.mxu0 0.0
  %2811 = vmatpush1.msra.mxu0 0.0
  %2812 = vmatprep.subr.mxu0 0.0
  %2813 = vmatpush1.msra.mxu0 0.0
  %2814 = vmatprep.subr.mxu0 0.0
  %2815 = vmatpush1.msra.mxu0 0.0
  %2816 = vmatprep.subr.mxu0 0.0
  %2817 = vmatpush1.msra.mxu0 0.0
  %2818 = vmatprep.subr.mxu0 0.0
  %2819 = vmatpush1.msra.mxu0 0.0
  %2820 = vmatprep.subr.mxu0 0.0
  %2821 = vmatpush1.msra.mxu0 0.0
  %2822 = vmatprep.subr.mxu0 0.0
  %2823 = vmatpush1.msra.mxu0 0.0
  %2824 = vmatprep.subr.mxu0 0.0
  %2825 = vmatpush1.msra.mxu0 0.0
  %2826 = vmatprep.subr.mxu0 0.0
  %2827 = vmatpush1.msra.mxu0 0.0
  %2828 = vmatprep.mubr.f32.mxu0 0.0
  %2829 = vmatmul.mubr.f32.gmra.mrb[0].mxu0 %v2441
  %v2830 = vpop.f32.mrb[0].mxu0
  %v2831 = vadd.f32 0.0, %v2830
  %v2832 = vpop.f32.mrb[0].mxu0
  %2833 = vdwg.mxu0
  %v2834 = vadd.f32 %v2546, %v2619
  %v2835 = vxor.u32 %v2834, 2147483648
  %v2836 = vmul.f32 %v2835, 1.442695
  %v2837 = vpow.pop %v2836
  %v2838 = vadd.f32 %v2837, 1.0
  %v2839 = vrcp.pop %v2838
  %v2840 = vmul.f32 1.0, %v2839
  %v2841 = vadd.f32 %v2547, %v2621
  %v2842 = vxor.u32 %v2841, 2147483648
  %v2843 = vmul.f32 %v2842, 1.442695
  %v2844 = vpow.pop %v2843
  %v2845 = vadd.f32 %v2844, 1.0
  %v2846 = vrcp.pop %v2845
  %v2847 = vmul.f32 1.0, %v2846
  %v2848 = vadd.f32 %v2690, %v280
  %v2849 = vmul.f32 %v2840, %v2848
  %v2850 = vadd.f32 %v2548, %v2849
  %v2851 = vtanh.pop %v2850
  %v2852 = vadd.f32 %v2549, %v2760
  %v2853 = vxor.u32 %v2852, 2147483648
  %v2854 = vmul.f32 %v2853, 1.442695
  %v2855 = vpow.pop %v2854
  %v2856 = vadd.f32 %v2855, 1.0
  %v2857 = vrcp.pop %v2856
  %v2858 = vmul.f32 1.0, %v2857
  %v2859 = vadd.f32 %v2550, %v2762
  %v2860 = vxor.u32 %v2859, 2147483648
  %v2861 = vmul.f32 %v2860, 1.442695
  %v2862 = vpow.pop %v2861
  %v2863 = vadd.f32 %v2862, 1.0
  %v2864 = vrcp.pop %v2863
  %v2865 = vmul.f32 1.0, %v2864
  %v2866 = vadd.f32 %v2831, %v281
  %v2867 = vmul.f32 %v2858, %v2866
  %v2868 = vadd.f32 %v2551, %v2867
  %v2869 = vtanh.pop %v2868
  %v2870 = vsub.f32 %v2438, %v2851
  %v2871 = vmul.f32 %v2847, %v2870
  %v2872 = vadd.f32 %v2851, %v2871
  %v2873 = vsub.f32 %v2441, %v2869
  %v2874 = vmul.f32 %v2865, %v2873
  %v2875 = vadd.f32 %v2869, %v2874
  %s2876 = scalar_lea.vmem %s3, 1280
  %v2877 = vld [vmem:[%s2876] sm:$0xff]
  %v2878 = vld [vmem:[%s2876 + $0x8] sm:$0xff]
  %v2879 = vld [vmem:[%s2876 + $0x10] sm:$0xff]
  %v2880 = vld [vmem:[%s2876 + $0x18] sm:$0xff]
  %v2881 = vld [vmem:[%s2876 + $0x20] sm:$0xff]
  %v2882 = vld [vmem:[%s2876 + $0x28] sm:$0xff]
  %v2883 = vld [vmem:[%s2876 + $0x30] sm:$0xff]
  %v2884 = vld [vmem:[%s2876 + $0x38] sm:$0xff]
  %v2885 = vld [vmem:[%s2876 + $0x40] sm:$0xff]
  %v2886 = vld [vmem:[%s2876 + $0x48] sm:$0xff]
  %v2887 = vld [vmem:[%s2876 + $0x50] sm:$0xff]
  %v2888 = vld [vmem:[%s2876 + $0x58] sm:$0xff]
  %v2889 = vld [vmem:[%s2876 + $0x60] sm:$0xff]
  %v2890 = vld [vmem:[%s2876 + $0x68] sm:$0xff]
  %v2891 = vld [vmem:[%s2876 + $0x70] sm:$0xff]
  %v2892 = vld [vmem:[%s2876 + $0x78] sm:$0xff]
  %v2893 = vld [vmem:[%s2876 + $0x80] sm:$0xff]
  %v2894 = vld [vmem:[%s2876 + $0x88] sm:$0xff]
  %v2895 = vld [vmem:[%s2876 + $0x90] sm:$0xff]
  %v2896 = vld [vmem:[%s2876 + $0x98] sm:$0xff]
  %v2897 = vld [vmem:[%s2876 + $0xa0] sm:$0xff]
  %v2898 = vld [vmem:[%s2876 + $0xa8] sm:$0xff]
  %v2899 = vld [vmem:[%s2876 + $0xb0] sm:$0xff]
  %v2900 = vld [vmem:[%s2876 + $0xb8] sm:$0xff]
  %v2901 = vld [vmem:[%s2876 + $0xc0] sm:$0xff]
  %v2902 = vld [vmem:[%s2876 + $0xc8] sm:$0xff]
  %v2903 = vld [vmem:[%s2876 + $0xd0] sm:$0xff]
  %v2904 = vld [vmem:[%s2876 + $0xd8] sm:$0xff]
  %v2905 = vld [vmem:[%s2876 + $0xe0] sm:$0xff]
  %v2906 = vld [vmem:[%s2876 + $0xe8] sm:$0xff]
  %v2907 = vld [vmem:[%s2876 + $0xf0] sm:$0xff]
  %v2908 = vld [vmem:[%s2876 + $0xf8] sm:$0xff]
  %2909 = vmatprep.subr.mxu0 0.0
  %2910 = vmatpush1.msra.mxu0 %v2877
  %2911 = vmatprep.subr.mxu0 0.0
  %2912 = vmatpush1.msra.mxu0 %v2878
  %2913 = vmatprep.subr.mxu0 0.0
  %2914 = vmatpush1.msra.mxu0 %v2879
  %2915 = vmatprep.subr.mxu0 0.0
  %2916 = vmatpush1.msra.mxu0 %v2880
  %2917 = vmatprep.subr.mxu0 0.0
  %2918 = vmatpush1.msra.mxu0 %v2881
  %2919 = vmatprep.subr.mxu0 0.0
  %2920 = vmatpush1.msra.mxu0 %v2882
  %2921 = vmatprep.subr.mxu0 0.0
  %2922 = vmatpush1.msra.mxu0 %v2883
  %2923 = vmatprep.subr.mxu0 0.0
  %2924 = vmatpush1.msra.mxu0 %v2884
  %2925 = vmatprep.subr.mxu0 0.0
  %2926 = vmatpush1.msra.mxu0 %v2885
  %2927 = vmatprep.subr.mxu0 0.0
  %2928 = vmatpush1.msra.mxu0 %v2886
  %2929 = vmatprep.subr.mxu0 0.0
  %2930 = vmatpush1.msra.mxu0 %v2887
  %2931 = vmatprep.subr.mxu0 0.0
  %2932 = vmatpush1.msra.mxu0 %v2888
  %2933 = vmatprep.subr.mxu0 0.0
  %2934 = vmatpush1.msra.mxu0 %v2889
  %2935 = vmatprep.subr.mxu0 0.0
  %2936 = vmatpush1.msra.mxu0 %v2890
  %2937 = vmatprep.subr.mxu0 0.0
  %2938 = vmatpush1.msra.mxu0 %v2891
  %2939 = vmatprep.subr.mxu0 0.0
  %2940 = vmatpush1.msra.mxu0 %v2892
  %2941 = vmatprep.subr.mxu0 0.0
  %2942 = vmatpush1.msra.mxu0 %v2893
  %2943 = vmatprep.subr.mxu0 0.0
  %2944 = vmatpush1.msra.mxu0 %v2894
  %2945 = vmatprep.subr.mxu0 0.0
  %2946 = vmatpush1.msra.mxu0 %v2895
  %2947 = vmatprep.subr.mxu0 0.0
  %2948 = vmatpush1.msra.mxu0 %v2896
  %2949 = vmatprep.subr.mxu0 0.0
  %2950 = vmatpush1.msra.mxu0 %v2897
  %2951 = vmatprep.subr.mxu0 0.0
  %2952 = vmatpush1.msra.mxu0 %v2898
  %2953 = vmatprep.subr.mxu0 0.0
  %2954 = vmatpush1.msra.mxu0 %v2899
  %2955 = vmatprep.subr.mxu0 0.0
  %2956 = vmatpush1.msra.mxu0 %v2900
  %2957 = vmatprep.subr.mxu0 0.0
  %2958 = vmatpush1.msra.mxu0 %v2901
  %2959 = vmatprep.subr.mxu0 0.0
  %2960 = vmatpush1.msra.mxu0 %v2902
  %2961 = vmatprep.subr.mxu0 0.0
  %2962 = vmatpush1.msra.mxu0 %v2903
  %2963 = vmatprep.subr.mxu0 0.0
  %2964 = vmatpush1.msra.mxu0 %v2904
  %2965 = vmatprep.subr.mxu0 0.0
  %2966 = vmatpush1.msra.mxu0 %v2905
  %2967 = vmatprep.subr.mxu0 0.0
  %2968 = vmatpush1.msra.mxu0 %v2906
  %2969 = vmatprep.subr.mxu0 0.0
  %2970 = vmatpush1.msra.mxu0 %v2907
  %2971 = vmatprep.subr.mxu0 0.0
  %2972 = vmatpush1.msra.mxu0 %v2908
  %2973 = vmatprep.mubr.f32.mxu0 %v2875
  %2974 = vmatmul.mubr.f32.gmra.mrb[0].mxu0 %v2872
  %v2975 = vpop.f32.mrb[0].mxu0
  %v2976 = vadd.f32 0.0, %v2975
  %v2977 = vpop.f32.mrb[0].mxu0
  %2978 = vdwg.mxu0
  %v2979 = vadd.f32 %v2545, %v2976
  %v2980 = vld [vmem:[#allocation2 + $0x90] sm:$0xff]
  %v2981 = vld [vmem:[#allocation2 + $0x98] sm:$0xff]
  %v2982 = vld [vmem:[#allocation2 + $0xa0] sm:$0xff]
  %v2983 = vld [vmem:[#allocation3 + $0x18] sm:$0xff]
  %v2984 = vld [vmem:[#allocation3 + $0x20] sm:$0xff]
  %v2985 = vld [vmem:[#allocation3 + $0x28] sm:$0xff]
  %2986 = vmatprep.subr.mxu0 %v289
  %2987 = vmatpush1.msra.mxu0 %v288
  %2988 = vmatprep.subr.mxu0 %v292
  %2989 = vmatpush1.msra.mxu0 %v291
  %2990 = vmatprep.subr.mxu0 %v295
  %2991 = vmatpush1.msra.mxu0 %v294
  %2992 = vmatprep.subr.mxu0 %v298
  %2993 = vmatpush1.msra.mxu0 %v297
  %2994 = vmatprep.subr.mxu0 %v301
  %2995 = vmatpush1.msra.mxu0 %v300
  %2996 = vmatprep.subr.mxu0 %v304
  %2997 = vmatpush1.msra.mxu0 %v303
  %2998 = vmatprep.subr.mxu0 %v307
  %2999 = vmatpush1.msra.mxu0 %v306
  %3000 = vmatprep.subr.mxu0 %v310
  %3001 = vmatpush1.msra.mxu0 %v309
  %3002 = vmatprep.subr.mxu0 %v313
  %3003 = vmatpush1.msra.mxu0 %v312
  %3004 = vmatprep.subr.mxu0 %v316
  %3005 = vmatpush1.msra.mxu0 %v315
  %3006 = vmatprep.subr.mxu0 %v319
  %3007 = vmatpush1.msra.mxu0 %v318
  %3008 = vmatprep.subr.mxu0 %v322
  %3009 = vmatpush1.msra.mxu0 %v321
  %3010 = vmatprep.subr.mxu0 %v325
  %3011 = vmatpush1.msra.mxu0 %v324
  %3012 = vmatprep.subr.mxu0 %v328
  %3013 = vmatpush1.msra.mxu0 %v327
  %3014 = vmatprep.subr.mxu0 %v331
  %3015 = vmatpush1.msra.mxu0 %v330
  %3016 = vmatprep.subr.mxu0 %v334
  %3017 = vmatpush1.msra.mxu0 %v333
  %3018 = vmatprep.subr.mxu0 0.0
  %3019 = vmatpush1.msra.mxu0 0.0
  %3020 = vmatprep.subr.mxu0 0.0
  %3021 = vmatpush1.msra.mxu0 0.0
  %3022 = vmatprep.subr.mxu0 0.0
  %3023 = vmatpush1.msra.mxu0 0.0
  %3024 = vmatprep.subr.mxu0 0.0
  %3025 = vmatpush1.msra.mxu0 0.0
  %3026 = vmatprep.subr.mxu0 0.0
  %3027 = vmatpush1.msra.mxu0 0.0
  %3028 = vmatprep.subr.mxu0 0.0
  %3029 = vmatpush1.msra.mxu0 0.0
  %3030 = vmatprep.subr.mxu0 0.0
  %3031 = vmatpush1.msra.mxu0 0.0
  %3032 = vmatprep.subr.mxu0 0.0
  %3033 = vmatpush1.msra.mxu0 0.0
  %3034 = vmatprep.subr.mxu0 0.0
  %3035 = vmatpush1.msra.mxu0 0.0
  %3036 = vmatprep.subr.mxu0 0.0
  %3037 = vmatpush1.msra.mxu0 0.0
  %3038 = vmatprep.subr.mxu0 0.0
  %3039 = vmatpush1.msra.mxu0 0.0
  %3040 = vmatprep.subr.mxu0 0.0
  %3041 = vmatpush1.msra.mxu0 0.0
  %3042 = vmatprep.subr.mxu0 0.0
  %3043 = vmatpush1.msra.mxu0 0.0
  %3044 = vmatprep.subr.mxu0 0.0
  %3045 = vmatpush1.msra.mxu0 0.0
  %3046 = vmatprep.subr.mxu0 0.0
  %3047 = vmatpush1.msra.mxu0 0.0
  %3048 = vmatprep.subr.mxu0 0.0
  %3049 = vmatpush1.msra.mxu0 0.0
  %3050 = vmatprep.mubr.f32.mxu0 0.0
  %3051 = vmatmul.mubr.f32.gmra.mrb[0].mxu0 %v2872
  %v3052 = vpop.f32.mrb[0].mxu0
  %v3053 = vadd.f32 0.0, %v3052
  %v3054 = vpop.f32.mrb[0].mxu0
  %v3055 = vadd.f32 0.0, %v3054
  %3056 = vdwg.mxu0
  %3057 = vmatprep.subr.mxu0 0.0
  %3058 = vmatpush1.msra.mxu0 %v290
  %3059 = vmatprep.subr.mxu0 0.0
  %3060 = vmatpush1.msra.mxu0 %v293
  %3061 = vmatprep.subr.mxu0 0.0
  %3062 = vmatpush1.msra.mxu0 %v296
  %3063 = vmatprep.subr.mxu0 0.0
  %3064 = vmatpush1.msra.mxu0 %v299
  %3065 = vmatprep.subr.mxu0 0.0
  %3066 = vmatpush1.msra.mxu0 %v302
  %3067 = vmatprep.subr.mxu0 0.0
  %3068 = vmatpush1.msra.mxu0 %v305
  %3069 = vmatprep.subr.mxu0 0.0
  %3070 = vmatpush1.msra.mxu0 %v308
  %3071 = vmatprep.subr.mxu0 0.0
  %3072 = vmatpush1.msra.mxu0 %v311
  %3073 = vmatprep.subr.mxu0 0.0
  %3074 = vmatpush1.msra.mxu0 %v314
  %3075 = vmatprep.subr.mxu0 0.0
  %3076 = vmatpush1.msra.mxu0 %v317
  %3077 = vmatprep.subr.mxu0 0.0
  %3078 = vmatpush1.msra.mxu0 %v320
  %3079 = vmatprep.subr.mxu0 0.0
  %3080 = vmatpush1.msra.mxu0 %v323
  %3081 = vmatprep.subr.mxu0 0.0
  %3082 = vmatpush1.msra.mxu0 %v326
  %3083 = vmatprep.subr.mxu0 0.0
  %3084 = vmatpush1.msra.mxu0 %v329
  %3085 = vmatprep.subr.mxu0 0.0
  %3086 = vmatpush1.msra.mxu0 %v332
  %3087 = vmatprep.subr.mxu0 0.0
  %3088 = vmatpush1.msra.mxu0 %v335
  %3089 = vmatprep.subr.mxu0 0.0
  %3090 = vmatpush1.msra.mxu0 0.0
  %3091 = vmatprep.subr.mxu0 0.0
  %3092 = vmatpush1.msra.mxu0 0.0
  %3093 = vmatprep.subr.mxu0 0.0
  %3094 = vmatpush1.msra.mxu0 0.0
  %3095 = vmatprep.subr.mxu0 0.0
  %3096 = vmatpush1.msra.mxu0 0.0
  %3097 = vmatprep.subr.mxu0 0.0
  %3098 = vmatpush1.msra.mxu0 0.0
  %3099 = vmatprep.subr.mxu0 0.0
  %3100 = vmatpush1.msra.mxu0 0.0
  %3101 = vmatprep.subr.mxu0 0.0
  %3102 = vmatpush1.msra.mxu0 0.0
  %3103 = vmatprep.subr.mxu0 0.0
  %3104 = vmatpush1.msra.mxu0 0.0
  %3105 = vmatprep.subr.mxu0 0.0
  %3106 = vmatpush1.msra.mxu0 0.0
  %3107 = vmatprep.subr.mxu0 0.0
  %3108 = vmatpush1.msra.mxu0 0.0
  %3109 = vmatprep.subr.mxu0 0.0
  %3110 = vmatpush1.msra.mxu0 0.0
  %3111 = vmatprep.subr.mxu0 0.0
  %3112 = vmatpush1.msra.mxu0 0.0
  %3113 = vmatprep.subr.mxu0 0.0
  %3114 = vmatpush1.msra.mxu0 0.0
  %3115 = vmatprep.subr.mxu0 0.0
  %3116 = vmatpush1.msra.mxu0 0.0
  %3117 = vmatprep.subr.mxu0 0.0
  %3118 = vmatpush1.msra.mxu0 0.0
  %3119 = vmatprep.subr.mxu0 0.0
  %3120 = vmatpush1.msra.mxu0 0.0
  %3121 = vmatprep.mubr.f32.mxu0 0.0
  %3122 = vmatmul.mubr.f32.gmra.mrb[0].mxu0 %v2872
  %v3123 = vpop.f32.mrb[0].mxu0
  %v3124 = vadd.f32 0.0, %v3123
  %v3125 = vpop.f32.mrb[0].mxu0
  %3126 = vdwg.mxu0
  %3127 = vmatprep.subr.mxu0 %v479
  %3128 = vmatpush1.msra.mxu0 %v478
  %3129 = vmatprep.subr.mxu0 %v482
  %3130 = vmatpush1.msra.mxu0 %v481
  %3131 = vmatprep.subr.mxu0 %v485
  %3132 = vmatpush1.msra.mxu0 %v484
  %3133 = vmatprep.subr.mxu0 %v488
  %3134 = vmatpush1.msra.mxu0 %v487
  %3135 = vmatprep.subr.mxu0 %v491
  %3136 = vmatpush1.msra.mxu0 %v490
  %3137 = vmatprep.subr.mxu0 %v494
  %3138 = vmatpush1.msra.mxu0 %v493
  %3139 = vmatprep.subr.mxu0 %v497
  %3140 = vmatpush1.msra.mxu0 %v496
  %3141 = vmatprep.subr.mxu0 %v500
  %3142 = vmatpush1.msra.mxu0 %v499
  %3143 = vmatprep.subr.mxu0 %v503
  %3144 = vmatpush1.msra.mxu0 %v502
  %3145 = vmatprep.subr.mxu0 %v506
  %3146 = vmatpush1.msra.mxu0 %v505
  %3147 = vmatprep.subr.mxu0 %v509
  %3148 = vmatpush1.msra.mxu0 %v508
  %3149 = vmatprep.subr.mxu0 %v512
  %3150 = vmatpush1.msra.mxu0 %v511
  %3151 = vmatprep.subr.mxu0 %v515
  %3152 = vmatpush1.msra.mxu0 %v514
  %3153 = vmatprep.subr.mxu0 %v518
  %3154 = vmatpush1.msra.mxu0 %v517
  %3155 = vmatprep.subr.mxu0 %v521
  %3156 = vmatpush1.msra.mxu0 %v520
  %3157 = vmatprep.subr.mxu0 %v524
  %3158 = vmatpush1.msra.mxu0 %v523
  %3159 = vmatprep.subr.mxu0 0.0
  %3160 = vmatpush1.msra.mxu0 0.0
  %3161 = vmatprep.subr.mxu0 0.0
  %3162 = vmatpush1.msra.mxu0 0.0
  %3163 = vmatprep.subr.mxu0 0.0
  %3164 = vmatpush1.msra.mxu0 0.0
  %3165 = vmatprep.subr.mxu0 0.0
  %3166 = vmatpush1.msra.mxu0 0.0
  %3167 = vmatprep.subr.mxu0 0.0
  %3168 = vmatpush1.msra.mxu0 0.0
  %3169 = vmatprep.subr.mxu0 0.0
  %3170 = vmatpush1.msra.mxu0 0.0
  %3171 = vmatprep.subr.mxu0 0.0
  %3172 = vmatpush1.msra.mxu0 0.0
  %3173 = vmatprep.subr.mxu0 0.0
  %3174 = vmatpush1.msra.mxu0 0.0
  %3175 = vmatprep.subr.mxu0 0.0
  %3176 = vmatpush1.msra.mxu0 0.0
  %3177 = vmatprep.subr.mxu0 0.0
  %3178 = vmatpush1.msra.mxu0 0.0
  %3179 = vmatprep.subr.mxu0 0.0
  %3180 = vmatpush1.msra.mxu0 0.0
  %3181 = vmatprep.subr.mxu0 0.0
  %3182 = vmatpush1.msra.mxu0 0.0
  %3183 = vmatprep.subr.mxu0 0.0
  %3184 = vmatpush1.msra.mxu0 0.0
  %3185 = vmatprep.subr.mxu0 0.0
  %3186 = vmatpush1.msra.mxu0 0.0
  %3187 = vmatprep.subr.mxu0 0.0
  %3188 = vmatpush1.msra.mxu0 0.0
  %3189 = vmatprep.subr.mxu0 0.0
  %3190 = vmatpush1.msra.mxu0 0.0
  %3191 = vmatprep.mubr.f32.mxu0 0.0
  %3192 = vmatmul.mubr.f32.gmra.mrb[0].mxu0 %v2875
  %v3193 = vpop.f32.mrb[0].mxu0
  %v3194 = vadd.f32 0.0, %v3193
  %v3195 = vpop.f32.mrb[0].mxu0
  %v3196 = vadd.f32 0.0, %v3195
  %3197 = vdwg.mxu0
  %3198 = vmatprep.subr.mxu0 0.0
  %3199 = vmatpush1.msra.mxu0 %v480
  %3200 = vmatprep.subr.mxu0 0.0
  %3201 = vmatpush1.msra.mxu0 %v483
  %3202 = vmatprep.subr.mxu0 0.0
  %3203 = vmatpush1.msra.mxu0 %v486
  %3204 = vmatprep.subr.mxu0 0.0
  %3205 = vmatpush1.msra.mxu0 %v489
  %3206 = vmatprep.subr.mxu0 0.0
  %3207 = vmatpush1.msra.mxu0 %v492
  %3208 = vmatprep.subr.mxu0 0.0
  %3209 = vmatpush1.msra.mxu0 %v495
  %3210 = vmatprep.subr.mxu0 0.0
  %3211 = vmatpush1.msra.mxu0 %v498
  %3212 = vmatprep.subr.mxu0 0.0
  %3213 = vmatpush1.msra.mxu0 %v501
  %3214 = vmatprep.subr.mxu0 0.0
  %3215 = vmatpush1.msra.mxu0 %v504
  %3216 = vmatprep.subr.mxu0 0.0
  %3217 = vmatpush1.msra.mxu0 %v507
  %3218 = vmatprep.subr.mxu0 0.0
  %3219 = vmatpush1.msra.mxu0 %v510
  %3220 = vmatprep.subr.mxu0 0.0
  %3221 = vmatpush1.msra.mxu0 %v513
  %3222 = vmatprep.subr.mxu0 0.0
  %3223 = vmatpush1.msra.mxu0 %v516
  %3224 = vmatprep.subr.mxu0 0.0
  %3225 = vmatpush1.msra.mxu0 %v519
  %3226 = vmatprep.subr.mxu0 0.0
  %3227 = vmatpush1.msra.mxu0 %v522
  %3228 = vmatprep.subr.mxu0 0.0
  %3229 = vmatpush1.msra.mxu0 %v525
  %3230 = vmatprep.subr.mxu0 0.0
  %3231 = vmatpush1.msra.mxu0 0.0
  %3232 = vmatprep.subr.mxu0 0.0
  %3233 = vmatpush1.msra.mxu0 0.0
  %3234 = vmatprep.subr.mxu0 0.0
  %3235 = vmatpush1.msra.mxu0 0.0
  %3236 = vmatprep.subr.mxu0 0.0
  %3237 = vmatpush1.msra.mxu0 0.0
  %3238 = vmatprep.subr.mxu0 0.0
  %3239 = vmatpush1.msra.mxu0 0.0
  %3240 = vmatprep.subr.mxu0 0.0
  %3241 = vmatpush1.msra.mxu0 0.0
  %3242 = vmatprep.subr.mxu0 0.0
  %3243 = vmatpush1.msra.mxu0 0.0
  %3244 = vmatprep.subr.mxu0 0.0
  %3245 = vmatpush1.msra.mxu0 0.0
  %3246 = vmatprep.subr.mxu0 0.0
  %3247 = vmatpush1.msra.mxu0 0.0
  %3248 = vmatprep.subr.mxu0 0.0
  %3249 = vmatpush1.msra.mxu0 0.0
  %3250 = vmatprep.subr.mxu0 0.0
  %3251 = vmatpush1.msra.mxu0 0.0
  %3252 = vmatprep.subr.mxu0 0.0
  %3253 = vmatpush1.msra.mxu0 0.0
  %3254 = vmatprep.subr.mxu0 0.0
  %3255 = vmatpush1.msra.mxu0 0.0
  %3256 = vmatprep.subr.mxu0 0.0
  %3257 = vmatpush1.msra.mxu0 0.0
  %3258 = vmatprep.subr.mxu0 0.0
  %3259 = vmatpush1.msra.mxu0 0.0
  %3260 = vmatprep.subr.mxu0 0.0
  %3261 = vmatpush1.msra.mxu0 0.0
  %3262 = vmatprep.mubr.f32.mxu0 0.0
  %3263 = vmatmul.mubr.f32.gmra.mrb[0].mxu0 %v2875
  %v3264 = vpop.f32.mrb[0].mxu0
  %v3265 = vadd.f32 0.0, %v3264
  %v3266 = vpop.f32.mrb[0].mxu0
  %3267 = vdwg.mxu0
  %v3268 = vadd.f32 %v2980, %v3053
  %v3269 = vxor.u32 %v3268, 2147483648
  %v3270 = vmul.f32 %v3269, 1.442695
  %v3271 = vpow.pop %v3270
  %v3272 = vadd.f32 %v3271, 1.0
  %v3273 = vrcp.pop %v3272
  %v3274 = vmul.f32 1.0, %v3273
  %v3275 = vadd.f32 %v2981, %v3055
  %v3276 = vxor.u32 %v3275, 2147483648
  %v3277 = vmul.f32 %v3276, 1.442695
  %v3278 = vpow.pop %v3277
  %v3279 = vadd.f32 %v3278, 1.0
  %v3280 = vrcp.pop %v3279
  %v3281 = vmul.f32 1.0, %v3280
  %v3282 = vadd.f32 %v3124, %v280
  %v3283 = vmul.f32 %v3274, %v3282
  %v3284 = vadd.f32 %v2982, %v3283
  %v3285 = vtanh.pop %v3284
  %v3286 = vadd.f32 %v2983, %v3194
  %v3287 = vxor.u32 %v3286, 2147483648
  %v3288 = vmul.f32 %v3287, 1.442695
  %v3289 = vpow.pop %v3288
  %v3290 = vadd.f32 %v3289, 1.0
  %v3291 = vrcp.pop %v3290
  %v3292 = vmul.f32 1.0, %v3291
  %v3293 = vadd.f32 %v2984, %v3196
  %v3294 = vxor.u32 %v3293, 2147483648
  %v3295 = vmul.f32 %v3294, 1.442695
  %v3296 = vpow.pop %v3295
  %v3297 = vadd.f32 %v3296, 1.0
  %v3298 = vrcp.pop %v3297
  %v3299 = vmul.f32 1.0, %v3298
  %v3300 = vadd.f32 %v3265, %v281
  %v3301 = vmul.f32 %v3292, %v3300
  %v3302 = vadd.f32 %v2985, %v3301
  %v3303 = vtanh.pop %v3302
  %v3304 = vsub.f32 %v2872, %v3285
  %v3305 = vmul.f32 %v3281, %v3304
  %v3306 = vadd.f32 %v3285, %v3305
  %v3307 = vsub.f32 %v2875, %v3303
  %v3308 = vmul.f32 %v3299, %v3307
  %v3309 = vadd.f32 %v3303, %v3308
  %s3310 = scalar_lea.vmem %s3, 1536
  %v3311 = vld [vmem:[%s3310] sm:$0xff]
  %v3312 = vld [vmem:[%s3310 + $0x8] sm:$0xff]
  %v3313 = vld [vmem:[%s3310 + $0x10] sm:$0xff]
  %v3314 = vld [vmem:[%s3310 + $0x18] sm:$0xff]
  %v3315 = vld [vmem:[%s3310 + $0x20] sm:$0xff]
  %v3316 = vld [vmem:[%s3310 + $0x28] sm:$0xff]
  %v3317 = vld [vmem:[%s3310 + $0x30] sm:$0xff]
  %v3318 = vld [vmem:[%s3310 + $0x38] sm:$0xff]
  %v3319 = vld [vmem:[%s3310 + $0x40] sm:$0xff]
  %v3320 = vld [vmem:[%s3310 + $0x48] sm:$0xff]
  %v3321 = vld [vmem:[%s3310 + $0x50] sm:$0xff]
  %v3322 = vld [vmem:[%s3310 + $0x58] sm:$0xff]
  %v3323 = vld [vmem:[%s3310 + $0x60] sm:$0xff]
  %v3324 = vld [vmem:[%s3310 + $0x68] sm:$0xff]
  %v3325 = vld [vmem:[%s3310 + $0x70] sm:$0xff]
  %v3326 = vld [vmem:[%s3310 + $0x78] sm:$0xff]
  %v3327 = vld [vmem:[%s3310 + $0x80] sm:$0xff]
  %v3328 = vld [vmem:[%s3310 + $0x88] sm:$0xff]
  %v3329 = vld [vmem:[%s3310 + $0x90] sm:$0xff]
  %v3330 = vld [vmem:[%s3310 + $0x98] sm:$0xff]
  %v3331 = vld [vmem:[%s3310 + $0xa0] sm:$0xff]
  %v3332 = vld [vmem:[%s3310 + $0xa8] sm:$0xff]
  %v3333 = vld [vmem:[%s3310 + $0xb0] sm:$0xff]
  %v3334 = vld [vmem:[%s3310 + $0xb8] sm:$0xff]
  %v3335 = vld [vmem:[%s3310 + $0xc0] sm:$0xff]
  %v3336 = vld [vmem:[%s3310 + $0xc8] sm:$0xff]
  %v3337 = vld [vmem:[%s3310 + $0xd0] sm:$0xff]
  %v3338 = vld [vmem:[%s3310 + $0xd8] sm:$0xff]
  %v3339 = vld [vmem:[%s3310 + $0xe0] sm:$0xff]
  %v3340 = vld [vmem:[%s3310 + $0xe8] sm:$0xff]
  %v3341 = vld [vmem:[%s3310 + $0xf0] sm:$0xff]
  %v3342 = vld [vmem:[%s3310 + $0xf8] sm:$0xff]
  %3343 = vmatprep.subr.mxu0 0.0
  %3344 = vmatpush1.msra.mxu0 %v3311
  %3345 = vmatprep.subr.mxu0 0.0
  %3346 = vmatpush1.msra.mxu0 %v3312
  %3347 = vmatprep.subr.mxu0 0.0
  %3348 = vmatpush1.msra.mxu0 %v3313
  %3349 = vmatprep.subr.mxu0 0.0
  %3350 = vmatpush1.msra.mxu0 %v3314
  %3351 = vmatprep.subr.mxu0 0.0
  %3352 = vmatpush1.msra.mxu0 %v3315
  %3353 = vmatprep.subr.mxu0 0.0
  %3354 = vmatpush1.msra.mxu0 %v3316
  %3355 = vmatprep.subr.mxu0 0.0
  %3356 = vmatpush1.msra.mxu0 %v3317
  %3357 = vmatprep.subr.mxu0 0.0
  %3358 = vmatpush1.msra.mxu0 %v3318
  %3359 = vmatprep.subr.mxu0 0.0
  %3360 = vmatpush1.msra.mxu0 %v3319
  %3361 = vmatprep.subr.mxu0 0.0
  %3362 = vmatpush1.msra.mxu0 %v3320
  %3363 = vmatprep.subr.mxu0 0.0
  %3364 = vmatpush1.msra.mxu0 %v3321
  %3365 = vmatprep.subr.mxu0 0.0
  %3366 = vmatpush1.msra.mxu0 %v3322
  %3367 = vmatprep.subr.mxu0 0.0
  %3368 = vmatpush1.msra.mxu0 %v3323
  %3369 = vmatprep.subr.mxu0 0.0
  %3370 = vmatpush1.msra.mxu0 %v3324
  %3371 = vmatprep.subr.mxu0 0.0
  %3372 = vmatpush1.msra.mxu0 %v3325
  %3373 = vmatprep.subr.mxu0 0.0
  %3374 = vmatpush1.msra.mxu0 %v3326
  %3375 = vmatprep.subr.mxu0 0.0
  %3376 = vmatpush1.msra.mxu0 %v3327
  %3377 = vmatprep.subr.mxu0 0.0
  %3378 = vmatpush1.msra.mxu0 %v3328
  %3379 = vmatprep.subr.mxu0 0.0
  %3380 = vmatpush1.msra.mxu0 %v3329
  %3381 = vmatprep.subr.mxu0 0.0
  %3382 = vmatpush1.msra.mxu0 %v3330
  %3383 = vmatprep.subr.mxu0 0.0
  %3384 = vmatpush1.msra.mxu0 %v3331
  %3385 = vmatprep.subr.mxu0 0.0
  %3386 = vmatpush1.msra.mxu0 %v3332
  %3387 = vmatprep.subr.mxu0 0.0
  %3388 = vmatpush1.msra.mxu0 %v3333
  %3389 = vmatprep.subr.mxu0 0.0
  %3390 = vmatpush1.msra.mxu0 %v3334
  %3391 = vmatprep.subr.mxu0 0.0
  %3392 = vmatpush1.msra.mxu0 %v3335
  %3393 = vmatprep.subr.mxu0 0.0
  %3394 = vmatpush1.msra.mxu0 %v3336
  %3395 = vmatprep.subr.mxu0 0.0
  %3396 = vmatpush1.msra.mxu0 %v3337
  %3397 = vmatprep.subr.mxu0 0.0
  %3398 = vmatpush1.msra.mxu0 %v3338
  %3399 = vmatprep.subr.mxu0 0.0
  %3400 = vmatpush1.msra.mxu0 %v3339
  %3401 = vmatprep.subr.mxu0 0.0
  %3402 = vmatpush1.msra.mxu0 %v3340
  %3403 = vmatprep.subr.mxu0 0.0
  %3404 = vmatpush1.msra.mxu0 %v3341
  %3405 = vmatprep.subr.mxu0 0.0
  %3406 = vmatpush1.msra.mxu0 %v3342
  %3407 = vmatprep.mubr.f32.mxu0 %v3309
  %3408 = vmatmul.mubr.f32.gmra.mrb[0].mxu0 %v3306
  %v3409 = vpop.f32.mrb[0].mxu0
  %v3410 = vadd.f32 0.0, %v3409
  %v3411 = vpop.f32.mrb[0].mxu0
  %3412 = vdwg.mxu0
  %v3413 = vadd.f32 %v2979, %v3410
  %v3414 = vld [vmem:[#allocation2 + $0xa8] sm:$0xff]
  %v3415 = vld [vmem:[#allocation2 + $0xb0] sm:$0xff]
  %v3416 = vld [vmem:[#allocation2 + $0xb8] sm:$0xff]
  %v3417 = vld [vmem:[#allocation3] sm:$0xff]
  %v3418 = vld [vmem:[#allocation3 + $0x8] sm:$0xff]
  %v3419 = vld [vmem:[#allocation3 + $0x10] sm:$0xff]
  %3420 = vmatprep.subr.mxu0 %v289
  %3421 = vmatpush1.msra.mxu0 %v288
  %3422 = vmatprep.subr.mxu0 %v292
  %3423 = vmatpush1.msra.mxu0 %v291
  %3424 = vmatprep.subr.mxu0 %v295
  %3425 = vmatpush1.msra.mxu0 %v294
  %3426 = vmatprep.subr.mxu0 %v298
  %3427 = vmatpush1.msra.mxu0 %v297
  %3428 = vmatprep.subr.mxu0 %v301
  %3429 = vmatpush1.msra.mxu0 %v300
  %3430 = vmatprep.subr.mxu0 %v304
  %3431 = vmatpush1.msra.mxu0 %v303
  %3432 = vmatprep.subr.mxu0 %v307
  %3433 = vmatpush1.msra.mxu0 %v306
  %3434 = vmatprep.subr.mxu0 %v310
  %3435 = vmatpush1.msra.mxu0 %v309
  %3436 = vmatprep.subr.mxu0 %v313
  %3437 = vmatpush1.msra.mxu0 %v312
  %3438 = vmatprep.subr.mxu0 %v316
  %3439 = vmatpush1.msra.mxu0 %v315
  %3440 = vmatprep.subr.mxu0 %v319
  %3441 = vmatpush1.msra.mxu0 %v318
  %3442 = vmatprep.subr.mxu0 %v322
  %3443 = vmatpush1.msra.mxu0 %v321
  %3444 = vmatprep.subr.mxu0 %v325
  %3445 = vmatpush1.msra.mxu0 %v324
  %3446 = vmatprep.subr.mxu0 %v328
  %3447 = vmatpush1.msra.mxu0 %v327
  %3448 = vmatprep.subr.mxu0 %v331
  %3449 = vmatpush1.msra.mxu0 %v330
  %3450 = vmatprep.subr.mxu0 %v334
  %3451 = vmatpush1.msra.mxu0 %v333
  %3452 = vmatprep.subr.mxu0 0.0
  %3453 = vmatpush1.msra.mxu0 0.0
  %3454 = vmatprep.subr.mxu0 0.0
  %3455 = vmatpush1.msra.mxu0 0.0
  %3456 = vmatprep.subr.mxu0 0.0
  %3457 = vmatpush1.msra.mxu0 0.0
  %3458 = vmatprep.subr.mxu0 0.0
  %3459 = vmatpush1.msra.mxu0 0.0
  %3460 = vmatprep.subr.mxu0 0.0
  %3461 = vmatpush1.msra.mxu0 0.0
  %3462 = vmatprep.subr.mxu0 0.0
  %3463 = vmatpush1.msra.mxu0 0.0
  %3464 = vmatprep.subr.mxu0 0.0
  %3465 = vmatpush1.msra.mxu0 0.0
  %3466 = vmatprep.subr.mxu0 0.0
  %3467 = vmatpush1.msra.mxu0 0.0
  %3468 = vmatprep.subr.mxu0 0.0
  %3469 = vmatpush1.msra.mxu0 0.0
  %3470 = vmatprep.subr.mxu0 0.0
  %3471 = vmatpush1.msra.mxu0 0.0
  %3472 = vmatprep.subr.mxu0 0.0
  %3473 = vmatpush1.msra.mxu0 0.0
  %3474 = vmatprep.subr.mxu0 0.0
  %3475 = vmatpush1.msra.mxu0 0.0
  %3476 = vmatprep.subr.mxu0 0.0
  %3477 = vmatpush1.msra.mxu0 0.0
  %3478 = vmatprep.subr.mxu0 0.0
  %3479 = vmatpush1.msra.mxu0 0.0
  %3480 = vmatprep.subr.mxu0 0.0
  %3481 = vmatpush1.msra.mxu0 0.0
  %3482 = vmatprep.subr.mxu0 0.0
  %3483 = vmatpush1.msra.mxu0 0.0
  %3484 = vmatprep.mubr.f32.mxu0 0.0
  %3485 = vmatmul.mubr.f32.gmra.mrb[0].mxu0 %v3306
  %v3486 = vpop.f32.mrb[0].mxu0
  %v3487 = vadd.f32 0.0, %v3486
  %v3488 = vpop.f32.mrb[0].mxu0
  %v3489 = vadd.f32 0.0, %v3488
  %3490 = vdwg.mxu0
  %3491 = vmatprep.subr.mxu0 0.0
  %3492 = vmatpush1.msra.mxu0 %v290
  %3493 = vmatprep.subr.mxu0 0.0
  %3494 = vmatpush1.msra.mxu0 %v293
  %3495 = vmatprep.subr.mxu0 0.0
  %3496 = vmatpush1.msra.mxu0 %v296
  %3497 = vmatprep.subr.mxu0 0.0
  %3498 = vmatpush1.msra.mxu0 %v299
  %3499 = vmatprep.subr.mxu0 0.0
  %3500 = vmatpush1.msra.mxu0 %v302
  %3501 = vmatprep.subr.mxu0 0.0
  %3502 = vmatpush1.msra.mxu0 %v305
  %3503 = vmatprep.subr.mxu0 0.0
  %3504 = vmatpush1.msra.mxu0 %v308
  %3505 = vmatprep.subr.mxu0 0.0
  %3506 = vmatpush1.msra.mxu0 %v311
  %3507 = vmatprep.subr.mxu0 0.0
  %3508 = vmatpush1.msra.mxu0 %v314
  %3509 = vmatprep.subr.mxu0 0.0
  %3510 = vmatpush1.msra.mxu0 %v317
  %3511 = vmatprep.subr.mxu0 0.0
  %3512 = vmatpush1.msra.mxu0 %v320
  %3513 = vmatprep.subr.mxu0 0.0
  %3514 = vmatpush1.msra.mxu0 %v323
  %3515 = vmatprep.subr.mxu0 0.0
  %3516 = vmatpush1.msra.mxu0 %v326
  %3517 = vmatprep.subr.mxu0 0.0
  %3518 = vmatpush1.msra.mxu0 %v329
  %3519 = vmatprep.subr.mxu0 0.0
  %3520 = vmatpush1.msra.mxu0 %v332
  %3521 = vmatprep.subr.mxu0 0.0
  %3522 = vmatpush1.msra.mxu0 %v335
  %3523 = vmatprep.subr.mxu0 0.0
  %3524 = vmatpush1.msra.mxu0 0.0
  %3525 = vmatprep.subr.mxu0 0.0
  %3526 = vmatpush1.msra.mxu0 0.0
  %3527 = vmatprep.subr.mxu0 0.0
  %3528 = vmatpush1.msra.mxu0 0.0
  %3529 = vmatprep.subr.mxu0 0.0
  %3530 = vmatpush1.msra.mxu0 0.0
  %3531 = vmatprep.subr.mxu0 0.0
  %3532 = vmatpush1.msra.mxu0 0.0
  %3533 = vmatprep.subr.mxu0 0.0
  %3534 = vmatpush1.msra.mxu0 0.0
  %3535 = vmatprep.subr.mxu0 0.0
  %3536 = vmatpush1.msra.mxu0 0.0
  %3537 = vmatprep.subr.mxu0 0.0
  %3538 = vmatpush1.msra.mxu0 0.0
  %3539 = vmatprep.subr.mxu0 0.0
  %3540 = vmatpush1.msra.mxu0 0.0
  %3541 = vmatprep.subr.mxu0 0.0
  %3542 = vmatpush1.msra.mxu0 0.0
  %3543 = vmatprep.subr.mxu0 0.0
  %3544 = vmatpush1.msra.mxu0 0.0
  %3545 = vmatprep.subr.mxu0 0.0
  %3546 = vmatpush1.msra.mxu0 0.0
  %3547 = vmatprep.subr.mxu0 0.0
  %3548 = vmatpush1.msra.mxu0 0.0
  %3549 = vmatprep.subr.mxu0 0.0
  %3550 = vmatpush1.msra.mxu0 0.0
  %3551 = vmatprep.subr.mxu0 0.0
  %3552 = vmatpush1.msra.mxu0 0.0
  %3553 = vmatprep.subr.mxu0 0.0
  %3554 = vmatpush1.msra.mxu0 0.0
  %3555 = vmatprep.mubr.f32.mxu0 0.0
  %3556 = vmatmul.mubr.f32.gmra.mrb[0].mxu0 %v3306
  %v3557 = vpop.f32.mrb[0].mxu0
  %v3558 = vadd.f32 0.0, %v3557
  %v3559 = vpop.f32.mrb[0].mxu0
  %3560 = vdwg.mxu0
  %3561 = vmatprep.subr.mxu0 %v479
  %3562 = vmatpush1.msra.mxu0 %v478
  %3563 = vmatprep.subr.mxu0 %v482
  %3564 = vmatpush1.msra.mxu0 %v481
  %3565 = vmatprep.subr.mxu0 %v485
  %3566 = vmatpush1.msra.mxu0 %v484
  %3567 = vmatprep.subr.mxu0 %v488
  %3568 = vmatpush1.msra.mxu0 %v487
  %3569 = vmatprep.subr.mxu0 %v491
  %3570 = vmatpush1.msra.mxu0 %v490
  %3571 = vmatprep.subr.mxu0 %v494
  %3572 = vmatpush1.msra.mxu0 %v493
  %3573 = vmatprep.subr.mxu0 %v497
  %3574 = vmatpush1.msra.mxu0 %v496
  %3575 = vmatprep.subr.mxu0 %v500
  %3576 = vmatpush1.msra.mxu0 %v499
  %3577 = vmatprep.subr.mxu0 %v503
  %3578 = vmatpush1.msra.mxu0 %v502
  %3579 = vmatprep.subr.mxu0 %v506
  %3580 = vmatpush1.msra.mxu0 %v505
  %3581 = vmatprep.subr.mxu0 %v509
  %3582 = vmatpush1.msra.mxu0 %v508
  %3583 = vmatprep.subr.mxu0 %v512
  %3584 = vmatpush1.msra.mxu0 %v511
  %3585 = vmatprep.subr.mxu0 %v515
  %3586 = vmatpush1.msra.mxu0 %v514
  %3587 = vmatprep.subr.mxu0 %v518
  %3588 = vmatpush1.msra.mxu0 %v517
  %3589 = vmatprep.subr.mxu0 %v521
  %3590 = vmatpush1.msra.mxu0 %v520
  %3591 = vmatprep.subr.mxu0 %v524
  %3592 = vmatpush1.msra.mxu0 %v523
  %3593 = vmatprep.subr.mxu0 0.0
  %3594 = vmatpush1.msra.mxu0 0.0
  %3595 = vmatprep.subr.mxu0 0.0
  %3596 = vmatpush1.msra.mxu0 0.0
  %3597 = vmatprep.subr.mxu0 0.0
  %3598 = vmatpush1.msra.mxu0 0.0
  %3599 = vmatprep.subr.mxu0 0.0
  %3600 = vmatpush1.msra.mxu0 0.0
  %3601 = vmatprep.subr.mxu0 0.0
  %3602 = vmatpush1.msra.mxu0 0.0
  %3603 = vmatprep.subr.mxu0 0.0
  %3604 = vmatpush1.msra.mxu0 0.0
  %3605 = vmatprep.subr.mxu0 0.0
  %3606 = vmatpush1.msra.mxu0 0.0
  %3607 = vmatprep.subr.mxu0 0.0
  %3608 = vmatpush1.msra.mxu0 0.0
  %3609 = vmatprep.subr.mxu0 0.0
  %3610 = vmatpush1.msra.mxu0 0.0
  %3611 = vmatprep.subr.mxu0 0.0
  %3612 = vmatpush1.msra.mxu0 0.0
  %3613 = vmatprep.subr.mxu0 0.0
  %3614 = vmatpush1.msra.mxu0 0.0
  %3615 = vmatprep.subr.mxu0 0.0
  %3616 = vmatpush1.msra.mxu0 0.0
  %3617 = vmatprep.subr.mxu0 0.0
  %3618 = vmatpush1.msra.mxu0 0.0
  %3619 = vmatprep.subr.mxu0 0.0
  %3620 = vmatpush1.msra.mxu0 0.0
  %3621 = vmatprep.subr.mxu0 0.0
  %3622 = vmatpush1.msra.mxu0 0.0
  %3623 = vmatprep.subr.mxu0 0.0
  %3624 = vmatpush1.msra.mxu0 0.0
  %3625 = vmatprep.mubr.f32.mxu0 0.0
  %3626 = vmatmul.mubr.f32.gmra.mrb[0].mxu0 %v3309
  %v3627 = vpop.f32.mrb[0].mxu0
  %v3628 = vadd.f32 0.0, %v3627
  %v3629 = vpop.f32.mrb[0].mxu0
  %v3630 = vadd.f32 0.0, %v3629
  %3631 = vdwg.mxu0
  %3632 = vmatprep.subr.mxu0 0.0
  %3633 = vmatpush1.msra.mxu0 %v480
  %3634 = vmatprep.subr.mxu0 0.0
  %3635 = vmatpush1.msra.mxu0 %v483
  %3636 = vmatprep.subr.mxu0 0.0
  %3637 = vmatpush1.msra.mxu0 %v486
  %3638 = vmatprep.subr.mxu0 0.0
  %3639 = vmatpush1.msra.mxu0 %v489
  %3640 = vmatprep.subr.mxu0 0.0
  %3641 = vmatpush1.msra.mxu0 %v492
  %3642 = vmatprep.subr.mxu0 0.0
  %3643 = vmatpush1.msra.mxu0 %v495
  %3644 = vmatprep.subr.mxu0 0.0
  %3645 = vmatpush1.msra.mxu0 %v498
  %3646 = vmatprep.subr.mxu0 0.0
  %3647 = vmatpush1.msra.mxu0 %v501
  %3648 = vmatprep.subr.mxu0 0.0
  %3649 = vmatpush1.msra.mxu0 %v504
  %3650 = vmatprep.subr.mxu0 0.0
  %3651 = vmatpush1.msra.mxu0 %v507
  %3652 = vmatprep.subr.mxu0 0.0
  %3653 = vmatpush1.msra.mxu0 %v510
  %3654 = vmatprep.subr.mxu0 0.0
  %3655 = vmatpush1.msra.mxu0 %v513
  %3656 = vmatprep.subr.mxu0 0.0
  %3657 = vmatpush1.msra.mxu0 %v516
  %3658 = vmatprep.subr.mxu0 0.0
  %3659 = vmatpush1.msra.mxu0 %v519
  %3660 = vmatprep.subr.mxu0 0.0
  %3661 = vmatpush1.msra.mxu0 %v522
  %3662 = vmatprep.subr.mxu0 0.0
  %3663 = vmatpush1.msra.mxu0 %v525
  %3664 = vmatprep.subr.mxu0 0.0
  %3665 = vmatpush1.msra.mxu0 0.0
  %3666 = vmatprep.subr.mxu0 0.0
  %3667 = vmatpush1.msra.mxu0 0.0
  %3668 = vmatprep.subr.mxu0 0.0
  %3669 = vmatpush1.msra.mxu0 0.0
  %3670 = vmatprep.subr.mxu0 0.0
  %3671 = vmatpush1.msra.mxu0 0.0
  %3672 = vmatprep.subr.mxu0 0.0
  %3673 = vmatpush1.msra.mxu0 0.0
  %3674 = vmatprep.subr.mxu0 0.0
  %3675 = vmatpush1.msra.mxu0 0.0
  %3676 = vmatprep.subr.mxu0 0.0
  %3677 = vmatpush1.msra.mxu0 0.0
  %3678 = vmatprep.subr.mxu0 0.0
  %3679 = vmatpush1.msra.mxu0 0.0
  %3680 = vmatprep.subr.mxu0 0.0
  %3681 = vmatpush1.msra.mxu0 0.0
  %3682 = vmatprep.subr.mxu0 0.0
  %3683 = vmatpush1.msra.mxu0 0.0
  %3684 = vmatprep.subr.mxu0 0.0
  %3685 = vmatpush1.msra.mxu0 0.0
  %3686 = vmatprep.subr.mxu0 0.0
  %3687 = vmatpush1.msra.mxu0 0.0
  %3688 = vmatprep.subr.mxu0 0.0
  %3689 = vmatpush1.msra.mxu0 0.0
  %3690 = vmatprep.subr.mxu0 0.0
  %3691 = vmatpush1.msra.mxu0 0.0
  %3692 = vmatprep.subr.mxu0 0.0
  %3693 = vmatpush1.msra.mxu0 0.0
  %3694 = vmatprep.subr.mxu0 0.0
  %3695 = vmatpush1.msra.mxu0 0.0
  %3696 = vmatprep.mubr.f32.mxu0 0.0
  %3697 = vmatmul.mubr.f32.gmra.mrb[0].mxu0 %v3309
  %v3698 = vpop.f32.mrb[0].mxu0
  %v3699 = vadd.f32 0.0, %v3698
  %v3700 = vpop.f32.mrb[0].mxu0
  %3701 = vdwg.mxu0
  %v3702 = vadd.f32 %v3414, %v3487
  %v3703 = vxor.u32 %v3702, 2147483648
  %v3704 = vmul.f32 %v3703, 1.442695
  %v3705 = vpow.pop %v3704
  %v3706 = vadd.f32 %v3705, 1.0
  %v3707 = vrcp.pop %v3706
  %v3708 = vmul.f32 1.0, %v3707
  %v3709 = vadd.f32 %v3415, %v3489
  %v3710 = vxor.u32 %v3709, 2147483648
  %v3711 = vmul.f32 %v3710, 1.442695
  %v3712 = vpow.pop %v3711
  %v3713 = vadd.f32 %v3712, 1.0
  %v3714 = vrcp.pop %v3713
  %v3715 = vmul.f32 1.0, %v3714
  %v3716 = vadd.f32 %v3558, %v280
  %v3717 = vmul.f32 %v3708, %v3716
  %v3718 = vadd.f32 %v3416, %v3717
  %v3719 = vtanh.pop %v3718
  %v3720 = vadd.f32 %v3417, %v3628
  %v3721 = vxor.u32 %v3720, 2147483648
  %v3722 = vmul.f32 %v3721, 1.442695
  %v3723 = vpow.pop %v3722
  %v3724 = vadd.f32 %v3723, 1.0
  %v3725 = vrcp.pop %v3724
  %v3726 = vmul.f32 1.0, %v3725
  %v3727 = vadd.f32 %v3418, %v3630
  %v3728 = vxor.u32 %v3727, 2147483648
  %v3729 = vmul.f32 %v3728, 1.442695
  %v3730 = vpow.pop %v3729
  %v3731 = vadd.f32 %v3730, 1.0
  %v3732 = vrcp.pop %v3731
  %v3733 = vmul.f32 1.0, %v3732
  %v3734 = vadd.f32 %v3699, %v281
  %v3735 = vmul.f32 %v3726, %v3734
  %v3736 = vadd.f32 %v3419, %v3735
  %v3737 = vtanh.pop %v3736
  %v3738 = vsub.f32 %v3306, %v3719
  %v3739 = vmul.f32 %v3715, %v3738
  %v3740 = vadd.f32 %v3719, %v3739
  %v3741 = vsub.f32 %v3309, %v3737
  %v3742 = vmul.f32 %v3733, %v3741
  %v3743 = vadd.f32 %v3737, %v3742
  %s3744 = scalar_lea.vmem %s3, 1792
  %v3745 = vld [vmem:[%s3744] sm:$0xff]
  %v3746 = vld [vmem:[%s3744 + $0x8] sm:$0xff]
  %v3747 = vld [vmem:[%s3744 + $0x10] sm:$0xff]
  %v3748 = vld [vmem:[%s3744 + $0x18] sm:$0xff]
  %v3749 = vld [vmem:[%s3744 + $0x20] sm:$0xff]
  %v3750 = vld [vmem:[%s3744 + $0x28] sm:$0xff]
  %v3751 = vld [vmem:[%s3744 + $0x30] sm:$0xff]
  %v3752 = vld [vmem:[%s3744 + $0x38] sm:$0xff]
  %v3753 = vld [vmem:[%s3744 + $0x40] sm:$0xff]
  %v3754 = vld [vmem:[%s3744 + $0x48] sm:$0xff]
  %v3755 = vld [vmem:[%s3744 + $0x50] sm:$0xff]
  %v3756 = vld [vmem:[%s3744 + $0x58] sm:$0xff]
  %v3757 = vld [vmem:[%s3744 + $0x60] sm:$0xff]
  %v3758 = vld [vmem:[%s3744 + $0x68] sm:$0xff]
  %v3759 = vld [vmem:[%s3744 + $0x70] sm:$0xff]
  %v3760 = vld [vmem:[%s3744 + $0x78] sm:$0xff]
  %v3761 = vld [vmem:[%s3744 + $0x80] sm:$0xff]
  %v3762 = vld [vmem:[%s3744 + $0x88] sm:$0xff]
  %v3763 = vld [vmem:[%s3744 + $0x90] sm:$0xff]
  %v3764 = vld [vmem:[%s3744 + $0x98] sm:$0xff]
  %v3765 = vld [vmem:[%s3744 + $0xa0] sm:$0xff]
  %v3766 = vld [vmem:[%s3744 + $0xa8] sm:$0xff]
  %v3767 = vld [vmem:[%s3744 + $0xb0] sm:$0xff]
  %v3768 = vld [vmem:[%s3744 + $0xb8] sm:$0xff]
  %v3769 = vld [vmem:[%s3744 + $0xc0] sm:$0xff]
  %v3770 = vld [vmem:[%s3744 + $0xc8] sm:$0xff]
  %v3771 = vld [vmem:[%s3744 + $0xd0] sm:$0xff]
  %v3772 = vld [vmem:[%s3744 + $0xd8] sm:$0xff]
  %v3773 = vld [vmem:[%s3744 + $0xe0] sm:$0xff]
  %v3774 = vld [vmem:[%s3744 + $0xe8] sm:$0xff]
  %v3775 = vld [vmem:[%s3744 + $0xf0] sm:$0xff]
  %v3776 = vld [vmem:[%s3744 + $0xf8] sm:$0xff]
  %3777 = vmatprep.subr.mxu0 0.0
  %3778 = vmatpush1.msra.mxu0 %v3745
  %3779 = vmatprep.subr.mxu0 0.0
  %3780 = vmatpush1.msra.mxu0 %v3746
  %3781 = vmatprep.subr.mxu0 0.0
  %3782 = vmatpush1.msra.mxu0 %v3747
  %3783 = vmatprep.subr.mxu0 0.0
  %3784 = vmatpush1.msra.mxu0 %v3748
  %3785 = vmatprep.subr.mxu0 0.0
  %3786 = vmatpush1.msra.mxu0 %v3749
  %3787 = vmatprep.subr.mxu0 0.0
  %3788 = vmatpush1.msra.mxu0 %v3750
  %3789 = vmatprep.subr.mxu0 0.0
  %3790 = vmatpush1.msra.mxu0 %v3751
  %3791 = vmatprep.subr.mxu0 0.0
  %3792 = vmatpush1.msra.mxu0 %v3752
  %3793 = vmatprep.subr.mxu0 0.0
  %3794 = vmatpush1.msra.mxu0 %v3753
  %3795 = vmatprep.subr.mxu0 0.0
  %3796 = vmatpush1.msra.mxu0 %v3754
  %3797 = vmatprep.subr.mxu0 0.0
  %3798 = vmatpush1.msra.mxu0 %v3755
  %3799 = vmatprep.subr.mxu0 0.0
  %3800 = vmatpush1.msra.mxu0 %v3756
  %3801 = vmatprep.subr.mxu0 0.0
  %3802 = vmatpush1.msra.mxu0 %v3757
  %3803 = vmatprep.subr.mxu0 0.0
  %3804 = vmatpush1.msra.mxu0 %v3758
  %3805 = vmatprep.subr.mxu0 0.0
  %3806 = vmatpush1.msra.mxu0 %v3759
  %3807 = vmatprep.subr.mxu0 0.0
  %3808 = vmatpush1.msra.mxu0 %v3760
  %3809 = vmatprep.subr.mxu0 0.0
  %3810 = vmatpush1.msra.mxu0 %v3761
  %3811 = vmatprep.subr.mxu0 0.0
  %3812 = vmatpush1.msra.mxu0 %v3762
  %3813 = vmatprep.subr.mxu0 0.0
  %3814 = vmatpush1.msra.mxu0 %v3763
  %3815 = vmatprep.subr.mxu0 0.0
  %3816 = vmatpush1.msra.mxu0 %v3764
  %3817 = vmatprep.subr.mxu0 0.0
  %3818 = vmatpush1.msra.mxu0 %v3765
  %3819 = vmatprep.subr.mxu0 0.0
  %3820 = vmatpush1.msra.mxu0 %v3766
  %3821 = vmatprep.subr.mxu0 0.0
  %3822 = vmatpush1.msra.mxu0 %v3767
  %3823 = vmatprep.subr.mxu0 0.0
  %3824 = vmatpush1.msra.mxu0 %v3768
  %3825 = vmatprep.subr.mxu0 0.0
  %3826 = vmatpush1.msra.mxu0 %v3769
  %3827 = vmatprep.subr.mxu0 0.0
  %3828 = vmatpush1.msra.mxu0 %v3770
  %3829 = vmatprep.subr.mxu0 0.0
  %3830 = vmatpush1.msra.mxu0 %v3771
  %3831 = vmatprep.subr.mxu0 0.0
  %3832 = vmatpush1.msra.mxu0 %v3772
  %3833 = vmatprep.subr.mxu0 0.0
  %3834 = vmatpush1.msra.mxu0 %v3773
  %3835 = vmatprep.subr.mxu0 0.0
  %3836 = vmatpush1.msra.mxu0 %v3774
  %3837 = vmatprep.subr.mxu0 0.0
  %3838 = vmatpush1.msra.mxu0 %v3775
  %3839 = vmatprep.subr.mxu0 0.0
  %3840 = vmatpush1.msra.mxu0 %v3776
  %3841 = vmatprep.mubr.f32.mxu0 %v3743
  %3842 = vmatmul.mubr.f32.gmra.mrb[0].mxu0 %v3740
  %v3843 = vpop.f32.mrb[0].mxu0
  %v3844 = vadd.f32 0.0, %v3843
  %v3845 = vpop.f32.mrb[0].mxu0
  %3846 = vdwg.mxu0
  %v3847 = vadd.f32 %v3413, %v3844
  %v3848 = vld [vmem:[%s1 + $0x6] ss:$0 sm:$0xff]
  %v3849 = vadd.f32 %v3847, %v3848
  %vm3850 = vcmask 31744
  %3851 = vst.msk [vmem:[%s4] sm:$0xff] %vm3850, %v3849
  // Predicated region
  $region18: #{tpu_custom_call.1} parent=0 // pred_check
    _
  $region19: #{tpu_custom_call.1} parent=0 // pred_check_branch
    %3853 = sbr.rel (0) target = $region21
  $region20: #{tpu_custom_call.1} parent=0 // pred_region
    _
  $region21: #{tpu_custom_call.1} parent=0 // pred_fallthru
    _
  // Predicated region
  $region22: #{tpu_custom_call.1} parent=0 // pred_check
    _
  $region23: #{tpu_custom_call.1} parent=0 // pred_check_branch
    %3855 = sbr.rel (0) target = $region25
  $region24: #{tpu_custom_call.1} parent=0 // pred_region
    _
  $region25: #{tpu_custom_call.1} parent=0 // pred_fallthru
    _

</llo_original>
